<compile_context>
chip_gen: v7x
topology: tpu7x:2x2x1
jax: 0.10.0
libtpu: 0.0.40
codegen_flags: <defaults>
</compile_context>

<pallas_src>
import jax
import jax.numpy as jnp
import numpy as np
from jax import lax
from jax.experimental import pallas as pl
from jax.experimental.pallas import tpu as pltpu


_VMEM_SPEC = pl.BlockSpec(memory_space=pltpu.MemorySpace.VMEM)


# ----------------------------- fused forward kernel -------------------------
def lenet_kernel(x_ref, t1_ref, c1b_ref, t2_ref, c2b_ref,
                 w1r_ref, f1b_ref, w2_ref, f2b_ref, w3_ref, f3b_ref,
                 o_ref, y1_ref, p1_ref, y2_ref, p2_ref):
    # x_ref:  (B, 1, 32, 32)  NCHW input
    # t1_ref: (5, 32, 256)    conv1 Toeplitz-over-W weights (per ki)
    # c1b_ref:(1, 256)        conv1 bias laid out on the same 256 columns
    # t2_ref: (5, 84, 256)    conv2 Toeplitz-over-W weights (per ki)
    # c2b_ref:(1, 256)        conv2 bias row
    # w1r_ref:(5, 80, 120)    fc1 weights regrouped per pooled spatial row
    # f1b/f2b/f3b: fc biases, w2/w3: fc2/fc3 weights
    # scratch: y1 (28,256), p1 (14,84), y2 (10,256), p2 (5,B,80)
    B = x_ref.shape[0]
    f32 = jnp.float32

    for b in range(B):
        # ---- conv1: 5 dense matmuls, output columns = (W-parity, q, co) ----
        acc1 = jnp.zeros((28, 256), f32)
        for ki in range(5):
            acc1 = acc1 + jnp.dot(x_ref[b, 0, ki:ki + 28, :], t1_ref[ki],
                                  preferred_element_type=f32)
        y1_ref[...] = acc1 + c1b_ref[...]

        # ---- maxpool 2x2 #1 (W-pairs = the two 128-aligned lane blocks,
        #      H-pairs = adjacent rows) ----
        for p in range(14):
            r0 = jnp.maximum(y1_ref[2 * p:2 * p + 1, 0:84],
                             y1_ref[2 * p:2 * p + 1, 128:212])
            r1 = jnp.maximum(y1_ref[2 * p + 1:2 * p + 2, 0:84],
                             y1_ref[2 * p + 1:2 * p + 2, 128:212])
            p1_ref[p:p + 1, :] = jnp.maximum(r0, r1)

        # ---- conv2: 5 dense matmuls on the pooled (14, 84) activations ----
        acc2 = jnp.zeros((10, 256), f32)
        for ki in range(5):
            acc2 = acc2 + jnp.dot(p1_ref[ki:ki + 10, :], t2_ref[ki],
                                  preferred_element_type=f32)
        y2_ref[...] = acc2 + c2b_ref[...]

        # ---- maxpool 2x2 #2 ----
        for m in range(5):
            r0 = jnp.maximum(y2_ref[2 * m:2 * m + 1, 0:80],
                             y2_ref[2 * m:2 * m + 1, 128:208])
            r1 = jnp.maximum(y2_ref[2 * m + 1:2 * m + 2, 0:80],
                             y2_ref[2 * m + 1:2 * m + 2, 128:208])
            p2_ref[m, b:b + 1, :] = jnp.maximum(r0, r1)

    # ---- fc1: (C,H,W)-order flatten folded into per-row matmuls ----
    h = jnp.zeros((B, 120), f32)
    for hrow in range(5):
        h = h + jnp.dot(p2_ref[hrow], w1r_ref[hrow],
                        preferred_element_type=f32)
    h = h + f1b_ref[...]

    # ---- fc2, fc3 ----
    h = jnp.dot(h, w2_ref[...], preferred_element_type=f32) + f2b_ref[...]
    logits = jnp.dot(h, w3_ref[...], preferred_element_type=f32) + f3b_ref[...]

    # ---- F.softmax(..., dim=0): softmax across the BATCH axis ----
    mx = jnp.max(logits, axis=0, keepdims=True)
    e = jnp.exp(logits - mx)
    o_ref[...] = e / jnp.sum(e, axis=0, keepdims=True)
    # TODO(synk): the module's `p(x.size())` debug print is intentionally omitted.


# ----------------------------- one-time weight preprocessing ----------------
def prepare_params(params):
    """Expand conv weights into Toeplitz-over-W matrices and permute fc1 rows.

    Column layout of the conv outputs (width 256):
      conv1: col = (oj % 2) * 128 + (oj // 2) * 6  + co   (oj in [0,28), co in [0,6))
      conv2: col = (oj % 2) * 128 + (oj // 2) * 16 + co   (oj in [0,10), co in [0,16))
    so the 2x2 max-pool along W is just max(block[0:84], block[128:212]).
    """
    wc1, bc1, wc2, bc2, wf1, bf1, wf2, bf2, wf3, bf3 = params

    # conv1 Toeplitz: t1[ki, j, col(oj, co)] = wc1[ki, j - oj, 0, co]
    w1s = wc1[:, :, 0, :]                                  # (5, 5, 6)
    t1 = jnp.zeros((5, 32, 256), jnp.float32)
    c1row = jnp.zeros((1, 256), jnp.float32)
    for oj in range(28):
        base = (oj % 2) * 128 + (oj // 2) * 6
        t1 = t1.at[:, oj:oj + 5, base:base + 6].set(w1s)
        c1row = c1row.at[0, base:base + 6].set(bc1[0])

    # conv2 Toeplitz: input lanes = q*6 + ci (q = pooled-W index of pool1)
    t2 = jnp.zeros((5, 84, 256), jnp.float32)
    c2row = jnp.zeros((1, 256), jnp.float32)
    for oj2 in range(10):
        base = (oj2 % 2) * 128 + (oj2 // 2) * 16
        c2row = c2row.at[0, base:base + 16].set(bc2[0])
        for kj in range(5):
            q = oj2 + kj
            t2 = t2.at[:, q * 6:(q + 1) * 6, base:base + 16].set(wc2[:, kj, :, :])

    # fc1 rows are indexed by flat = c*25 + h*5 + w (PyTorch x.view order);
    # regroup to (h, w*16 + c, out) to match the pooled2 lane layout n*16 + co.
    w1r = wf1.reshape(16, 5, 5, 120).transpose(1, 2, 0, 3).reshape(5, 80, 120)

    return (t1, c1row, t2, c2row, w1r, bf1, wf2, bf2, wf3, bf3)


# ----------------------------- full model forward ---------------------------
def model1_forward(x_nchw, prep):
    t1, c1row, t2, c2row, w1r, bf1, wf2, bf2, wf3, bf3 = prep
    B = x_nchw.shape[0]
    return pl.pallas_call(
        lenet_kernel,
        out_shape=jax.ShapeDtypeStruct((B, 10), jnp.float32),
        in_specs=[_VMEM_SPEC] * 11,
        out_specs=_VMEM_SPEC,
        scratch_shapes=[
            pltpu.VMEM((28, 256), jnp.float32),   # conv1 output slab
            pltpu.VMEM((14, 84), jnp.float32),    # pool1 output
            pltpu.VMEM((10, 256), jnp.float32),   # conv2 output slab
            pltpu.VMEM((5, B, 80), jnp.float32),  # pool2 output (both samples)
        ],
    )(x_nchw, t1, c1row, t2, c2row, w1r, bf1, wf2, bf2, wf3, bf3)


# ----------------------------- pure-JAX reference ---------------------------
def reference_forward(x_nchw, params):
    wc1, bc1, wc2, bc2, wf1, bf1, wf2, bf2, wf3, bf3 = params

    def conv(x, w, b):
        y = lax.conv_general_dilated(
            x, w, window_strides=(1, 1), padding="VALID",
            dimension_numbers=("NHWC", "HWIO", "NHWC"))
        return y + b.reshape(1, 1, 1, -1)

    def pool(x):
        return lax.reduce_window(x, -jnp.inf, lax.max,
                                 (1, 2, 2, 1), (1, 2, 2, 1), "VALID")

    x = jnp.transpose(x_nchw, (0, 2, 3, 1))
    x = pool(conv(x, wc1, bc1))
    x = pool(conv(x, wc2, bc2))
    x = jnp.transpose(x, (0, 3, 1, 2)).reshape(x.shape[0], -1)
    h = x @ wf1 + bf1
    h = h @ wf2 + bf2
    logits = h @ wf3 + bf3
    return jax.nn.softmax(logits, axis=0)


# ----------------------------- deterministic params -------------------------
def init_params(key):
    def uniform(k, shape, fan_in):
        bound = 1.0 / float(np.sqrt(fan_in))
        return jax.random.uniform(k, shape, jnp.float32, -bound, bound)

    ks = jax.random.split(key, 10)
    wc1 = uniform(ks[0], (5, 5, 1, 6), 1 * 5 * 5)          # HWIO
    bc1 = uniform(ks[1], (1, 6), 1 * 5 * 5)
    wc2 = uniform(ks[2], (5, 5, 6, 16), 6 * 5 * 5)
    bc2 = uniform(ks[3], (1, 16), 6 * 5 * 5)
    wf1 = uniform(ks[4], (400, 120), 400)                  # (in, out)
    bf1 = uniform(ks[5], (1, 120), 400)
    wf2 = uniform(ks[6], (120, 84), 120)
    bf2 = uniform(ks[7], (1, 84), 120)
    wf3 = uniform(ks[8], (84, 10), 84)
    bf3 = uniform(ks[9], (1, 10), 84)
    return (wc1, bc1, wc2, bc2, wf1, bf1, wf2, bf2, wf3, bf3)


if __name__ == "__main__":
    key = jax.random.PRNGKey(0)
    pkey, xkey = jax.random.split(key)
    params = init_params(pkey)
    # PyTorch-style NCHW input; 32x32 is required by fc1's 16*5*5 input size.
    x = jax.random.normal(xkey, (2, 1, 32, 32), jnp.float32)

    prep = prepare_params(params)                # one-time weight preprocessing
    fwd = jax.jit(model1_forward)

    out = jax.block_until_ready(fwd(x, prep))
    ref = jax.block_until_ready(reference_forward(x, params))

    assert out.shape == (2, 10)
    np.testing.assert_allclose(np.asarray(out), np.asarray(ref),
                               rtol=5e-3, atol=5e-3)
    print("KERNEL_OK")
</pallas_src>

<mosaic_0001>
module attributes {stable_mosaic.version = 11 : i64} {
  func.func @lenet_kernel(%arg0: memref<2x1x32x32xf32, #tpu.memory_space<vmem>>, %arg1: memref<5x32x256xf32, #tpu.memory_space<vmem>>, %arg2: memref<1x256xf32, #tpu.memory_space<vmem>>, %arg3: memref<5x84x256xf32, #tpu.memory_space<vmem>>, %arg4: memref<1x256xf32, #tpu.memory_space<vmem>>, %arg5: memref<5x80x120xf32, #tpu.memory_space<vmem>>, %arg6: memref<1x120xf32, #tpu.memory_space<vmem>>, %arg7: memref<120x84xf32, #tpu.memory_space<vmem>>, %arg8: memref<1x84xf32, #tpu.memory_space<vmem>>, %arg9: memref<84x10xf32, #tpu.memory_space<vmem>>, %arg10: memref<1x10xf32, #tpu.memory_space<vmem>>, %arg11: memref<2x10xf32, #tpu.memory_space<vmem>>, %arg12: memref<28x256xf32, #tpu.memory_space<vmem>>, %arg13: memref<14x84xf32, #tpu.memory_space<vmem>>, %arg14: memref<10x256xf32, #tpu.memory_space<vmem>>, %arg15: memref<5x2x80xf32, #tpu.memory_space<vmem>>) attributes {dimension_semantics = [], scalar_prefetch = 0 : i64, scratch_operands = 4 : i64, tpu.core_type = #tpu.core_type<tc>} {
    %cst = arith.constant 0.000000e+00 : f32
    %0 = vector.broadcast %cst : f32 to vector<28x256xf32>
    %c0 = arith.constant 0 : index
    %c0_0 = arith.constant 0 : index
    %c0_1 = arith.constant 0 : index
    %c0_2 = arith.constant 0 : index
    %1 = vector.load %arg0[%c0, %c0_0, %c0_1, %c0_2] : memref<2x1x32x32xf32, #tpu.memory_space<vmem>>, vector<1x1x28x32xf32>
    %2 = vector.shape_cast %1 : vector<1x1x28x32xf32> to vector<28x32xf32>
    %c0_3 = arith.constant 0 : index
    %c0_4 = arith.constant 0 : index
    %c0_5 = arith.constant 0 : index
    %3 = vector.load %arg1[%c0_3, %c0_4, %c0_5] : memref<5x32x256xf32, #tpu.memory_space<vmem>>, vector<1x32x256xf32>
    %4 = vector.shape_cast %3 : vector<1x32x256xf32> to vector<32x256xf32>
    %cst_6 = arith.constant dense<0.000000e+00> : vector<28x256xf32>
    %5 = tpu.matmul %2, %4, %cst_6 {dimension_numbers = #tpu.dot_dimension_numbers<[1], [0], [0], [1], [0, 0, 1, 1], [], []>} : vector<28x32xf32>, vector<32x256xf32>, vector<28x256xf32> -> vector<28x256xf32>
    %6 = arith.addf %0, %5 : vector<28x256xf32>
    %c0_7 = arith.constant 0 : index
    %c0_8 = arith.constant 0 : index
    %c1 = arith.constant 1 : index
    %c0_9 = arith.constant 0 : index
    %7 = vector.load %arg0[%c0_7, %c0_8, %c1, %c0_9] : memref<2x1x32x32xf32, #tpu.memory_space<vmem>>, vector<1x1x28x32xf32>
    %8 = vector.shape_cast %7 : vector<1x1x28x32xf32> to vector<28x32xf32>
    %c1_10 = arith.constant 1 : index
    %c0_11 = arith.constant 0 : index
    %c0_12 = arith.constant 0 : index
    %9 = vector.load %arg1[%c1_10, %c0_11, %c0_12] : memref<5x32x256xf32, #tpu.memory_space<vmem>>, vector<1x32x256xf32>
    %10 = vector.shape_cast %9 : vector<1x32x256xf32> to vector<32x256xf32>
    %cst_13 = arith.constant dense<0.000000e+00> : vector<28x256xf32>
    %11 = tpu.matmul %8, %10, %cst_13 {dimension_numbers = #tpu.dot_dimension_numbers<[1], [0], [0], [1], [0, 0, 1, 1], [], []>} : vector<28x32xf32>, vector<32x256xf32>, vector<28x256xf32> -> vector<28x256xf32>
    %12 = arith.addf %6, %11 : vector<28x256xf32>
    %c0_14 = arith.constant 0 : index
    %c0_15 = arith.constant 0 : index
    %c2 = arith.constant 2 : index
    %c0_16 = arith.constant 0 : index
    %13 = vector.load %arg0[%c0_14, %c0_15, %c2, %c0_16] : memref<2x1x32x32xf32, #tpu.memory_space<vmem>>, vector<1x1x28x32xf32>
    %14 = vector.shape_cast %13 : vector<1x1x28x32xf32> to vector<28x32xf32>
    %c2_17 = arith.constant 2 : index
    %c0_18 = arith.constant 0 : index
    %c0_19 = arith.constant 0 : index
    %15 = vector.load %arg1[%c2_17, %c0_18, %c0_19] : memref<5x32x256xf32, #tpu.memory_space<vmem>>, vector<1x32x256xf32>
    %16 = vector.shape_cast %15 : vector<1x32x256xf32> to vector<32x256xf32>
    %cst_20 = arith.constant dense<0.000000e+00> : vector<28x256xf32>
    %17 = tpu.matmul %14, %16, %cst_20 {dimension_numbers = #tpu.dot_dimension_numbers<[1], [0], [0], [1], [0, 0, 1, 1], [], []>} : vector<28x32xf32>, vector<32x256xf32>, vector<28x256xf32> -> vector<28x256xf32>
    %18 = arith.addf %12, %17 : vector<28x256xf32>
    %c0_21 = arith.constant 0 : index
    %c0_22 = arith.constant 0 : index
    %c3 = arith.constant 3 : index
    %c0_23 = arith.constant 0 : index
    %19 = vector.load %arg0[%c0_21, %c0_22, %c3, %c0_23] : memref<2x1x32x32xf32, #tpu.memory_space<vmem>>, vector<1x1x28x32xf32>
    %20 = vector.shape_cast %19 : vector<1x1x28x32xf32> to vector<28x32xf32>
    %c3_24 = arith.constant 3 : index
    %c0_25 = arith.constant 0 : index
    %c0_26 = arith.constant 0 : index
    %21 = vector.load %arg1[%c3_24, %c0_25, %c0_26] : memref<5x32x256xf32, #tpu.memory_space<vmem>>, vector<1x32x256xf32>
    %22 = vector.shape_cast %21 : vector<1x32x256xf32> to vector<32x256xf32>
    %cst_27 = arith.constant dense<0.000000e+00> : vector<28x256xf32>
    %23 = tpu.matmul %20, %22, %cst_27 {dimension_numbers = #tpu.dot_dimension_numbers<[1], [0], [0], [1], [0, 0, 1, 1], [], []>} : vector<28x32xf32>, vector<32x256xf32>, vector<28x256xf32> -> vector<28x256xf32>
    %24 = arith.addf %18, %23 : vector<28x256xf32>
    %c0_28 = arith.constant 0 : index
    %c0_29 = arith.constant 0 : index
    %c4 = arith.constant 4 : index
    %c0_30 = arith.constant 0 : index
    %25 = vector.load %arg0[%c0_28, %c0_29, %c4, %c0_30] : memref<2x1x32x32xf32, #tpu.memory_space<vmem>>, vector<1x1x28x32xf32>
    %26 = vector.shape_cast %25 : vector<1x1x28x32xf32> to vector<28x32xf32>
    %c4_31 = arith.constant 4 : index
    %c0_32 = arith.constant 0 : index
    %c0_33 = arith.constant 0 : index
    %27 = vector.load %arg1[%c4_31, %c0_32, %c0_33] : memref<5x32x256xf32, #tpu.memory_space<vmem>>, vector<1x32x256xf32>
    %28 = vector.shape_cast %27 : vector<1x32x256xf32> to vector<32x256xf32>
    %cst_34 = arith.constant dense<0.000000e+00> : vector<28x256xf32>
    %29 = tpu.matmul %26, %28, %cst_34 {dimension_numbers = #tpu.dot_dimension_numbers<[1], [0], [0], [1], [0, 0, 1, 1], [], []>} : vector<28x32xf32>, vector<32x256xf32>, vector<28x256xf32> -> vector<28x256xf32>
    %30 = arith.addf %24, %29 : vector<28x256xf32>
    %c0_35 = arith.constant 0 : index
    %c0_36 = arith.constant 0 : index
    %31 = vector.load %arg2[%c0_35, %c0_36] : memref<1x256xf32, #tpu.memory_space<vmem>>, vector<1x256xf32>
    %32 = vector.broadcast %31 : vector<1x256xf32> to vector<28x256xf32>
    %33 = arith.addf %30, %32 : vector<28x256xf32>
    %c0_37 = arith.constant 0 : index
    %c0_38 = arith.constant 0 : index
    %34 = vector.load %arg12[%c0_37, %c0_38] : memref<28x256xf32, #tpu.memory_space<vmem>>, vector<28x256xf32>
    tpu.vector_store %arg12[%c0_37, %c0_38], %33 {strides = array<i32>} : memref<28x256xf32, #tpu.memory_space<vmem>>, vector<28x256xf32>,
    %c0_39 = arith.constant 0 : index
    %c0_40 = arith.constant 0 : index
    %35 = vector.load %arg12[%c0_39, %c0_40] : memref<28x256xf32, #tpu.memory_space<vmem>>, vector<1x84xf32>
    %c0_41 = arith.constant 0 : index
    %c128 = arith.constant 128 : index
    %36 = vector.load %arg12[%c0_41, %c128] : memref<28x256xf32, #tpu.memory_space<vmem>>, vector<1x84xf32>
    %37 = arith.maximumf %35, %36 : vector<1x84xf32>
    %c1_42 = arith.constant 1 : index
    %c0_43 = arith.constant 0 : index
    %38 = vector.load %arg12[%c1_42, %c0_43] : memref<28x256xf32, #tpu.memory_space<vmem>>, vector<1x84xf32>
    %c1_44 = arith.constant 1 : index
    %c128_45 = arith.constant 128 : index
    %39 = vector.load %arg12[%c1_44, %c128_45] : memref<28x256xf32, #tpu.memory_space<vmem>>, vector<1x84xf32>
    %40 = arith.maximumf %38, %39 : vector<1x84xf32>
    %41 = arith.maximumf %37, %40 : vector<1x84xf32>
    %c0_46 = arith.constant 0 : index
    %c0_47 = arith.constant 0 : index
    %42 = vector.load %arg13[%c0_46, %c0_47] : memref<14x84xf32, #tpu.memory_space<vmem>>, vector<1x84xf32>
    tpu.vector_store %arg13[%c0_46, %c0_47], %41 {strides = array<i32>} : memref<14x84xf32, #tpu.memory_space<vmem>>, vector<1x84xf32>,
    %c2_48 = arith.constant 2 : index
    %c0_49 = arith.constant 0 : index
    %43 = vector.load %arg12[%c2_48, %c0_49] : memref<28x256xf32, #tpu.memory_space<vmem>>, vector<1x84xf32>
    %c2_50 = arith.constant 2 : index
    %c128_51 = arith.constant 128 : index
    %44 = vector.load %arg12[%c2_50, %c128_51] : memref<28x256xf32, #tpu.memory_space<vmem>>, vector<1x84xf32>
    %45 = arith.maximumf %43, %44 : vector<1x84xf32>
    %c3_52 = arith.constant 3 : index
    %c0_53 = arith.constant 0 : index
    %46 = vector.load %arg12[%c3_52, %c0_53] : memref<28x256xf32, #tpu.memory_space<vmem>>, vector<1x84xf32>
    %c3_54 = arith.constant 3 : index
    %c128_55 = arith.constant 128 : index
    %47 = vector.load %arg12[%c3_54, %c128_55] : memref<28x256xf32, #tpu.memory_space<vmem>>, vector<1x84xf32>
    %48 = arith.maximumf %46, %47 : vector<1x84xf32>
    %49 = arith.maximumf %45, %48 : vector<1x84xf32>
    %c1_56 = arith.constant 1 : index
    %c0_57 = arith.constant 0 : index
    %50 = vector.load %arg13[%c1_56, %c0_57] : memref<14x84xf32, #tpu.memory_space<vmem>>, vector<1x84xf32>
    tpu.vector_store %arg13[%c1_56, %c0_57], %49 {strides = array<i32>} : memref<14x84xf32, #tpu.memory_space<vmem>>, vector<1x84xf32>,
    %c4_58 = arith.constant 4 : index
    %c0_59 = arith.constant 0 : index
    %51 = vector.load %arg12[%c4_58, %c0_59] : memref<28x256xf32, #tpu.memory_space<vmem>>, vector<1x84xf32>
    %c4_60 = arith.constant 4 : index
    %c128_61 = arith.constant 128 : index
    %52 = vector.load %arg12[%c4_60, %c128_61] : memref<28x256xf32, #tpu.memory_space<vmem>>, vector<1x84xf32>
    %53 = arith.maximumf %51, %52 : vector<1x84xf32>
    %c5 = arith.constant 5 : index
    %c0_62 = arith.constant 0 : index
    %54 = vector.load %arg12[%c5, %c0_62] : memref<28x256xf32, #tpu.memory_space<vmem>>, vector<1x84xf32>
    %c5_63 = arith.constant 5 : index
    %c128_64 = arith.constant 128 : index
    %55 = vector.load %arg12[%c5_63, %c128_64] : memref<28x256xf32, #tpu.memory_space<vmem>>, vector<1x84xf32>
    %56 = arith.maximumf %54, %55 : vector<1x84xf32>
    %57 = arith.maximumf %53, %56 : vector<1x84xf32>
    %c2_65 = arith.constant 2 : index
    %c0_66 = arith.constant 0 : index
    %58 = vector.load %arg13[%c2_65, %c0_66] : memref<14x84xf32, #tpu.memory_space<vmem>>, vector<1x84xf32>
    tpu.vector_store %arg13[%c2_65, %c0_66], %57 {strides = array<i32>} : memref<14x84xf32, #tpu.memory_space<vmem>>, vector<1x84xf32>,
    %c6 = arith.constant 6 : index
    %c0_67 = arith.constant 0 : index
    %59 = vector.load %arg12[%c6, %c0_67] : memref<28x256xf32, #tpu.memory_space<vmem>>, vector<1x84xf32>
    %c6_68 = arith.constant 6 : index
    %c128_69 = arith.constant 128 : index
    %60 = vector.load %arg12[%c6_68, %c128_69] : memref<28x256xf32, #tpu.memory_space<vmem>>, vector<1x84xf32>
    %61 = arith.maximumf %59, %60 : vector<1x84xf32>
    %c7 = arith.constant 7 : index
    %c0_70 = arith.constant 0 : index
    %62 = vector.load %arg12[%c7, %c0_70] : memref<28x256xf32, #tpu.memory_space<vmem>>, vector<1x84xf32>
    %c7_71 = arith.constant 7 : index
    %c128_72 = arith.constant 128 : index
    %63 = vector.load %arg12[%c7_71, %c128_72] : memref<28x256xf32, #tpu.memory_space<vmem>>, vector<1x84xf32>
    %64 = arith.maximumf %62, %63 : vector<1x84xf32>
    %65 = arith.maximumf %61, %64 : vector<1x84xf32>
    %c3_73 = arith.constant 3 : index
    %c0_74 = arith.constant 0 : index
    %66 = vector.load %arg13[%c3_73, %c0_74] : memref<14x84xf32, #tpu.memory_space<vmem>>, vector<1x84xf32>
    tpu.vector_store %arg13[%c3_73, %c0_74], %65 {strides = array<i32>} : memref<14x84xf32, #tpu.memory_space<vmem>>, vector<1x84xf32>,
    %c8 = arith.constant 8 : index
    %c0_75 = arith.constant 0 : index
    %67 = vector.load %arg12[%c8, %c0_75] : memref<28x256xf32, #tpu.memory_space<vmem>>, vector<1x84xf32>
    %c8_76 = arith.constant 8 : index
    %c128_77 = arith.constant 128 : index
    %68 = vector.load %arg12[%c8_76, %c128_77] : memref<28x256xf32, #tpu.memory_space<vmem>>, vector<1x84xf32>
    %69 = arith.maximumf %67, %68 : vector<1x84xf32>
    %c9 = arith.constant 9 : index
    %c0_78 = arith.constant 0 : index
    %70 = vector.load %arg12[%c9, %c0_78] : memref<28x256xf32, #tpu.memory_space<vmem>>, vector<1x84xf32>
    %c9_79 = arith.constant 9 : index
    %c128_80 = arith.constant 128 : index
    %71 = vector.load %arg12[%c9_79, %c128_80] : memref<28x256xf32, #tpu.memory_space<vmem>>, vector<1x84xf32>
    %72 = arith.maximumf %70, %71 : vector<1x84xf32>
    %73 = arith.maximumf %69, %72 : vector<1x84xf32>
    %c4_81 = arith.constant 4 : index
    %c0_82 = arith.constant 0 : index
    %74 = vector.load %arg13[%c4_81, %c0_82] : memref<14x84xf32, #tpu.memory_space<vmem>>, vector<1x84xf32>
    tpu.vector_store %arg13[%c4_81, %c0_82], %73 {strides = array<i32>} : memref<14x84xf32, #tpu.memory_space<vmem>>, vector<1x84xf32>,
    %c10 = arith.constant 10 : index
    %c0_83 = arith.constant 0 : index
    %75 = vector.load %arg12[%c10, %c0_83] : memref<28x256xf32, #tpu.memory_space<vmem>>, vector<1x84xf32>
    %c10_84 = arith.constant 10 : index
    %c128_85 = arith.constant 128 : index
    %76 = vector.load %arg12[%c10_84, %c128_85] : memref<28x256xf32, #tpu.memory_space<vmem>>, vector<1x84xf32>
    %77 = arith.maximumf %75, %76 : vector<1x84xf32>
    %c11 = arith.constant 11 : index
    %c0_86 = arith.constant 0 : index
    %78 = vector.load %arg12[%c11, %c0_86] : memref<28x256xf32, #tpu.memory_space<vmem>>, vector<1x84xf32>
    %c11_87 = arith.constant 11 : index
    %c128_88 = arith.constant 128 : index
    %79 = vector.load %arg12[%c11_87, %c128_88] : memref<28x256xf32, #tpu.memory_space<vmem>>, vector<1x84xf32>
    %80 = arith.maximumf %78, %79 : vector<1x84xf32>
    %81 = arith.maximumf %77, %80 : vector<1x84xf32>
    %c5_89 = arith.constant 5 : index
    %c0_90 = arith.constant 0 : index
    %82 = vector.load %arg13[%c5_89, %c0_90] : memref<14x84xf32, #tpu.memory_space<vmem>>, vector<1x84xf32>
    tpu.vector_store %arg13[%c5_89, %c0_90], %81 {strides = array<i32>} : memref<14x84xf32, #tpu.memory_space<vmem>>, vector<1x84xf32>,
    %c12 = arith.constant 12 : index
    %c0_91 = arith.constant 0 : index
    %83 = vector.load %arg12[%c12, %c0_91] : memref<28x256xf32, #tpu.memory_space<vmem>>, vector<1x84xf32>
    %c12_92 = arith.constant 12 : index
    %c128_93 = arith.constant 128 : index
    %84 = vector.load %arg12[%c12_92, %c128_93] : memref<28x256xf32, #tpu.memory_space<vmem>>, vector<1x84xf32>
    %85 = arith.maximumf %83, %84 : vector<1x84xf32>
    %c13 = arith.constant 13 : index
    %c0_94 = arith.constant 0 : index
    %86 = vector.load %arg12[%c13, %c0_94] : memref<28x256xf32, #tpu.memory_space<vmem>>, vector<1x84xf32>
    %c13_95 = arith.constant 13 : index
    %c128_96 = arith.constant 128 : index
    %87 = vector.load %arg12[%c13_95, %c128_96] : memref<28x256xf32, #tpu.memory_space<vmem>>, vector<1x84xf32>
    %88 = arith.maximumf %86, %87 : vector<1x84xf32>
    %89 = arith.maximumf %85, %88 : vector<1x84xf32>
    %c6_97 = arith.constant 6 : index
    %c0_98 = arith.constant 0 : index
    %90 = vector.load %arg13[%c6_97, %c0_98] : memref<14x84xf32, #tpu.memory_space<vmem>>, vector<1x84xf32>
    tpu.vector_store %arg13[%c6_97, %c0_98], %89 {strides = array<i32>} : memref<14x84xf32, #tpu.memory_space<vmem>>, vector<1x84xf32>,
    %c14 = arith.constant 14 : index
    %c0_99 = arith.constant 0 : index
    %91 = vector.load %arg12[%c14, %c0_99] : memref<28x256xf32, #tpu.memory_space<vmem>>, vector<1x84xf32>
    %c14_100 = arith.constant 14 : index
    %c128_101 = arith.constant 128 : index
    %92 = vector.load %arg12[%c14_100, %c128_101] : memref<28x256xf32, #tpu.memory_space<vmem>>, vector<1x84xf32>
    %93 = arith.maximumf %91, %92 : vector<1x84xf32>
    %c15 = arith.constant 15 : index
    %c0_102 = arith.constant 0 : index
    %94 = vector.load %arg12[%c15, %c0_102] : memref<28x256xf32, #tpu.memory_space<vmem>>, vector<1x84xf32>
    %c15_103 = arith.constant 15 : index
    %c128_104 = arith.constant 128 : index
    %95 = vector.load %arg12[%c15_103, %c128_104] : memref<28x256xf32, #tpu.memory_space<vmem>>, vector<1x84xf32>
    %96 = arith.maximumf %94, %95 : vector<1x84xf32>
    %97 = arith.maximumf %93, %96 : vector<1x84xf32>
    %c7_105 = arith.constant 7 : index
    %c0_106 = arith.constant 0 : index
    %98 = vector.load %arg13[%c7_105, %c0_106] : memref<14x84xf32, #tpu.memory_space<vmem>>, vector<1x84xf32>
    tpu.vector_store %arg13[%c7_105, %c0_106], %97 {strides = array<i32>} : memref<14x84xf32, #tpu.memory_space<vmem>>, vector<1x84xf32>,
    %c16 = arith.constant 16 : index
    %c0_107 = arith.constant 0 : index
    %99 = vector.load %arg12[%c16, %c0_107] : memref<28x256xf32, #tpu.memory_space<vmem>>, vector<1x84xf32>
    %c16_108 = arith.constant 16 : index
    %c128_109 = arith.constant 128 : index
    %100 = vector.load %arg12[%c16_108, %c128_109] : memref<28x256xf32, #tpu.memory_space<vmem>>, vector<1x84xf32>
    %101 = arith.maximumf %99, %100 : vector<1x84xf32>
    %c17 = arith.constant 17 : index
    %c0_110 = arith.constant 0 : index
    %102 = vector.load %arg12[%c17, %c0_110] : memref<28x256xf32, #tpu.memory_space<vmem>>, vector<1x84xf32>
    %c17_111 = arith.constant 17 : index
    %c128_112 = arith.constant 128 : index
    %103 = vector.load %arg12[%c17_111, %c128_112] : memref<28x256xf32, #tpu.memory_space<vmem>>, vector<1x84xf32>
    %104 = arith.maximumf %102, %103 : vector<1x84xf32>
    %105 = arith.maximumf %101, %104 : vector<1x84xf32>
    %c8_113 = arith.constant 8 : index
    %c0_114 = arith.constant 0 : index
    %106 = vector.load %arg13[%c8_113, %c0_114] : memref<14x84xf32, #tpu.memory_space<vmem>>, vector<1x84xf32>
    tpu.vector_store %arg13[%c8_113, %c0_114], %105 {strides = array<i32>} : memref<14x84xf32, #tpu.memory_space<vmem>>, vector<1x84xf32>,
    %c18 = arith.constant 18 : index
    %c0_115 = arith.constant 0 : index
    %107 = vector.load %arg12[%c18, %c0_115] : memref<28x256xf32, #tpu.memory_space<vmem>>, vector<1x84xf32>
    %c18_116 = arith.constant 18 : index
    %c128_117 = arith.constant 128 : index
    %108 = vector.load %arg12[%c18_116, %c128_117] : memref<28x256xf32, #tpu.memory_space<vmem>>, vector<1x84xf32>
    %109 = arith.maximumf %107, %108 : vector<1x84xf32>
    %c19 = arith.constant 19 : index
    %c0_118 = arith.constant 0 : index
    %110 = vector.load %arg12[%c19, %c0_118] : memref<28x256xf32, #tpu.memory_space<vmem>>, vector<1x84xf32>
    %c19_119 = arith.constant 19 : index
    %c128_120 = arith.constant 128 : index
    %111 = vector.load %arg12[%c19_119, %c128_120] : memref<28x256xf32, #tpu.memory_space<vmem>>, vector<1x84xf32>
    %112 = arith.maximumf %110, %111 : vector<1x84xf32>
    %113 = arith.maximumf %109, %112 : vector<1x84xf32>
    %c9_121 = arith.constant 9 : index
    %c0_122 = arith.constant 0 : index
    %114 = vector.load %arg13[%c9_121, %c0_122] : memref<14x84xf32, #tpu.memory_space<vmem>>, vector<1x84xf32>
    tpu.vector_store %arg13[%c9_121, %c0_122], %113 {strides = array<i32>} : memref<14x84xf32, #tpu.memory_space<vmem>>, vector<1x84xf32>,
    %c20 = arith.constant 20 : index
    %c0_123 = arith.constant 0 : index
    %115 = vector.load %arg12[%c20, %c0_123] : memref<28x256xf32, #tpu.memory_space<vmem>>, vector<1x84xf32>
    %c20_124 = arith.constant 20 : index
    %c128_125 = arith.constant 128 : index
    %116 = vector.load %arg12[%c20_124, %c128_125] : memref<28x256xf32, #tpu.memory_space<vmem>>, vector<1x84xf32>
    %117 = arith.maximumf %115, %116 : vector<1x84xf32>
    %c21 = arith.constant 21 : index
    %c0_126 = arith.constant 0 : index
    %118 = vector.load %arg12[%c21, %c0_126] : memref<28x256xf32, #tpu.memory_space<vmem>>, vector<1x84xf32>
    %c21_127 = arith.constant 21 : index
    %c128_128 = arith.constant 128 : index
    %119 = vector.load %arg12[%c21_127, %c128_128] : memref<28x256xf32, #tpu.memory_space<vmem>>, vector<1x84xf32>
    %120 = arith.maximumf %118, %119 : vector<1x84xf32>
    %121 = arith.maximumf %117, %120 : vector<1x84xf32>
    %c10_129 = arith.constant 10 : index
    %c0_130 = arith.constant 0 : index
    %122 = vector.load %arg13[%c10_129, %c0_130] : memref<14x84xf32, #tpu.memory_space<vmem>>, vector<1x84xf32>
    tpu.vector_store %arg13[%c10_129, %c0_130], %121 {strides = array<i32>} : memref<14x84xf32, #tpu.memory_space<vmem>>, vector<1x84xf32>,
    %c22 = arith.constant 22 : index
    %c0_131 = arith.constant 0 : index
    %123 = vector.load %arg12[%c22, %c0_131] : memref<28x256xf32, #tpu.memory_space<vmem>>, vector<1x84xf32>
    %c22_132 = arith.constant 22 : index
    %c128_133 = arith.constant 128 : index
    %124 = vector.load %arg12[%c22_132, %c128_133] : memref<28x256xf32, #tpu.memory_space<vmem>>, vector<1x84xf32>
    %125 = arith.maximumf %123, %124 : vector<1x84xf32>
    %c23 = arith.constant 23 : index
    %c0_134 = arith.constant 0 : index
    %126 = vector.load %arg12[%c23, %c0_134] : memref<28x256xf32, #tpu.memory_space<vmem>>, vector<1x84xf32>
    %c23_135 = arith.constant 23 : index
    %c128_136 = arith.constant 128 : index
    %127 = vector.load %arg12[%c23_135, %c128_136] : memref<28x256xf32, #tpu.memory_space<vmem>>, vector<1x84xf32>
    %128 = arith.maximumf %126, %127 : vector<1x84xf32>
    %129 = arith.maximumf %125, %128 : vector<1x84xf32>
    %c11_137 = arith.constant 11 : index
    %c0_138 = arith.constant 0 : index
    %130 = vector.load %arg13[%c11_137, %c0_138] : memref<14x84xf32, #tpu.memory_space<vmem>>, vector<1x84xf32>
    tpu.vector_store %arg13[%c11_137, %c0_138], %129 {strides = array<i32>} : memref<14x84xf32, #tpu.memory_space<vmem>>, vector<1x84xf32>,
    %c24 = arith.constant 24 : index
    %c0_139 = arith.constant 0 : index
    %131 = vector.load %arg12[%c24, %c0_139] : memref<28x256xf32, #tpu.memory_space<vmem>>, vector<1x84xf32>
    %c24_140 = arith.constant 24 : index
    %c128_141 = arith.constant 128 : index
    %132 = vector.load %arg12[%c24_140, %c128_141] : memref<28x256xf32, #tpu.memory_space<vmem>>, vector<1x84xf32>
    %133 = arith.maximumf %131, %132 : vector<1x84xf32>
    %c25 = arith.constant 25 : index
    %c0_142 = arith.constant 0 : index
    %134 = vector.load %arg12[%c25, %c0_142] : memref<28x256xf32, #tpu.memory_space<vmem>>, vector<1x84xf32>
    %c25_143 = arith.constant 25 : index
    %c128_144 = arith.constant 128 : index
    %135 = vector.load %arg12[%c25_143, %c128_144] : memref<28x256xf32, #tpu.memory_space<vmem>>, vector<1x84xf32>
    %136 = arith.maximumf %134, %135 : vector<1x84xf32>
    %137 = arith.maximumf %133, %136 : vector<1x84xf32>
    %c12_145 = arith.constant 12 : index
    %c0_146 = arith.constant 0 : index
    %138 = vector.load %arg13[%c12_145, %c0_146] : memref<14x84xf32, #tpu.memory_space<vmem>>, vector<1x84xf32>
    tpu.vector_store %arg13[%c12_145, %c0_146], %137 {strides = array<i32>} : memref<14x84xf32, #tpu.memory_space<vmem>>, vector<1x84xf32>,
    %c26 = arith.constant 26 : index
    %c0_147 = arith.constant 0 : index
    %139 = vector.load %arg12[%c26, %c0_147] : memref<28x256xf32, #tpu.memory_space<vmem>>, vector<1x84xf32>
    %c26_148 = arith.constant 26 : index
    %c128_149 = arith.constant 128 : index
    %140 = vector.load %arg12[%c26_148, %c128_149] : memref<28x256xf32, #tpu.memory_space<vmem>>, vector<1x84xf32>
    %141 = arith.maximumf %139, %140 : vector<1x84xf32>
    %c27 = arith.constant 27 : index
    %c0_150 = arith.constant 0 : index
    %142 = vector.load %arg12[%c27, %c0_150] : memref<28x256xf32, #tpu.memory_space<vmem>>, vector<1x84xf32>
    %c27_151 = arith.constant 27 : index
    %c128_152 = arith.constant 128 : index
    %143 = vector.load %arg12[%c27_151, %c128_152] : memref<28x256xf32, #tpu.memory_space<vmem>>, vector<1x84xf32>
    %144 = arith.maximumf %142, %143 : vector<1x84xf32>
    %145 = arith.maximumf %141, %144 : vector<1x84xf32>
    %c13_153 = arith.constant 13 : index
    %c0_154 = arith.constant 0 : index
    %146 = vector.load %arg13[%c13_153, %c0_154] : memref<14x84xf32, #tpu.memory_space<vmem>>, vector<1x84xf32>
    tpu.vector_store %arg13[%c13_153, %c0_154], %145 {strides = array<i32>} : memref<14x84xf32, #tpu.memory_space<vmem>>, vector<1x84xf32>,
    %cst_155 = arith.constant 0.000000e+00 : f32
    %147 = vector.broadcast %cst_155 : f32 to vector<10x256xf32>
    %c0_156 = arith.constant 0 : index
    %c0_157 = arith.constant 0 : index
    %148 = vector.load %arg13[%c0_156, %c0_157] : memref<14x84xf32, #tpu.memory_space<vmem>>, vector<10x84xf32>
    %c0_158 = arith.constant 0 : index
    %c0_159 = arith.constant 0 : index
    %c0_160 = arith.constant 0 : index
    %149 = vector.load %arg3[%c0_158, %c0_159, %c0_160] : memref<5x84x256xf32, #tpu.memory_space<vmem>>, vector<1x84x256xf32>
    %150 = vector.shape_cast %149 : vector<1x84x256xf32> to vector<84x256xf32>
    %cst_161 = arith.constant dense<0.000000e+00> : vector<10x256xf32>
    %151 = tpu.matmul %148, %150, %cst_161 {dimension_numbers = #tpu.dot_dimension_numbers<[1], [0], [0], [1], [0, 0, 1, 1], [], []>} : vector<10x84xf32>, vector<84x256xf32>, vector<10x256xf32> -> vector<10x256xf32>
    %152 = arith.addf %147, %151 : vector<10x256xf32>
    %c1_162 = arith.constant 1 : index
    %c0_163 = arith.constant 0 : index
    %153 = vector.load %arg13[%c1_162, %c0_163] : memref<14x84xf32, #tpu.memory_space<vmem>>, vector<10x84xf32>
    %c1_164 = arith.constant 1 : index
    %c0_165 = arith.constant 0 : index
    %c0_166 = arith.constant 0 : index
    %154 = vector.load %arg3[%c1_164, %c0_165, %c0_166] : memref<5x84x256xf32, #tpu.memory_space<vmem>>, vector<1x84x256xf32>
    %155 = vector.shape_cast %154 : vector<1x84x256xf32> to vector<84x256xf32>
    %cst_167 = arith.constant dense<0.000000e+00> : vector<10x256xf32>
    %156 = tpu.matmul %153, %155, %cst_167 {dimension_numbers = #tpu.dot_dimension_numbers<[1], [0], [0], [1], [0, 0, 1, 1], [], []>} : vector<10x84xf32>, vector<84x256xf32>, vector<10x256xf32> -> vector<10x256xf32>
    %157 = arith.addf %152, %156 : vector<10x256xf32>
    %c2_168 = arith.constant 2 : index
    %c0_169 = arith.constant 0 : index
    %158 = vector.load %arg13[%c2_168, %c0_169] : memref<14x84xf32, #tpu.memory_space<vmem>>, vector<10x84xf32>
    %c2_170 = arith.constant 2 : index
    %c0_171 = arith.constant 0 : index
    %c0_172 = arith.constant 0 : index
    %159 = vector.load %arg3[%c2_170, %c0_171, %c0_172] : memref<5x84x256xf32, #tpu.memory_space<vmem>>, vector<1x84x256xf32>
    %160 = vector.shape_cast %159 : vector<1x84x256xf32> to vector<84x256xf32>
    %cst_173 = arith.constant dense<0.000000e+00> : vector<10x256xf32>
    %161 = tpu.matmul %158, %160, %cst_173 {dimension_numbers = #tpu.dot_dimension_numbers<[1], [0], [0], [1], [0, 0, 1, 1], [], []>} : vector<10x84xf32>, vector<84x256xf32>, vector<10x256xf32> -> vector<10x256xf32>
    %162 = arith.addf %157, %161 : vector<10x256xf32>
    %c3_174 = arith.constant 3 : index
    %c0_175 = arith.constant 0 : index
    %163 = vector.load %arg13[%c3_174, %c0_175] : memref<14x84xf32, #tpu.memory_space<vmem>>, vector<10x84xf32>
    %c3_176 = arith.constant 3 : index
    %c0_177 = arith.constant 0 : index
    %c0_178 = arith.constant 0 : index
    %164 = vector.load %arg3[%c3_176, %c0_177, %c0_178] : memref<5x84x256xf32, #tpu.memory_space<vmem>>, vector<1x84x256xf32>
    %165 = vector.shape_cast %164 : vector<1x84x256xf32> to vector<84x256xf32>
    %cst_179 = arith.constant dense<0.000000e+00> : vector<10x256xf32>
    %166 = tpu.matmul %163, %165, %cst_179 {dimension_numbers = #tpu.dot_dimension_numbers<[1], [0], [0], [1], [0, 0, 1, 1], [], []>} : vector<10x84xf32>, vector<84x256xf32>, vector<10x256xf32> -> vector<10x256xf32>
    %167 = arith.addf %162, %166 : vector<10x256xf32>
    %c4_180 = arith.constant 4 : index
    %c0_181 = arith.constant 0 : index
    %168 = vector.load %arg13[%c4_180, %c0_181] : memref<14x84xf32, #tpu.memory_space<vmem>>, vector<10x84xf32>
    %c4_182 = arith.constant 4 : index
    %c0_183 = arith.constant 0 : index
    %c0_184 = arith.constant 0 : index
    %169 = vector.load %arg3[%c4_182, %c0_183, %c0_184] : memref<5x84x256xf32, #tpu.memory_space<vmem>>, vector<1x84x256xf32>
    %170 = vector.shape_cast %169 : vector<1x84x256xf32> to vector<84x256xf32>
    %cst_185 = arith.constant dense<0.000000e+00> : vector<10x256xf32>
    %171 = tpu.matmul %168, %170, %cst_185 {dimension_numbers = #tpu.dot_dimension_numbers<[1], [0], [0], [1], [0, 0, 1, 1], [], []>} : vector<10x84xf32>, vector<84x256xf32>, vector<10x256xf32> -> vector<10x256xf32>
    %172 = arith.addf %167, %171 : vector<10x256xf32>
    %c0_186 = arith.constant 0 : index
    %c0_187 = arith.constant 0 : index
    %173 = vector.load %arg4[%c0_186, %c0_187] : memref<1x256xf32, #tpu.memory_space<vmem>>, vector<1x256xf32>
    %174 = vector.broadcast %173 : vector<1x256xf32> to vector<10x256xf32>
    %175 = arith.addf %172, %174 : vector<10x256xf32>
    %c0_188 = arith.constant 0 : index
    %c0_189 = arith.constant 0 : index
    %176 = vector.load %arg14[%c0_188, %c0_189] : memref<10x256xf32, #tpu.memory_space<vmem>>, vector<10x256xf32>
    tpu.vector_store %arg14[%c0_188, %c0_189], %175 {strides = array<i32>} : memref<10x256xf32, #tpu.memory_space<vmem>>, vector<10x256xf32>,
    %c0_190 = arith.constant 0 : index
    %c0_191 = arith.constant 0 : index
    %177 = vector.load %arg14[%c0_190, %c0_191] : memref<10x256xf32, #tpu.memory_space<vmem>>, vector<1x80xf32>
    %c0_192 = arith.constant 0 : index
    %c128_193 = arith.constant 128 : index
    %178 = vector.load %arg14[%c0_192, %c128_193] : memref<10x256xf32, #tpu.memory_space<vmem>>, vector<1x80xf32>
    %179 = arith.maximumf %177, %178 : vector<1x80xf32>
    %c1_194 = arith.constant 1 : index
    %c0_195 = arith.constant 0 : index
    %180 = vector.load %arg14[%c1_194, %c0_195] : memref<10x256xf32, #tpu.memory_space<vmem>>, vector<1x80xf32>
    %c1_196 = arith.constant 1 : index
    %c128_197 = arith.constant 128 : index
    %181 = vector.load %arg14[%c1_196, %c128_197] : memref<10x256xf32, #tpu.memory_space<vmem>>, vector<1x80xf32>
    %182 = arith.maximumf %180, %181 : vector<1x80xf32>
    %183 = arith.maximumf %179, %182 : vector<1x80xf32>
    %c0_198 = arith.constant 0 : index
    %c0_199 = arith.constant 0 : index
    %c0_200 = arith.constant 0 : index
    %184 = vector.load %arg15[%c0_198, %c0_199, %c0_200] : memref<5x2x80xf32, #tpu.memory_space<vmem>>, vector<1x1x80xf32>
    %185 = vector.shape_cast %184 : vector<1x1x80xf32> to vector<1x80xf32>
    %186 = vector.shape_cast %183 : vector<1x80xf32> to vector<1x1x80xf32>
    tpu.vector_store %arg15[%c0_198, %c0_199, %c0_200], %186 {strides = array<i32>} : memref<5x2x80xf32, #tpu.memory_space<vmem>>, vector<1x1x80xf32>,
    %c2_201 = arith.constant 2 : index
    %c0_202 = arith.constant 0 : index
    %187 = vector.load %arg14[%c2_201, %c0_202] : memref<10x256xf32, #tpu.memory_space<vmem>>, vector<1x80xf32>
    %c2_203 = arith.constant 2 : index
    %c128_204 = arith.constant 128 : index
    %188 = vector.load %arg14[%c2_203, %c128_204] : memref<10x256xf32, #tpu.memory_space<vmem>>, vector<1x80xf32>
    %189 = arith.maximumf %187, %188 : vector<1x80xf32>
    %c3_205 = arith.constant 3 : index
    %c0_206 = arith.constant 0 : index
    %190 = vector.load %arg14[%c3_205, %c0_206] : memref<10x256xf32, #tpu.memory_space<vmem>>, vector<1x80xf32>
    %c3_207 = arith.constant 3 : index
    %c128_208 = arith.constant 128 : index
    %191 = vector.load %arg14[%c3_207, %c128_208] : memref<10x256xf32, #tpu.memory_space<vmem>>, vector<1x80xf32>
    %192 = arith.maximumf %190, %191 : vector<1x80xf32>
    %193 = arith.maximumf %189, %192 : vector<1x80xf32>
    %c1_209 = arith.constant 1 : index
    %c0_210 = arith.constant 0 : index
    %c0_211 = arith.constant 0 : index
    %194 = vector.load %arg15[%c1_209, %c0_210, %c0_211] : memref<5x2x80xf32, #tpu.memory_space<vmem>>, vector<1x1x80xf32>
    %195 = vector.shape_cast %194 : vector<1x1x80xf32> to vector<1x80xf32>
    %196 = vector.shape_cast %193 : vector<1x80xf32> to vector<1x1x80xf32>
    tpu.vector_store %arg15[%c1_209, %c0_210, %c0_211], %196 {strides = array<i32>} : memref<5x2x80xf32, #tpu.memory_space<vmem>>, vector<1x1x80xf32>,
    %c4_212 = arith.constant 4 : index
    %c0_213 = arith.constant 0 : index
    %197 = vector.load %arg14[%c4_212, %c0_213] : memref<10x256xf32, #tpu.memory_space<vmem>>, vector<1x80xf32>
    %c4_214 = arith.constant 4 : index
    %c128_215 = arith.constant 128 : index
    %198 = vector.load %arg14[%c4_214, %c128_215] : memref<10x256xf32, #tpu.memory_space<vmem>>, vector<1x80xf32>
    %199 = arith.maximumf %197, %198 : vector<1x80xf32>
    %c5_216 = arith.constant 5 : index
    %c0_217 = arith.constant 0 : index
    %200 = vector.load %arg14[%c5_216, %c0_217] : memref<10x256xf32, #tpu.memory_space<vmem>>, vector<1x80xf32>
    %c5_218 = arith.constant 5 : index
    %c128_219 = arith.constant 128 : index
    %201 = vector.load %arg14[%c5_218, %c128_219] : memref<10x256xf32, #tpu.memory_space<vmem>>, vector<1x80xf32>
    %202 = arith.maximumf %200, %201 : vector<1x80xf32>
    %203 = arith.maximumf %199, %202 : vector<1x80xf32>
    %c2_220 = arith.constant 2 : index
    %c0_221 = arith.constant 0 : index
    %c0_222 = arith.constant 0 : index
    %204 = vector.load %arg15[%c2_220, %c0_221, %c0_222] : memref<5x2x80xf32, #tpu.memory_space<vmem>>, vector<1x1x80xf32>
    %205 = vector.shape_cast %204 : vector<1x1x80xf32> to vector<1x80xf32>
    %206 = vector.shape_cast %203 : vector<1x80xf32> to vector<1x1x80xf32>
    tpu.vector_store %arg15[%c2_220, %c0_221, %c0_222], %206 {strides = array<i32>} : memref<5x2x80xf32, #tpu.memory_space<vmem>>, vector<1x1x80xf32>,
    %c6_223 = arith.constant 6 : index
    %c0_224 = arith.constant 0 : index
    %207 = vector.load %arg14[%c6_223, %c0_224] : memref<10x256xf32, #tpu.memory_space<vmem>>, vector<1x80xf32>
    %c6_225 = arith.constant 6 : index
    %c128_226 = arith.constant 128 : index
    %208 = vector.load %arg14[%c6_225, %c128_226] : memref<10x256xf32, #tpu.memory_space<vmem>>, vector<1x80xf32>
    %209 = arith.maximumf %207, %208 : vector<1x80xf32>
    %c7_227 = arith.constant 7 : index
    %c0_228 = arith.constant 0 : index
    %210 = vector.load %arg14[%c7_227, %c0_228] : memref<10x256xf32, #tpu.memory_space<vmem>>, vector<1x80xf32>
    %c7_229 = arith.constant 7 : index
    %c128_230 = arith.constant 128 : index
    %211 = vector.load %arg14[%c7_229, %c128_230] : memref<10x256xf32, #tpu.memory_space<vmem>>, vector<1x80xf32>
    %212 = arith.maximumf %210, %211 : vector<1x80xf32>
    %213 = arith.maximumf %209, %212 : vector<1x80xf32>
    %c3_231 = arith.constant 3 : index
    %c0_232 = arith.constant 0 : index
    %c0_233 = arith.constant 0 : index
    %214 = vector.load %arg15[%c3_231, %c0_232, %c0_233] : memref<5x2x80xf32, #tpu.memory_space<vmem>>, vector<1x1x80xf32>
    %215 = vector.shape_cast %214 : vector<1x1x80xf32> to vector<1x80xf32>
    %216 = vector.shape_cast %213 : vector<1x80xf32> to vector<1x1x80xf32>
    tpu.vector_store %arg15[%c3_231, %c0_232, %c0_233], %216 {strides = array<i32>} : memref<5x2x80xf32, #tpu.memory_space<vmem>>, vector<1x1x80xf32>,
    %c8_234 = arith.constant 8 : index
    %c0_235 = arith.constant 0 : index
    %217 = vector.load %arg14[%c8_234, %c0_235] : memref<10x256xf32, #tpu.memory_space<vmem>>, vector<1x80xf32>
    %c8_236 = arith.constant 8 : index
    %c128_237 = arith.constant 128 : index
    %218 = vector.load %arg14[%c8_236, %c128_237] : memref<10x256xf32, #tpu.memory_space<vmem>>, vector<1x80xf32>
    %219 = arith.maximumf %217, %218 : vector<1x80xf32>
    %c9_238 = arith.constant 9 : index
    %c0_239 = arith.constant 0 : index
    %220 = vector.load %arg14[%c9_238, %c0_239] : memref<10x256xf32, #tpu.memory_space<vmem>>, vector<1x80xf32>
    %c9_240 = arith.constant 9 : index
    %c128_241 = arith.constant 128 : index
    %221 = vector.load %arg14[%c9_240, %c128_241] : memref<10x256xf32, #tpu.memory_space<vmem>>, vector<1x80xf32>
    %222 = arith.maximumf %220, %221 : vector<1x80xf32>
    %223 = arith.maximumf %219, %222 : vector<1x80xf32>
    %c4_242 = arith.constant 4 : index
    %c0_243 = arith.constant 0 : index
    %c0_244 = arith.constant 0 : index
    %224 = vector.load %arg15[%c4_242, %c0_243, %c0_244] : memref<5x2x80xf32, #tpu.memory_space<vmem>>, vector<1x1x80xf32>
    %225 = vector.shape_cast %224 : vector<1x1x80xf32> to vector<1x80xf32>
    %226 = vector.shape_cast %223 : vector<1x80xf32> to vector<1x1x80xf32>
    tpu.vector_store %arg15[%c4_242, %c0_243, %c0_244], %226 {strides = array<i32>} : memref<5x2x80xf32, #tpu.memory_space<vmem>>, vector<1x1x80xf32>,
    %cst_245 = arith.constant 0.000000e+00 : f32
    %227 = vector.broadcast %cst_245 : f32 to vector<28x256xf32>
    %c1_246 = arith.constant 1 : index
    %c0_247 = arith.constant 0 : index
    %c0_248 = arith.constant 0 : index
    %c0_249 = arith.constant 0 : index
    %228 = vector.load %arg0[%c1_246, %c0_247, %c0_248, %c0_249] : memref<2x1x32x32xf32, #tpu.memory_space<vmem>>, vector<1x1x28x32xf32>
    %229 = vector.shape_cast %228 : vector<1x1x28x32xf32> to vector<28x32xf32>
    %c0_250 = arith.constant 0 : index
    %c0_251 = arith.constant 0 : index
    %c0_252 = arith.constant 0 : index
    %230 = vector.load %arg1[%c0_250, %c0_251, %c0_252] : memref<5x32x256xf32, #tpu.memory_space<vmem>>, vector<1x32x256xf32>
    %231 = vector.shape_cast %230 : vector<1x32x256xf32> to vector<32x256xf32>
    %cst_253 = arith.constant dense<0.000000e+00> : vector<28x256xf32>
    %232 = tpu.matmul %229, %231, %cst_253 {dimension_numbers = #tpu.dot_dimension_numbers<[1], [0], [0], [1], [0, 0, 1, 1], [], []>} : vector<28x32xf32>, vector<32x256xf32>, vector<28x256xf32> -> vector<28x256xf32>
    %233 = arith.addf %227, %232 : vector<28x256xf32>
    %c1_254 = arith.constant 1 : index
    %c0_255 = arith.constant 0 : index
    %c1_256 = arith.constant 1 : index
    %c0_257 = arith.constant 0 : index
    %234 = vector.load %arg0[%c1_254, %c0_255, %c1_256, %c0_257] : memref<2x1x32x32xf32, #tpu.memory_space<vmem>>, vector<1x1x28x32xf32>
    %235 = vector.shape_cast %234 : vector<1x1x28x32xf32> to vector<28x32xf32>
    %c1_258 = arith.constant 1 : index
    %c0_259 = arith.constant 0 : index
    %c0_260 = arith.constant 0 : index
    %236 = vector.load %arg1[%c1_258, %c0_259, %c0_260] : memref<5x32x256xf32, #tpu.memory_space<vmem>>, vector<1x32x256xf32>
    %237 = vector.shape_cast %236 : vector<1x32x256xf32> to vector<32x256xf32>
    %cst_261 = arith.constant dense<0.000000e+00> : vector<28x256xf32>
    %238 = tpu.matmul %235, %237, %cst_261 {dimension_numbers = #tpu.dot_dimension_numbers<[1], [0], [0], [1], [0, 0, 1, 1], [], []>} : vector<28x32xf32>, vector<32x256xf32>, vector<28x256xf32> -> vector<28x256xf32>
    %239 = arith.addf %233, %238 : vector<28x256xf32>
    %c1_262 = arith.constant 1 : index
    %c0_263 = arith.constant 0 : index
    %c2_264 = arith.constant 2 : index
    %c0_265 = arith.constant 0 : index
    %240 = vector.load %arg0[%c1_262, %c0_263, %c2_264, %c0_265] : memref<2x1x32x32xf32, #tpu.memory_space<vmem>>, vector<1x1x28x32xf32>
    %241 = vector.shape_cast %240 : vector<1x1x28x32xf32> to vector<28x32xf32>
    %c2_266 = arith.constant 2 : index
    %c0_267 = arith.constant 0 : index
    %c0_268 = arith.constant 0 : index
    %242 = vector.load %arg1[%c2_266, %c0_267, %c0_268] : memref<5x32x256xf32, #tpu.memory_space<vmem>>, vector<1x32x256xf32>
    %243 = vector.shape_cast %242 : vector<1x32x256xf32> to vector<32x256xf32>
    %cst_269 = arith.constant dense<0.000000e+00> : vector<28x256xf32>
    %244 = tpu.matmul %241, %243, %cst_269 {dimension_numbers = #tpu.dot_dimension_numbers<[1], [0], [0], [1], [0, 0, 1, 1], [], []>} : vector<28x32xf32>, vector<32x256xf32>, vector<28x256xf32> -> vector<28x256xf32>
    %245 = arith.addf %239, %244 : vector<28x256xf32>
    %c1_270 = arith.constant 1 : index
    %c0_271 = arith.constant 0 : index
    %c3_272 = arith.constant 3 : index
    %c0_273 = arith.constant 0 : index
    %246 = vector.load %arg0[%c1_270, %c0_271, %c3_272, %c0_273] : memref<2x1x32x32xf32, #tpu.memory_space<vmem>>, vector<1x1x28x32xf32>
    %247 = vector.shape_cast %246 : vector<1x1x28x32xf32> to vector<28x32xf32>
    %c3_274 = arith.constant 3 : index
    %c0_275 = arith.constant 0 : index
    %c0_276 = arith.constant 0 : index
    %248 = vector.load %arg1[%c3_274, %c0_275, %c0_276] : memref<5x32x256xf32, #tpu.memory_space<vmem>>, vector<1x32x256xf32>
    %249 = vector.shape_cast %248 : vector<1x32x256xf32> to vector<32x256xf32>
    %cst_277 = arith.constant dense<0.000000e+00> : vector<28x256xf32>
    %250 = tpu.matmul %247, %249, %cst_277 {dimension_numbers = #tpu.dot_dimension_numbers<[1], [0], [0], [1], [0, 0, 1, 1], [], []>} : vector<28x32xf32>, vector<32x256xf32>, vector<28x256xf32> -> vector<28x256xf32>
    %251 = arith.addf %245, %250 : vector<28x256xf32>
    %c1_278 = arith.constant 1 : index
    %c0_279 = arith.constant 0 : index
    %c4_280 = arith.constant 4 : index
    %c0_281 = arith.constant 0 : index
    %252 = vector.load %arg0[%c1_278, %c0_279, %c4_280, %c0_281] : memref<2x1x32x32xf32, #tpu.memory_space<vmem>>, vector<1x1x28x32xf32>
    %253 = vector.shape_cast %252 : vector<1x1x28x32xf32> to vector<28x32xf32>
    %c4_282 = arith.constant 4 : index
    %c0_283 = arith.constant 0 : index
    %c0_284 = arith.constant 0 : index
    %254 = vector.load %arg1[%c4_282, %c0_283, %c0_284] : memref<5x32x256xf32, #tpu.memory_space<vmem>>, vector<1x32x256xf32>
    %255 = vector.shape_cast %254 : vector<1x32x256xf32> to vector<32x256xf32>
    %cst_285 = arith.constant dense<0.000000e+00> : vector<28x256xf32>
    %256 = tpu.matmul %253, %255, %cst_285 {dimension_numbers = #tpu.dot_dimension_numbers<[1], [0], [0], [1], [0, 0, 1, 1], [], []>} : vector<28x32xf32>, vector<32x256xf32>, vector<28x256xf32> -> vector<28x256xf32>
    %257 = arith.addf %251, %256 : vector<28x256xf32>
    %c0_286 = arith.constant 0 : index
    %c0_287 = arith.constant 0 : index
    %258 = vector.load %arg2[%c0_286, %c0_287] : memref<1x256xf32, #tpu.memory_space<vmem>>, vector<1x256xf32>
    %259 = vector.broadcast %258 : vector<1x256xf32> to vector<28x256xf32>
    %260 = arith.addf %257, %259 : vector<28x256xf32>
    %c0_288 = arith.constant 0 : index
    %c0_289 = arith.constant 0 : index
    %261 = vector.load %arg12[%c0_288, %c0_289] : memref<28x256xf32, #tpu.memory_space<vmem>>, vector<28x256xf32>
    tpu.vector_store %arg12[%c0_288, %c0_289], %260 {strides = array<i32>} : memref<28x256xf32, #tpu.memory_space<vmem>>, vector<28x256xf32>,
    %c0_290 = arith.constant 0 : index
    %c0_291 = arith.constant 0 : index
    %262 = vector.load %arg12[%c0_290, %c0_291] : memref<28x256xf32, #tpu.memory_space<vmem>>, vector<1x84xf32>
    %c0_292 = arith.constant 0 : index
    %c128_293 = arith.constant 128 : index
    %263 = vector.load %arg12[%c0_292, %c128_293] : memref<28x256xf32, #tpu.memory_space<vmem>>, vector<1x84xf32>
    %264 = arith.maximumf %262, %263 : vector<1x84xf32>
    %c1_294 = arith.constant 1 : index
    %c0_295 = arith.constant 0 : index
    %265 = vector.load %arg12[%c1_294, %c0_295] : memref<28x256xf32, #tpu.memory_space<vmem>>, vector<1x84xf32>
    %c1_296 = arith.constant 1 : index
    %c128_297 = arith.constant 128 : index
    %266 = vector.load %arg12[%c1_296, %c128_297] : memref<28x256xf32, #tpu.memory_space<vmem>>, vector<1x84xf32>
    %267 = arith.maximumf %265, %266 : vector<1x84xf32>
    %268 = arith.maximumf %264, %267 : vector<1x84xf32>
    %c0_298 = arith.constant 0 : index
    %c0_299 = arith.constant 0 : index
    %269 = vector.load %arg13[%c0_298, %c0_299] : memref<14x84xf32, #tpu.memory_space<vmem>>, vector<1x84xf32>
    tpu.vector_store %arg13[%c0_298, %c0_299], %268 {strides = array<i32>} : memref<14x84xf32, #tpu.memory_space<vmem>>, vector<1x84xf32>,
    %c2_300 = arith.constant 2 : index
    %c0_301 = arith.constant 0 : index
    %270 = vector.load %arg12[%c2_300, %c0_301] : memref<28x256xf32, #tpu.memory_space<vmem>>, vector<1x84xf32>
    %c2_302 = arith.constant 2 : index
    %c128_303 = arith.constant 128 : index
    %271 = vector.load %arg12[%c2_302, %c128_303] : memref<28x256xf32, #tpu.memory_space<vmem>>, vector<1x84xf32>
    %272 = arith.maximumf %270, %271 : vector<1x84xf32>
    %c3_304 = arith.constant 3 : index
    %c0_305 = arith.constant 0 : index
    %273 = vector.load %arg12[%c3_304, %c0_305] : memref<28x256xf32, #tpu.memory_space<vmem>>, vector<1x84xf32>
    %c3_306 = arith.constant 3 : index
    %c128_307 = arith.constant 128 : index
    %274 = vector.load %arg12[%c3_306, %c128_307] : memref<28x256xf32, #tpu.memory_space<vmem>>, vector<1x84xf32>
    %275 = arith.maximumf %273, %274 : vector<1x84xf32>
    %276 = arith.maximumf %272, %275 : vector<1x84xf32>
    %c1_308 = arith.constant 1 : index
    %c0_309 = arith.constant 0 : index
    %277 = vector.load %arg13[%c1_308, %c0_309] : memref<14x84xf32, #tpu.memory_space<vmem>>, vector<1x84xf32>
    tpu.vector_store %arg13[%c1_308, %c0_309], %276 {strides = array<i32>} : memref<14x84xf32, #tpu.memory_space<vmem>>, vector<1x84xf32>,
    %c4_310 = arith.constant 4 : index
    %c0_311 = arith.constant 0 : index
    %278 = vector.load %arg12[%c4_310, %c0_311] : memref<28x256xf32, #tpu.memory_space<vmem>>, vector<1x84xf32>
    %c4_312 = arith.constant 4 : index
    %c128_313 = arith.constant 128 : index
    %279 = vector.load %arg12[%c4_312, %c128_313] : memref<28x256xf32, #tpu.memory_space<vmem>>, vector<1x84xf32>
    %280 = arith.maximumf %278, %279 : vector<1x84xf32>
    %c5_314 = arith.constant 5 : index
    %c0_315 = arith.constant 0 : index
    %281 = vector.load %arg12[%c5_314, %c0_315] : memref<28x256xf32, #tpu.memory_space<vmem>>, vector<1x84xf32>
    %c5_316 = arith.constant 5 : index
    %c128_317 = arith.constant 128 : index
    %282 = vector.load %arg12[%c5_316, %c128_317] : memref<28x256xf32, #tpu.memory_space<vmem>>, vector<1x84xf32>
    %283 = arith.maximumf %281, %282 : vector<1x84xf32>
    %284 = arith.maximumf %280, %283 : vector<1x84xf32>
    %c2_318 = arith.constant 2 : index
    %c0_319 = arith.constant 0 : index
    %285 = vector.load %arg13[%c2_318, %c0_319] : memref<14x84xf32, #tpu.memory_space<vmem>>, vector<1x84xf32>
    tpu.vector_store %arg13[%c2_318, %c0_319], %284 {strides = array<i32>} : memref<14x84xf32, #tpu.memory_space<vmem>>, vector<1x84xf32>,
    %c6_320 = arith.constant 6 : index
    %c0_321 = arith.constant 0 : index
    %286 = vector.load %arg12[%c6_320, %c0_321] : memref<28x256xf32, #tpu.memory_space<vmem>>, vector<1x84xf32>
    %c6_322 = arith.constant 6 : index
    %c128_323 = arith.constant 128 : index
    %287 = vector.load %arg12[%c6_322, %c128_323] : memref<28x256xf32, #tpu.memory_space<vmem>>, vector<1x84xf32>
    %288 = arith.maximumf %286, %287 : vector<1x84xf32>
    %c7_324 = arith.constant 7 : index
    %c0_325 = arith.constant 0 : index
    %289 = vector.load %arg12[%c7_324, %c0_325] : memref<28x256xf32, #tpu.memory_space<vmem>>, vector<1x84xf32>
    %c7_326 = arith.constant 7 : index
    %c128_327 = arith.constant 128 : index
    %290 = vector.load %arg12[%c7_326, %c128_327] : memref<28x256xf32, #tpu.memory_space<vmem>>, vector<1x84xf32>
    %291 = arith.maximumf %289, %290 : vector<1x84xf32>
    %292 = arith.maximumf %288, %291 : vector<1x84xf32>
    %c3_328 = arith.constant 3 : index
    %c0_329 = arith.constant 0 : index
    %293 = vector.load %arg13[%c3_328, %c0_329] : memref<14x84xf32, #tpu.memory_space<vmem>>, vector<1x84xf32>
    tpu.vector_store %arg13[%c3_328, %c0_329], %292 {strides = array<i32>} : memref<14x84xf32, #tpu.memory_space<vmem>>, vector<1x84xf32>,
    %c8_330 = arith.constant 8 : index
    %c0_331 = arith.constant 0 : index
    %294 = vector.load %arg12[%c8_330, %c0_331] : memref<28x256xf32, #tpu.memory_space<vmem>>, vector<1x84xf32>
    %c8_332 = arith.constant 8 : index
    %c128_333 = arith.constant 128 : index
    %295 = vector.load %arg12[%c8_332, %c128_333] : memref<28x256xf32, #tpu.memory_space<vmem>>, vector<1x84xf32>
    %296 = arith.maximumf %294, %295 : vector<1x84xf32>
    %c9_334 = arith.constant 9 : index
    %c0_335 = arith.constant 0 : index
    %297 = vector.load %arg12[%c9_334, %c0_335] : memref<28x256xf32, #tpu.memory_space<vmem>>, vector<1x84xf32>
    %c9_336 = arith.constant 9 : index
    %c128_337 = arith.constant 128 : index
    %298 = vector.load %arg12[%c9_336, %c128_337] : memref<28x256xf32, #tpu.memory_space<vmem>>, vector<1x84xf32>
    %299 = arith.maximumf %297, %298 : vector<1x84xf32>
    %300 = arith.maximumf %296, %299 : vector<1x84xf32>
    %c4_338 = arith.constant 4 : index
    %c0_339 = arith.constant 0 : index
    %301 = vector.load %arg13[%c4_338, %c0_339] : memref<14x84xf32, #tpu.memory_space<vmem>>, vector<1x84xf32>
    tpu.vector_store %arg13[%c4_338, %c0_339], %300 {strides = array<i32>} : memref<14x84xf32, #tpu.memory_space<vmem>>, vector<1x84xf32>,
    %c10_340 = arith.constant 10 : index
    %c0_341 = arith.constant 0 : index
    %302 = vector.load %arg12[%c10_340, %c0_341] : memref<28x256xf32, #tpu.memory_space<vmem>>, vector<1x84xf32>
    %c10_342 = arith.constant 10 : index
    %c128_343 = arith.constant 128 : index
    %303 = vector.load %arg12[%c10_342, %c128_343] : memref<28x256xf32, #tpu.memory_space<vmem>>, vector<1x84xf32>
    %304 = arith.maximumf %302, %303 : vector<1x84xf32>
    %c11_344 = arith.constant 11 : index
    %c0_345 = arith.constant 0 : index
    %305 = vector.load %arg12[%c11_344, %c0_345] : memref<28x256xf32, #tpu.memory_space<vmem>>, vector<1x84xf32>
    %c11_346 = arith.constant 11 : index
    %c128_347 = arith.constant 128 : index
    %306 = vector.load %arg12[%c11_346, %c128_347] : memref<28x256xf32, #tpu.memory_space<vmem>>, vector<1x84xf32>
    %307 = arith.maximumf %305, %306 : vector<1x84xf32>
    %308 = arith.maximumf %304, %307 : vector<1x84xf32>
    %c5_348 = arith.constant 5 : index
    %c0_349 = arith.constant 0 : index
    %309 = vector.load %arg13[%c5_348, %c0_349] : memref<14x84xf32, #tpu.memory_space<vmem>>, vector<1x84xf32>
    tpu.vector_store %arg13[%c5_348, %c0_349], %308 {strides = array<i32>} : memref<14x84xf32, #tpu.memory_space<vmem>>, vector<1x84xf32>,
    %c12_350 = arith.constant 12 : index
    %c0_351 = arith.constant 0 : index
    %310 = vector.load %arg12[%c12_350, %c0_351] : memref<28x256xf32, #tpu.memory_space<vmem>>, vector<1x84xf32>
    %c12_352 = arith.constant 12 : index
    %c128_353 = arith.constant 128 : index
    %311 = vector.load %arg12[%c12_352, %c128_353] : memref<28x256xf32, #tpu.memory_space<vmem>>, vector<1x84xf32>
    %312 = arith.maximumf %310, %311 : vector<1x84xf32>
    %c13_354 = arith.constant 13 : index
    %c0_355 = arith.constant 0 : index
    %313 = vector.load %arg12[%c13_354, %c0_355] : memref<28x256xf32, #tpu.memory_space<vmem>>, vector<1x84xf32>
    %c13_356 = arith.constant 13 : index
    %c128_357 = arith.constant 128 : index
    %314 = vector.load %arg12[%c13_356, %c128_357] : memref<28x256xf32, #tpu.memory_space<vmem>>, vector<1x84xf32>
    %315 = arith.maximumf %313, %314 : vector<1x84xf32>
    %316 = arith.maximumf %312, %315 : vector<1x84xf32>
    %c6_358 = arith.constant 6 : index
    %c0_359 = arith.constant 0 : index
    %317 = vector.load %arg13[%c6_358, %c0_359] : memref<14x84xf32, #tpu.memory_space<vmem>>, vector<1x84xf32>
    tpu.vector_store %arg13[%c6_358, %c0_359], %316 {strides = array<i32>} : memref<14x84xf32, #tpu.memory_space<vmem>>, vector<1x84xf32>,
    %c14_360 = arith.constant 14 : index
    %c0_361 = arith.constant 0 : index
    %318 = vector.load %arg12[%c14_360, %c0_361] : memref<28x256xf32, #tpu.memory_space<vmem>>, vector<1x84xf32>
    %c14_362 = arith.constant 14 : index
    %c128_363 = arith.constant 128 : index
    %319 = vector.load %arg12[%c14_362, %c128_363] : memref<28x256xf32, #tpu.memory_space<vmem>>, vector<1x84xf32>
    %320 = arith.maximumf %318, %319 : vector<1x84xf32>
    %c15_364 = arith.constant 15 : index
    %c0_365 = arith.constant 0 : index
    %321 = vector.load %arg12[%c15_364, %c0_365] : memref<28x256xf32, #tpu.memory_space<vmem>>, vector<1x84xf32>
    %c15_366 = arith.constant 15 : index
    %c128_367 = arith.constant 128 : index
    %322 = vector.load %arg12[%c15_366, %c128_367] : memref<28x256xf32, #tpu.memory_space<vmem>>, vector<1x84xf32>
    %323 = arith.maximumf %321, %322 : vector<1x84xf32>
    %324 = arith.maximumf %320, %323 : vector<1x84xf32>
    %c7_368 = arith.constant 7 : index
    %c0_369 = arith.constant 0 : index
    %325 = vector.load %arg13[%c7_368, %c0_369] : memref<14x84xf32, #tpu.memory_space<vmem>>, vector<1x84xf32>
    tpu.vector_store %arg13[%c7_368, %c0_369], %324 {strides = array<i32>} : memref<14x84xf32, #tpu.memory_space<vmem>>, vector<1x84xf32>,
    %c16_370 = arith.constant 16 : index
    %c0_371 = arith.constant 0 : index
    %326 = vector.load %arg12[%c16_370, %c0_371] : memref<28x256xf32, #tpu.memory_space<vmem>>, vector<1x84xf32>
    %c16_372 = arith.constant 16 : index
    %c128_373 = arith.constant 128 : index
    %327 = vector.load %arg12[%c16_372, %c128_373] : memref<28x256xf32, #tpu.memory_space<vmem>>, vector<1x84xf32>
    %328 = arith.maximumf %326, %327 : vector<1x84xf32>
    %c17_374 = arith.constant 17 : index
    %c0_375 = arith.constant 0 : index
    %329 = vector.load %arg12[%c17_374, %c0_375] : memref<28x256xf32, #tpu.memory_space<vmem>>, vector<1x84xf32>
    %c17_376 = arith.constant 17 : index
    %c128_377 = arith.constant 128 : index
    %330 = vector.load %arg12[%c17_376, %c128_377] : memref<28x256xf32, #tpu.memory_space<vmem>>, vector<1x84xf32>
    %331 = arith.maximumf %329, %330 : vector<1x84xf32>
    %332 = arith.maximumf %328, %331 : vector<1x84xf32>
    %c8_378 = arith.constant 8 : index
    %c0_379 = arith.constant 0 : index
    %333 = vector.load %arg13[%c8_378, %c0_379] : memref<14x84xf32, #tpu.memory_space<vmem>>, vector<1x84xf32>
    tpu.vector_store %arg13[%c8_378, %c0_379], %332 {strides = array<i32>} : memref<14x84xf32, #tpu.memory_space<vmem>>, vector<1x84xf32>,
    %c18_380 = arith.constant 18 : index
    %c0_381 = arith.constant 0 : index
    %334 = vector.load %arg12[%c18_380, %c0_381] : memref<28x256xf32, #tpu.memory_space<vmem>>, vector<1x84xf32>
    %c18_382 = arith.constant 18 : index
    %c128_383 = arith.constant 128 : index
    %335 = vector.load %arg12[%c18_382, %c128_383] : memref<28x256xf32, #tpu.memory_space<vmem>>, vector<1x84xf32>
    %336 = arith.maximumf %334, %335 : vector<1x84xf32>
    %c19_384 = arith.constant 19 : index
    %c0_385 = arith.constant 0 : index
    %337 = vector.load %arg12[%c19_384, %c0_385] : memref<28x256xf32, #tpu.memory_space<vmem>>, vector<1x84xf32>
    %c19_386 = arith.constant 19 : index
    %c128_387 = arith.constant 128 : index
    %338 = vector.load %arg12[%c19_386, %c128_387] : memref<28x256xf32, #tpu.memory_space<vmem>>, vector<1x84xf32>
    %339 = arith.maximumf %337, %338 : vector<1x84xf32>
    %340 = arith.maximumf %336, %339 : vector<1x84xf32>
    %c9_388 = arith.constant 9 : index
    %c0_389 = arith.constant 0 : index
    %341 = vector.load %arg13[%c9_388, %c0_389] : memref<14x84xf32, #tpu.memory_space<vmem>>, vector<1x84xf32>
    tpu.vector_store %arg13[%c9_388, %c0_389], %340 {strides = array<i32>} : memref<14x84xf32, #tpu.memory_space<vmem>>, vector<1x84xf32>,
    %c20_390 = arith.constant 20 : index
    %c0_391 = arith.constant 0 : index
    %342 = vector.load %arg12[%c20_390, %c0_391] : memref<28x256xf32, #tpu.memory_space<vmem>>, vector<1x84xf32>
    %c20_392 = arith.constant 20 : index
    %c128_393 = arith.constant 128 : index
    %343 = vector.load %arg12[%c20_392, %c128_393] : memref<28x256xf32, #tpu.memory_space<vmem>>, vector<1x84xf32>
    %344 = arith.maximumf %342, %343 : vector<1x84xf32>
    %c21_394 = arith.constant 21 : index
    %c0_395 = arith.constant 0 : index
    %345 = vector.load %arg12[%c21_394, %c0_395] : memref<28x256xf32, #tpu.memory_space<vmem>>, vector<1x84xf32>
    %c21_396 = arith.constant 21 : index
    %c128_397 = arith.constant 128 : index
    %346 = vector.load %arg12[%c21_396, %c128_397] : memref<28x256xf32, #tpu.memory_space<vmem>>, vector<1x84xf32>
    %347 = arith.maximumf %345, %346 : vector<1x84xf32>
    %348 = arith.maximumf %344, %347 : vector<1x84xf32>
    %c10_398 = arith.constant 10 : index
    %c0_399 = arith.constant 0 : index
    %349 = vector.load %arg13[%c10_398, %c0_399] : memref<14x84xf32, #tpu.memory_space<vmem>>, vector<1x84xf32>
    tpu.vector_store %arg13[%c10_398, %c0_399], %348 {strides = array<i32>} : memref<14x84xf32, #tpu.memory_space<vmem>>, vector<1x84xf32>,
    %c22_400 = arith.constant 22 : index
    %c0_401 = arith.constant 0 : index
    %350 = vector.load %arg12[%c22_400, %c0_401] : memref<28x256xf32, #tpu.memory_space<vmem>>, vector<1x84xf32>
    %c22_402 = arith.constant 22 : index
    %c128_403 = arith.constant 128 : index
    %351 = vector.load %arg12[%c22_402, %c128_403] : memref<28x256xf32, #tpu.memory_space<vmem>>, vector<1x84xf32>
    %352 = arith.maximumf %350, %351 : vector<1x84xf32>
    %c23_404 = arith.constant 23 : index
    %c0_405 = arith.constant 0 : index
    %353 = vector.load %arg12[%c23_404, %c0_405] : memref<28x256xf32, #tpu.memory_space<vmem>>, vector<1x84xf32>
    %c23_406 = arith.constant 23 : index
    %c128_407 = arith.constant 128 : index
    %354 = vector.load %arg12[%c23_406, %c128_407] : memref<28x256xf32, #tpu.memory_space<vmem>>, vector<1x84xf32>
    %355 = arith.maximumf %353, %354 : vector<1x84xf32>
    %356 = arith.maximumf %352, %355 : vector<1x84xf32>
    %c11_408 = arith.constant 11 : index
    %c0_409 = arith.constant 0 : index
    %357 = vector.load %arg13[%c11_408, %c0_409] : memref<14x84xf32, #tpu.memory_space<vmem>>, vector<1x84xf32>
    tpu.vector_store %arg13[%c11_408, %c0_409], %356 {strides = array<i32>} : memref<14x84xf32, #tpu.memory_space<vmem>>, vector<1x84xf32>,
    %c24_410 = arith.constant 24 : index
    %c0_411 = arith.constant 0 : index
    %358 = vector.load %arg12[%c24_410, %c0_411] : memref<28x256xf32, #tpu.memory_space<vmem>>, vector<1x84xf32>
    %c24_412 = arith.constant 24 : index
    %c128_413 = arith.constant 128 : index
    %359 = vector.load %arg12[%c24_412, %c128_413] : memref<28x256xf32, #tpu.memory_space<vmem>>, vector<1x84xf32>
    %360 = arith.maximumf %358, %359 : vector<1x84xf32>
    %c25_414 = arith.constant 25 : index
    %c0_415 = arith.constant 0 : index
    %361 = vector.load %arg12[%c25_414, %c0_415] : memref<28x256xf32, #tpu.memory_space<vmem>>, vector<1x84xf32>
    %c25_416 = arith.constant 25 : index
    %c128_417 = arith.constant 128 : index
    %362 = vector.load %arg12[%c25_416, %c128_417] : memref<28x256xf32, #tpu.memory_space<vmem>>, vector<1x84xf32>
    %363 = arith.maximumf %361, %362 : vector<1x84xf32>
    %364 = arith.maximumf %360, %363 : vector<1x84xf32>
    %c12_418 = arith.constant 12 : index
    %c0_419 = arith.constant 0 : index
    %365 = vector.load %arg13[%c12_418, %c0_419] : memref<14x84xf32, #tpu.memory_space<vmem>>, vector<1x84xf32>
    tpu.vector_store %arg13[%c12_418, %c0_419], %364 {strides = array<i32>} : memref<14x84xf32, #tpu.memory_space<vmem>>, vector<1x84xf32>,
    %c26_420 = arith.constant 26 : index
    %c0_421 = arith.constant 0 : index
    %366 = vector.load %arg12[%c26_420, %c0_421] : memref<28x256xf32, #tpu.memory_space<vmem>>, vector<1x84xf32>
    %c26_422 = arith.constant 26 : index
    %c128_423 = arith.constant 128 : index
    %367 = vector.load %arg12[%c26_422, %c128_423] : memref<28x256xf32, #tpu.memory_space<vmem>>, vector<1x84xf32>
    %368 = arith.maximumf %366, %367 : vector<1x84xf32>
    %c27_424 = arith.constant 27 : index
    %c0_425 = arith.constant 0 : index
    %369 = vector.load %arg12[%c27_424, %c0_425] : memref<28x256xf32, #tpu.memory_space<vmem>>, vector<1x84xf32>
    %c27_426 = arith.constant 27 : index
    %c128_427 = arith.constant 128 : index
    %370 = vector.load %arg12[%c27_426, %c128_427] : memref<28x256xf32, #tpu.memory_space<vmem>>, vector<1x84xf32>
    %371 = arith.maximumf %369, %370 : vector<1x84xf32>
    %372 = arith.maximumf %368, %371 : vector<1x84xf32>
    %c13_428 = arith.constant 13 : index
    %c0_429 = arith.constant 0 : index
    %373 = vector.load %arg13[%c13_428, %c0_429] : memref<14x84xf32, #tpu.memory_space<vmem>>, vector<1x84xf32>
    tpu.vector_store %arg13[%c13_428, %c0_429], %372 {strides = array<i32>} : memref<14x84xf32, #tpu.memory_space<vmem>>, vector<1x84xf32>,
    %cst_430 = arith.constant 0.000000e+00 : f32
    %374 = vector.broadcast %cst_430 : f32 to vector<10x256xf32>
    %c0_431 = arith.constant 0 : index
    %c0_432 = arith.constant 0 : index
    %375 = vector.load %arg13[%c0_431, %c0_432] : memref<14x84xf32, #tpu.memory_space<vmem>>, vector<10x84xf32>
    %c0_433 = arith.constant 0 : index
    %c0_434 = arith.constant 0 : index
    %c0_435 = arith.constant 0 : index
    %376 = vector.load %arg3[%c0_433, %c0_434, %c0_435] : memref<5x84x256xf32, #tpu.memory_space<vmem>>, vector<1x84x256xf32>
    %377 = vector.shape_cast %376 : vector<1x84x256xf32> to vector<84x256xf32>
    %cst_436 = arith.constant dense<0.000000e+00> : vector<10x256xf32>
    %378 = tpu.matmul %375, %377, %cst_436 {dimension_numbers = #tpu.dot_dimension_numbers<[1], [0], [0], [1], [0, 0, 1, 1], [], []>} : vector<10x84xf32>, vector<84x256xf32>, vector<10x256xf32> -> vector<10x256xf32>
    %379 = arith.addf %374, %378 : vector<10x256xf32>
    %c1_437 = arith.constant 1 : index
    %c0_438 = arith.constant 0 : index
    %380 = vector.load %arg13[%c1_437, %c0_438] : memref<14x84xf32, #tpu.memory_space<vmem>>, vector<10x84xf32>
    %c1_439 = arith.constant 1 : index
    %c0_440 = arith.constant 0 : index
    %c0_441 = arith.constant 0 : index
    %381 = vector.load %arg3[%c1_439, %c0_440, %c0_441] : memref<5x84x256xf32, #tpu.memory_space<vmem>>, vector<1x84x256xf32>
    %382 = vector.shape_cast %381 : vector<1x84x256xf32> to vector<84x256xf32>
    %cst_442 = arith.constant dense<0.000000e+00> : vector<10x256xf32>
    %383 = tpu.matmul %380, %382, %cst_442 {dimension_numbers = #tpu.dot_dimension_numbers<[1], [0], [0], [1], [0, 0, 1, 1], [], []>} : vector<10x84xf32>, vector<84x256xf32>, vector<10x256xf32> -> vector<10x256xf32>
    %384 = arith.addf %379, %383 : vector<10x256xf32>
    %c2_443 = arith.constant 2 : index
    %c0_444 = arith.constant 0 : index
    %385 = vector.load %arg13[%c2_443, %c0_444] : memref<14x84xf32, #tpu.memory_space<vmem>>, vector<10x84xf32>
    %c2_445 = arith.constant 2 : index
    %c0_446 = arith.constant 0 : index
    %c0_447 = arith.constant 0 : index
    %386 = vector.load %arg3[%c2_445, %c0_446, %c0_447] : memref<5x84x256xf32, #tpu.memory_space<vmem>>, vector<1x84x256xf32>
    %387 = vector.shape_cast %386 : vector<1x84x256xf32> to vector<84x256xf32>
    %cst_448 = arith.constant dense<0.000000e+00> : vector<10x256xf32>
    %388 = tpu.matmul %385, %387, %cst_448 {dimension_numbers = #tpu.dot_dimension_numbers<[1], [0], [0], [1], [0, 0, 1, 1], [], []>} : vector<10x84xf32>, vector<84x256xf32>, vector<10x256xf32> -> vector<10x256xf32>
    %389 = arith.addf %384, %388 : vector<10x256xf32>
    %c3_449 = arith.constant 3 : index
    %c0_450 = arith.constant 0 : index
    %390 = vector.load %arg13[%c3_449, %c0_450] : memref<14x84xf32, #tpu.memory_space<vmem>>, vector<10x84xf32>
    %c3_451 = arith.constant 3 : index
    %c0_452 = arith.constant 0 : index
    %c0_453 = arith.constant 0 : index
    %391 = vector.load %arg3[%c3_451, %c0_452, %c0_453] : memref<5x84x256xf32, #tpu.memory_space<vmem>>, vector<1x84x256xf32>
    %392 = vector.shape_cast %391 : vector<1x84x256xf32> to vector<84x256xf32>
    %cst_454 = arith.constant dense<0.000000e+00> : vector<10x256xf32>
    %393 = tpu.matmul %390, %392, %cst_454 {dimension_numbers = #tpu.dot_dimension_numbers<[1], [0], [0], [1], [0, 0, 1, 1], [], []>} : vector<10x84xf32>, vector<84x256xf32>, vector<10x256xf32> -> vector<10x256xf32>
    %394 = arith.addf %389, %393 : vector<10x256xf32>
    %c4_455 = arith.constant 4 : index
    %c0_456 = arith.constant 0 : index
    %395 = vector.load %arg13[%c4_455, %c0_456] : memref<14x84xf32, #tpu.memory_space<vmem>>, vector<10x84xf32>
    %c4_457 = arith.constant 4 : index
    %c0_458 = arith.constant 0 : index
    %c0_459 = arith.constant 0 : index
    %396 = vector.load %arg3[%c4_457, %c0_458, %c0_459] : memref<5x84x256xf32, #tpu.memory_space<vmem>>, vector<1x84x256xf32>
    %397 = vector.shape_cast %396 : vector<1x84x256xf32> to vector<84x256xf32>
    %cst_460 = arith.constant dense<0.000000e+00> : vector<10x256xf32>
    %398 = tpu.matmul %395, %397, %cst_460 {dimension_numbers = #tpu.dot_dimension_numbers<[1], [0], [0], [1], [0, 0, 1, 1], [], []>} : vector<10x84xf32>, vector<84x256xf32>, vector<10x256xf32> -> vector<10x256xf32>
    %399 = arith.addf %394, %398 : vector<10x256xf32>
    %c0_461 = arith.constant 0 : index
    %c0_462 = arith.constant 0 : index
    %400 = vector.load %arg4[%c0_461, %c0_462] : memref<1x256xf32, #tpu.memory_space<vmem>>, vector<1x256xf32>
    %401 = vector.broadcast %400 : vector<1x256xf32> to vector<10x256xf32>
    %402 = arith.addf %399, %401 : vector<10x256xf32>
    %c0_463 = arith.constant 0 : index
    %c0_464 = arith.constant 0 : index
    %403 = vector.load %arg14[%c0_463, %c0_464] : memref<10x256xf32, #tpu.memory_space<vmem>>, vector<10x256xf32>
    tpu.vector_store %arg14[%c0_463, %c0_464], %402 {strides = array<i32>} : memref<10x256xf32, #tpu.memory_space<vmem>>, vector<10x256xf32>,
    %c0_465 = arith.constant 0 : index
    %c0_466 = arith.constant 0 : index
    %404 = vector.load %arg14[%c0_465, %c0_466] : memref<10x256xf32, #tpu.memory_space<vmem>>, vector<1x80xf32>
    %c0_467 = arith.constant 0 : index
    %c128_468 = arith.constant 128 : index
    %405 = vector.load %arg14[%c0_467, %c128_468] : memref<10x256xf32, #tpu.memory_space<vmem>>, vector<1x80xf32>
    %406 = arith.maximumf %404, %405 : vector<1x80xf32>
    %c1_469 = arith.constant 1 : index
    %c0_470 = arith.constant 0 : index
    %407 = vector.load %arg14[%c1_469, %c0_470] : memref<10x256xf32, #tpu.memory_space<vmem>>, vector<1x80xf32>
    %c1_471 = arith.constant 1 : index
    %c128_472 = arith.constant 128 : index
    %408 = vector.load %arg14[%c1_471, %c128_472] : memref<10x256xf32, #tpu.memory_space<vmem>>, vector<1x80xf32>
    %409 = arith.maximumf %407, %408 : vector<1x80xf32>
    %410 = arith.maximumf %406, %409 : vector<1x80xf32>
    %c0_473 = arith.constant 0 : index
    %c1_474 = arith.constant 1 : index
    %c0_475 = arith.constant 0 : index
    %411 = vector.load %arg15[%c0_473, %c1_474, %c0_475] : memref<5x2x80xf32, #tpu.memory_space<vmem>>, vector<1x1x80xf32>
    %412 = vector.shape_cast %411 : vector<1x1x80xf32> to vector<1x80xf32>
    %413 = vector.shape_cast %410 : vector<1x80xf32> to vector<1x1x80xf32>
    tpu.vector_store %arg15[%c0_473, %c1_474, %c0_475], %413 {strides = array<i32>} : memref<5x2x80xf32, #tpu.memory_space<vmem>>, vector<1x1x80xf32>,
    %c2_476 = arith.constant 2 : index
    %c0_477 = arith.constant 0 : index
    %414 = vector.load %arg14[%c2_476, %c0_477] : memref<10x256xf32, #tpu.memory_space<vmem>>, vector<1x80xf32>
    %c2_478 = arith.constant 2 : index
    %c128_479 = arith.constant 128 : index
    %415 = vector.load %arg14[%c2_478, %c128_479] : memref<10x256xf32, #tpu.memory_space<vmem>>, vector<1x80xf32>
    %416 = arith.maximumf %414, %415 : vector<1x80xf32>
    %c3_480 = arith.constant 3 : index
    %c0_481 = arith.constant 0 : index
    %417 = vector.load %arg14[%c3_480, %c0_481] : memref<10x256xf32, #tpu.memory_space<vmem>>, vector<1x80xf32>
    %c3_482 = arith.constant 3 : index
    %c128_483 = arith.constant 128 : index
    %418 = vector.load %arg14[%c3_482, %c128_483] : memref<10x256xf32, #tpu.memory_space<vmem>>, vector<1x80xf32>
    %419 = arith.maximumf %417, %418 : vector<1x80xf32>
    %420 = arith.maximumf %416, %419 : vector<1x80xf32>
    %c1_484 = arith.constant 1 : index
    %c1_485 = arith.constant 1 : index
    %c0_486 = arith.constant 0 : index
    %421 = vector.load %arg15[%c1_484, %c1_485, %c0_486] : memref<5x2x80xf32, #tpu.memory_space<vmem>>, vector<1x1x80xf32>
    %422 = vector.shape_cast %421 : vector<1x1x80xf32> to vector<1x80xf32>
    %423 = vector.shape_cast %420 : vector<1x80xf32> to vector<1x1x80xf32>
    tpu.vector_store %arg15[%c1_484, %c1_485, %c0_486], %423 {strides = array<i32>} : memref<5x2x80xf32, #tpu.memory_space<vmem>>, vector<1x1x80xf32>,
    %c4_487 = arith.constant 4 : index
    %c0_488 = arith.constant 0 : index
    %424 = vector.load %arg14[%c4_487, %c0_488] : memref<10x256xf32, #tpu.memory_space<vmem>>, vector<1x80xf32>
    %c4_489 = arith.constant 4 : index
    %c128_490 = arith.constant 128 : index
    %425 = vector.load %arg14[%c4_489, %c128_490] : memref<10x256xf32, #tpu.memory_space<vmem>>, vector<1x80xf32>
    %426 = arith.maximumf %424, %425 : vector<1x80xf32>
    %c5_491 = arith.constant 5 : index
    %c0_492 = arith.constant 0 : index
    %427 = vector.load %arg14[%c5_491, %c0_492] : memref<10x256xf32, #tpu.memory_space<vmem>>, vector<1x80xf32>
    %c5_493 = arith.constant 5 : index
    %c128_494 = arith.constant 128 : index
    %428 = vector.load %arg14[%c5_493, %c128_494] : memref<10x256xf32, #tpu.memory_space<vmem>>, vector<1x80xf32>
    %429 = arith.maximumf %427, %428 : vector<1x80xf32>
    %430 = arith.maximumf %426, %429 : vector<1x80xf32>
    %c2_495 = arith.constant 2 : index
    %c1_496 = arith.constant 1 : index
    %c0_497 = arith.constant 0 : index
    %431 = vector.load %arg15[%c2_495, %c1_496, %c0_497] : memref<5x2x80xf32, #tpu.memory_space<vmem>>, vector<1x1x80xf32>
    %432 = vector.shape_cast %431 : vector<1x1x80xf32> to vector<1x80xf32>
    %433 = vector.shape_cast %430 : vector<1x80xf32> to vector<1x1x80xf32>
    tpu.vector_store %arg15[%c2_495, %c1_496, %c0_497], %433 {strides = array<i32>} : memref<5x2x80xf32, #tpu.memory_space<vmem>>, vector<1x1x80xf32>,
    %c6_498 = arith.constant 6 : index
    %c0_499 = arith.constant 0 : index
    %434 = vector.load %arg14[%c6_498, %c0_499] : memref<10x256xf32, #tpu.memory_space<vmem>>, vector<1x80xf32>
    %c6_500 = arith.constant 6 : index
    %c128_501 = arith.constant 128 : index
    %435 = vector.load %arg14[%c6_500, %c128_501] : memref<10x256xf32, #tpu.memory_space<vmem>>, vector<1x80xf32>
    %436 = arith.maximumf %434, %435 : vector<1x80xf32>
    %c7_502 = arith.constant 7 : index
    %c0_503 = arith.constant 0 : index
    %437 = vector.load %arg14[%c7_502, %c0_503] : memref<10x256xf32, #tpu.memory_space<vmem>>, vector<1x80xf32>
    %c7_504 = arith.constant 7 : index
    %c128_505 = arith.constant 128 : index
    %438 = vector.load %arg14[%c7_504, %c128_505] : memref<10x256xf32, #tpu.memory_space<vmem>>, vector<1x80xf32>
    %439 = arith.maximumf %437, %438 : vector<1x80xf32>
    %440 = arith.maximumf %436, %439 : vector<1x80xf32>
    %c3_506 = arith.constant 3 : index
    %c1_507 = arith.constant 1 : index
    %c0_508 = arith.constant 0 : index
    %441 = vector.load %arg15[%c3_506, %c1_507, %c0_508] : memref<5x2x80xf32, #tpu.memory_space<vmem>>, vector<1x1x80xf32>
    %442 = vector.shape_cast %441 : vector<1x1x80xf32> to vector<1x80xf32>
    %443 = vector.shape_cast %440 : vector<1x80xf32> to vector<1x1x80xf32>
    tpu.vector_store %arg15[%c3_506, %c1_507, %c0_508], %443 {strides = array<i32>} : memref<5x2x80xf32, #tpu.memory_space<vmem>>, vector<1x1x80xf32>,
    %c8_509 = arith.constant 8 : index
    %c0_510 = arith.constant 0 : index
    %444 = vector.load %arg14[%c8_509, %c0_510] : memref<10x256xf32, #tpu.memory_space<vmem>>, vector<1x80xf32>
    %c8_511 = arith.constant 8 : index
    %c128_512 = arith.constant 128 : index
    %445 = vector.load %arg14[%c8_511, %c128_512] : memref<10x256xf32, #tpu.memory_space<vmem>>, vector<1x80xf32>
    %446 = arith.maximumf %444, %445 : vector<1x80xf32>
    %c9_513 = arith.constant 9 : index
    %c0_514 = arith.constant 0 : index
    %447 = vector.load %arg14[%c9_513, %c0_514] : memref<10x256xf32, #tpu.memory_space<vmem>>, vector<1x80xf32>
    %c9_515 = arith.constant 9 : index
    %c128_516 = arith.constant 128 : index
    %448 = vector.load %arg14[%c9_515, %c128_516] : memref<10x256xf32, #tpu.memory_space<vmem>>, vector<1x80xf32>
    %449 = arith.maximumf %447, %448 : vector<1x80xf32>
    %450 = arith.maximumf %446, %449 : vector<1x80xf32>
    %c4_517 = arith.constant 4 : index
    %c1_518 = arith.constant 1 : index
    %c0_519 = arith.constant 0 : index
    %451 = vector.load %arg15[%c4_517, %c1_518, %c0_519] : memref<5x2x80xf32, #tpu.memory_space<vmem>>, vector<1x1x80xf32>
    %452 = vector.shape_cast %451 : vector<1x1x80xf32> to vector<1x80xf32>
    %453 = vector.shape_cast %450 : vector<1x80xf32> to vector<1x1x80xf32>
    tpu.vector_store %arg15[%c4_517, %c1_518, %c0_519], %453 {strides = array<i32>} : memref<5x2x80xf32, #tpu.memory_space<vmem>>, vector<1x1x80xf32>,
    %cst_520 = arith.constant 0.000000e+00 : f32
    %454 = vector.broadcast %cst_520 : f32 to vector<2x120xf32>
    %c0_521 = arith.constant 0 : index
    %c0_522 = arith.constant 0 : index
    %c0_523 = arith.constant 0 : index
    %455 = vector.load %arg15[%c0_521, %c0_522, %c0_523] : memref<5x2x80xf32, #tpu.memory_space<vmem>>, vector<1x2x80xf32>
    %456 = vector.shape_cast %455 : vector<1x2x80xf32> to vector<2x80xf32>
    %c0_524 = arith.constant 0 : index
    %c0_525 = arith.constant 0 : index
    %c0_526 = arith.constant 0 : index
    %457 = vector.load %arg5[%c0_524, %c0_525, %c0_526] : memref<5x80x120xf32, #tpu.memory_space<vmem>>, vector<1x80x120xf32>
    %458 = vector.shape_cast %457 : vector<1x80x120xf32> to vector<80x120xf32>
    %cst_527 = arith.constant dense<0.000000e+00> : vector<2x120xf32>
    %459 = tpu.matmul %456, %458, %cst_527 {dimension_numbers = #tpu.dot_dimension_numbers<[1], [0], [0], [1], [0, 0, 1, 1], [], []>} : vector<2x80xf32>, vector<80x120xf32>, vector<2x120xf32> -> vector<2x120xf32>
    %460 = arith.addf %454, %459 : vector<2x120xf32>
    %c1_528 = arith.constant 1 : index
    %c0_529 = arith.constant 0 : index
    %c0_530 = arith.constant 0 : index
    %461 = vector.load %arg15[%c1_528, %c0_529, %c0_530] : memref<5x2x80xf32, #tpu.memory_space<vmem>>, vector<1x2x80xf32>
    %462 = vector.shape_cast %461 : vector<1x2x80xf32> to vector<2x80xf32>
    %c1_531 = arith.constant 1 : index
    %c0_532 = arith.constant 0 : index
    %c0_533 = arith.constant 0 : index
    %463 = vector.load %arg5[%c1_531, %c0_532, %c0_533] : memref<5x80x120xf32, #tpu.memory_space<vmem>>, vector<1x80x120xf32>
    %464 = vector.shape_cast %463 : vector<1x80x120xf32> to vector<80x120xf32>
    %cst_534 = arith.constant dense<0.000000e+00> : vector<2x120xf32>
    %465 = tpu.matmul %462, %464, %cst_534 {dimension_numbers = #tpu.dot_dimension_numbers<[1], [0], [0], [1], [0, 0, 1, 1], [], []>} : vector<2x80xf32>, vector<80x120xf32>, vector<2x120xf32> -> vector<2x120xf32>
    %466 = arith.addf %460, %465 : vector<2x120xf32>
    %c2_535 = arith.constant 2 : index
    %c0_536 = arith.constant 0 : index
    %c0_537 = arith.constant 0 : index
    %467 = vector.load %arg15[%c2_535, %c0_536, %c0_537] : memref<5x2x80xf32, #tpu.memory_space<vmem>>, vector<1x2x80xf32>
    %468 = vector.shape_cast %467 : vector<1x2x80xf32> to vector<2x80xf32>
    %c2_538 = arith.constant 2 : index
    %c0_539 = arith.constant 0 : index
    %c0_540 = arith.constant 0 : index
    %469 = vector.load %arg5[%c2_538, %c0_539, %c0_540] : memref<5x80x120xf32, #tpu.memory_space<vmem>>, vector<1x80x120xf32>
    %470 = vector.shape_cast %469 : vector<1x80x120xf32> to vector<80x120xf32>
    %cst_541 = arith.constant dense<0.000000e+00> : vector<2x120xf32>
    %471 = tpu.matmul %468, %470, %cst_541 {dimension_numbers = #tpu.dot_dimension_numbers<[1], [0], [0], [1], [0, 0, 1, 1], [], []>} : vector<2x80xf32>, vector<80x120xf32>, vector<2x120xf32> -> vector<2x120xf32>
    %472 = arith.addf %466, %471 : vector<2x120xf32>
    %c3_542 = arith.constant 3 : index
    %c0_543 = arith.constant 0 : index
    %c0_544 = arith.constant 0 : index
    %473 = vector.load %arg15[%c3_542, %c0_543, %c0_544] : memref<5x2x80xf32, #tpu.memory_space<vmem>>, vector<1x2x80xf32>
    %474 = vector.shape_cast %473 : vector<1x2x80xf32> to vector<2x80xf32>
    %c3_545 = arith.constant 3 : index
    %c0_546 = arith.constant 0 : index
    %c0_547 = arith.constant 0 : index
    %475 = vector.load %arg5[%c3_545, %c0_546, %c0_547] : memref<5x80x120xf32, #tpu.memory_space<vmem>>, vector<1x80x120xf32>
    %476 = vector.shape_cast %475 : vector<1x80x120xf32> to vector<80x120xf32>
    %cst_548 = arith.constant dense<0.000000e+00> : vector<2x120xf32>
    %477 = tpu.matmul %474, %476, %cst_548 {dimension_numbers = #tpu.dot_dimension_numbers<[1], [0], [0], [1], [0, 0, 1, 1], [], []>} : vector<2x80xf32>, vector<80x120xf32>, vector<2x120xf32> -> vector<2x120xf32>
    %478 = arith.addf %472, %477 : vector<2x120xf32>
    %c4_549 = arith.constant 4 : index
    %c0_550 = arith.constant 0 : index
    %c0_551 = arith.constant 0 : index
    %479 = vector.load %arg15[%c4_549, %c0_550, %c0_551] : memref<5x2x80xf32, #tpu.memory_space<vmem>>, vector<1x2x80xf32>
    %480 = vector.shape_cast %479 : vector<1x2x80xf32> to vector<2x80xf32>
    %c4_552 = arith.constant 4 : index
    %c0_553 = arith.constant 0 : index
    %c0_554 = arith.constant 0 : index
    %481 = vector.load %arg5[%c4_552, %c0_553, %c0_554] : memref<5x80x120xf32, #tpu.memory_space<vmem>>, vector<1x80x120xf32>
    %482 = vector.shape_cast %481 : vector<1x80x120xf32> to vector<80x120xf32>
    %cst_555 = arith.constant dense<0.000000e+00> : vector<2x120xf32>
    %483 = tpu.matmul %480, %482, %cst_555 {dimension_numbers = #tpu.dot_dimension_numbers<[1], [0], [0], [1], [0, 0, 1, 1], [], []>} : vector<2x80xf32>, vector<80x120xf32>, vector<2x120xf32> -> vector<2x120xf32>
    %484 = arith.addf %478, %483 : vector<2x120xf32>
    %c0_556 = arith.constant 0 : index
    %c0_557 = arith.constant 0 : index
    %485 = vector.load %arg6[%c0_556, %c0_557] : memref<1x120xf32, #tpu.memory_space<vmem>>, vector<1x120xf32>
    %486 = vector.broadcast %485 : vector<1x120xf32> to vector<2x120xf32>
    %487 = arith.addf %484, %486 : vector<2x120xf32>
    %c0_558 = arith.constant 0 : index
    %c0_559 = arith.constant 0 : index
    %488 = vector.load %arg7[%c0_558, %c0_559] : memref<120x84xf32, #tpu.memory_space<vmem>>, vector<120x84xf32>
    %cst_560 = arith.constant dense<0.000000e+00> : vector<2x84xf32>
    %489 = tpu.matmul %487, %488, %cst_560 {dimension_numbers = #tpu.dot_dimension_numbers<[1], [0], [0], [1], [0, 0, 1, 1], [], []>} : vector<2x120xf32>, vector<120x84xf32>, vector<2x84xf32> -> vector<2x84xf32>
    %c0_561 = arith.constant 0 : index
    %c0_562 = arith.constant 0 : index
    %490 = vector.load %arg8[%c0_561, %c0_562] : memref<1x84xf32, #tpu.memory_space<vmem>>, vector<1x84xf32>
    %491 = vector.broadcast %490 : vector<1x84xf32> to vector<2x84xf32>
    %492 = arith.addf %489, %491 : vector<2x84xf32>
    %c0_563 = arith.constant 0 : index
    %c0_564 = arith.constant 0 : index
    %493 = vector.load %arg9[%c0_563, %c0_564] : memref<84x10xf32, #tpu.memory_space<vmem>>, vector<84x10xf32>
    %cst_565 = arith.constant dense<0.000000e+00> : vector<2x10xf32>
    %494 = tpu.matmul %492, %493, %cst_565 {dimension_numbers = #tpu.dot_dimension_numbers<[1], [0], [0], [1], [0, 0, 1, 1], [], []>} : vector<2x84xf32>, vector<84x10xf32>, vector<2x10xf32> -> vector<2x10xf32>
    %c0_566 = arith.constant 0 : index
    %c0_567 = arith.constant 0 : index
    %495 = vector.load %arg10[%c0_566, %c0_567] : memref<1x10xf32, #tpu.memory_space<vmem>>, vector<1x10xf32>
    %496 = vector.broadcast %495 : vector<1x10xf32> to vector<2x10xf32>
    %497 = arith.addf %494, %496 : vector<2x10xf32>
    %cst_568 = arith.constant dense<0xFF800000> : vector<10xf32>
    %498 = vector.multi_reduction <maximumf>, %497, %cst_568 [0] : vector<2x10xf32> to vector<10xf32>
    %499 = vector.shape_cast %498 : vector<10xf32> to vector<1x10xf32>
    %500 = vector.broadcast %499 : vector<1x10xf32> to vector<2x10xf32>
    %501 = arith.subf %497, %500 : vector<2x10xf32>
    %502 = math.exp %501 : vector<2x10xf32>
    %cst_569 = arith.constant dense<0.000000e+00> : vector<10xf32>
    %503 = vector.multi_reduction <add>, %502, %cst_569 [0] : vector<2x10xf32> to vector<10xf32>
    %504 = vector.shape_cast %503 : vector<10xf32> to vector<1x10xf32>
    %505 = vector.broadcast %504 : vector<1x10xf32> to vector<2x10xf32>
    %506 = arith.divf %502, %505 : vector<2x10xf32>
    %c0_570 = arith.constant 0 : index
    %c0_571 = arith.constant 0 : index
    %507 = vector.load %arg11[%c0_570, %c0_571] : memref<2x10xf32, #tpu.memory_space<vmem>>, vector<2x10xf32>
    tpu.vector_store %arg11[%c0_570, %c0_571], %506 {strides = array<i32>} : memref<2x10xf32, #tpu.memory_space<vmem>>, vector<2x10xf32>,
    return
  }
}

</mosaic_0001>

<llo_original>
// kernel: model1_forward.1
$region0: #{model1_forward.1}
  #allocation0 [shape = 'u32[]', space=smem, size = 0x4, offset = 0x4, fixed_abs, tag = 'smem constant byte address 0x4 - core index']
  #allocation1 [shape = 'u32[144,128]{1,0:T(1,128)}', space=vmem, size = 0x12000, scoped, tag = 'internal scratch']
  #allocation2 [shape = 'f32[28,256]{1,0:T(8,128)}', space=vmem, size = 0x8000, scoped, tag = 'scratch operand']
  #allocation3 [shape = 'f32[14,84]{1,0:T(8,128)}', space=vmem, size = 0x2000, scoped, tag = 'scratch operand']
  #allocation4 [shape = 'f32[10,256]{1,0:T(8,128)}', space=vmem, size = 0x4000, scoped, tag = 'scratch operand']
  #allocation5 [shape = 'f32[5,2,80]{2,1,0:T(2,128)}', space=vmem, size = 0x1400, scoped, tag = 'scratch operand']
  %s0 = inlined_call_operand.vmem [shape: f32[2,1,32,32], index: 0, kind: input, shape index: {}]
  %s1 = inlined_call_operand.hbm [shape: f32[5,32,256], index: 1, kind: input, shape index: {}]
  %s2 = inlined_call_operand.vmem [shape: f32[1,256], index: 2, kind: input, shape index: {}]
  %s3 = inlined_call_operand.hbm [shape: f32[5,84,256], index: 3, kind: input, shape index: {}]
  %s4 = inlined_call_operand.vmem [shape: f32[1,256], index: 4, kind: input, shape index: {}]
  %s5 = inlined_call_operand.hbm [shape: f32[5,80,120], index: 5, kind: input, shape index: {}]
  %s6 = inlined_call_operand.vmem [shape: f32[1,120], index: 6, kind: input, shape index: {}]
  %s7 = inlined_call_operand.vmem [shape: f32[120,84], index: 7, kind: input, shape index: {}]
  %s8 = inlined_call_operand.vmem [shape: f32[1,84], index: 8, kind: input, shape index: {}]
  %s9 = inlined_call_operand.vmem [shape: f32[84,10], index: 9, kind: input, shape index: {}]
  %s10 = inlined_call_operand.vmem [shape: f32[1,10], index: 10, kind: input, shape index: {}]
  %s11 = inlined_call_operand.hbm [shape: f32[2,10], index: 11, kind: output, shape index: {}]
  %s12 = sld [smem:[#allocation0]]
  $region66: #{model1_forward.1} parent=0
    _
  %s14 = ssub.s32 1, %s12
  %s15 = scalar_select 0, %s14, %s12
  $region1: #{model1_forward.1} parent=0
    #allocation6 [shape = 'u8[163840]{0}', space=vmem, size = 0x28000, scoped, tag = 'input window, operand 1, single buffered']
    #allocation7 [shape = 's32[1]{0}', space=sflag, size = 0x4, scoped, tag = 'scoped memory for model1_forward.1']
    #allocation8 [shape = 's32[1]{0}', space=sflag, size = 0x4, scoped, tag = 'scoped memory for model1_forward.1']
    #allocation9 [shape = 'u8[450560]{0}', space=vmem, size = 0x6e000, scoped, tag = 'input window, operand 3, single buffered']
    #allocation10 [shape = 's32[1]{0}', space=sflag, size = 0x4, scoped, tag = 'scoped memory for model1_forward.1']
    #allocation11 [shape = 'u8[204800]{0}', space=vmem, size = 0x32000, scoped, tag = 'input window, operand 5, single buffered']
    #allocation12 [shape = 'u8[1024]{0}', space=vmem, size = 0x400, scoped, tag = 'output window, operand 0, single buffered']
    %16 = vsyncpa [#allocation7], 0
    %17 = vsyncpa [#allocation10], 0
    %18 = vsyncpa [#allocation8], 0
    // Predicated region
    $region2: #{model1_forward.1} parent=1 // pred_check
      _
    $region3: #{model1_forward.1} parent=1 // pred_check_branch
      %20 = sbr.rel (0) target = $region5
    $region4: #{model1_forward.1} parent=1 // pred_region
      _
    $region5: #{model1_forward.1} parent=1 // pred_fallthru
      _
    // Predicated region
    $region6: #{model1_forward.1} parent=1 // pred_check
      _
    $region7: #{model1_forward.1} parent=1 // pred_check_branch
      %22 = sbr.rel (0) target = $region9
    $region8: #{model1_forward.1} parent=1 // pred_region
      %s24 = ssub.s32 5120, 5120
      %25 = vsyncadd [#allocation7], %s24
      %s26 = sshll.u32 [#allocation6], 4
      %s27 = int_to_ptr.vmem [resolvable:$true] %s26
      %32 = dma.hbm_to_vmem [thread:$0]  %s1, 5120, %s27, [#allocation7], 256, 256, 16
    $region9: #{model1_forward.1} parent=1 // pred_fallthru
      _
    // Predicated region
    $region10: #{model1_forward.1} parent=1 // pred_check
      _
    $region11: #{model1_forward.1} parent=1 // pred_check_branch
      %34 = sbr.rel (0) target = $region13
    $region12: #{model1_forward.1} parent=1 // pred_region
      _
    $region13: #{model1_forward.1} parent=1 // pred_fallthru
      _
    // Predicated region
    $region14: #{model1_forward.1} parent=1 // pred_check
      _
    $region15: #{model1_forward.1} parent=1 // pred_check_branch
      %36 = sbr.rel (0) target = $region17
    $region16: #{model1_forward.1} parent=1 // pred_region
      %s38 = ssub.s32 14080, 14080
      %39 = vsyncadd [#allocation10], %s38
      %s40 = sshll.u32 [#allocation9], 4
      %s41 = int_to_ptr.vmem [resolvable:$true] %s40
      %46 = dma.hbm_to_vmem [thread:$0]  %s3, 14080, %s41, [#allocation10], 256, 256, 16
    $region17: #{model1_forward.1} parent=1 // pred_fallthru
      _
    // Predicated region
    $region18: #{model1_forward.1} parent=1 // pred_check
      _
    $region19: #{model1_forward.1} parent=1 // pred_check_branch
      %48 = sbr.rel (0) target = $region21
    $region20: #{model1_forward.1} parent=1 // pred_region
      _
    $region21: #{model1_forward.1} parent=1 // pred_fallthru
      _
    // Predicated region
    $region22: #{model1_forward.1} parent=1 // pred_check
      _
    $region23: #{model1_forward.1} parent=1 // pred_check_branch
      %50 = sbr.rel (0) target = $region25
    $region24: #{model1_forward.1} parent=1 // pred_region
      %s52 = ssub.s32 6400, 6400
      %53 = vsyncadd [#allocation10], %s52
      %s54 = sshll.u32 [#allocation11], 4
      %s55 = int_to_ptr.vmem [resolvable:$true] %s54
      %60 = dma.hbm_to_vmem [thread:$0]  %s5, 6400, %s55, [#allocation10], 128, 128, 8
    $region25: #{model1_forward.1} parent=1 // pred_fallthru
      _
    // Predicated region
    $region26: #{model1_forward.1} parent=1 // pred_check
      _
    $region27: #{model1_forward.1} parent=1 // pred_check_branch
      %62 = sbr.rel (0) target = $region29
    $region28: #{model1_forward.1} parent=1 // pred_region
      _
    $region29: #{model1_forward.1} parent=1 // pred_fallthru
      _
    // Predicated region
    $region30: #{model1_forward.1} parent=1 // pred_check
      _
    $region31: #{model1_forward.1} parent=1 // pred_check_branch
      %64 = sbr.rel (0) target = $region33
    $region32: #{model1_forward.1} parent=1 // pred_region
      _
    $region33: #{model1_forward.1} parent=1 // pred_fallthru
      _
    // Predicated region
    $region34: #{model1_forward.1} parent=1 // pred_check
      _
    $region35: #{model1_forward.1} parent=1 // pred_check_branch
      %66 = sbr.rel (0) target = $region37
    $region36: #{model1_forward.1} parent=1 // pred_region
      _
    $region37: #{model1_forward.1} parent=1 // pred_fallthru
      _
    // Predicated region
    $region38: #{model1_forward.1} parent=1 // pred_check
      _
    $region39: #{model1_forward.1} parent=1 // pred_check_branch
      %68 = sbr.rel (0) target = $region41
    $region40: #{model1_forward.1} parent=1 // pred_region
      _
    $region41: #{model1_forward.1} parent=1 // pred_fallthru
      _
    // Predicated region
    $region42: #{model1_forward.1} parent=1 // pred_check
      _
    $region43: #{model1_forward.1} parent=1 // pred_check_branch
      %70 = sbr.rel (0) target = $region45
    $region44: #{model1_forward.1} parent=1 // pred_region
      _
    $region45: #{model1_forward.1} parent=1 // pred_fallthru
      _
    // Predicated region
    $region46: #{model1_forward.1} parent=1 // pred_check
      _
    $region47: #{model1_forward.1} parent=1 // pred_check_branch
      %72 = sbr.rel (0) target = $region49
    $region48: #{model1_forward.1} parent=1 // pred_region
      %73 = dma.done [#allocation7], 5120
    $region49: #{model1_forward.1} parent=1 // pred_fallthru
      _
    // Predicated region
    $region50: #{model1_forward.1} parent=1 // pred_check
      _
    $region51: #{model1_forward.1} parent=1 // pred_check_branch
      %75 = sbr.rel (0) target = $region53
    $region52: #{model1_forward.1} parent=1 // pred_region
      %76 = dma.done [#allocation10], 14080
    $region53: #{model1_forward.1} parent=1 // pred_fallthru
      _
    // Predicated region
    $region54: #{model1_forward.1} parent=1 // pred_check
      _
    $region55: #{model1_forward.1} parent=1 // pred_check_branch
      %78 = sbr.rel (0) target = $region57
    $region56: #{model1_forward.1} parent=1 // pred_region
      %79 = dma.done [#allocation10], 6400
    $region57: #{model1_forward.1} parent=1 // pred_fallthru
      _
    %v80 = vld [vmem:[%s0] sm:$0xff]
    %v81 = vld [vmem:[%s0 + $0x8] sm:$0xff]
    %v82 = vld [vmem:[%s0 + $0x10] sm:$0xff]
    %v83 = vld [vmem:[%s0 + $0x18] sm:$0xf]
    %v84 = vld [vmem:[#allocation6] sm:$0xff]
    %v85 = vld [vmem:[#allocation6 + $0x8] sm:$0xff]
    %v86 = vld [vmem:[#allocation6 + $0x10] sm:$0xff]
    %v87 = vld [vmem:[#allocation6 + $0x18] sm:$0xff]
    %v88 = vld [vmem:[#allocation6 + $0x20] sm:$0xff]
    %v89 = vld [vmem:[#allocation6 + $0x28] sm:$0xff]
    %v90 = vld [vmem:[#allocation6 + $0x30] sm:$0xff]
    %v91 = vld [vmem:[#allocation6 + $0x38] sm:$0xff]
    %v92 = vld [vmem:[%s0 + $0x1] sm:$0xff]
    %v93 = vld [vmem:[%s0 + $0x9] sm:$0xff]
    %v94 = vld [vmem:[%s0 + $0x11] sm:$0xff]
    %v95 = vld [vmem:[%s0 + $0x19] sm:$0xf]
    %s96 = scalar_lea.vmem [#allocation6], 64
    %v97 = vld [vmem:[%s96] sm:$0xff]
    %v98 = vld [vmem:[%s96 + $0x8] sm:$0xff]
    %v99 = vld [vmem:[%s96 + $0x10] sm:$0xff]
    %v100 = vld [vmem:[%s96 + $0x18] sm:$0xff]
    %v101 = vld [vmem:[%s96 + $0x20] sm:$0xff]
    %v102 = vld [vmem:[%s96 + $0x28] sm:$0xff]
    %v103 = vld [vmem:[%s96 + $0x30] sm:$0xff]
    %v104 = vld [vmem:[%s96 + $0x38] sm:$0xff]
    %vm105 = vcmask 261120
    %v107 = vsel %vm105, %v92, 0
    %v110 = vsel %vm105, %v93, 0
    %v113 = vsel %vm105, %v94, 0
    %v116 = vsel %vm105, %v95, 0
    %118 = vmatprep.subr.mxu0 %v98
    %119 = vmatpush1.msra.mxu0 %v97
    %120 = vmatprep.subr.mxu0 %v100
    %121 = vmatpush1.msra.mxu0 %v99
    %122 = vmatprep.subr.mxu0 %v102
    %123 = vmatpush1.msra.mxu0 %v101
    %124 = vmatprep.subr.mxu0 %v104
    %125 = vmatpush1.msra.mxu0 %v103
    %126 = vmatprep.subr.mxu0 0.0
    %127 = vmatpush1.msra.mxu0 0.0
    %128 = vmatprep.subr.mxu0 0.0
    %129 = vmatpush1.msra.mxu0 0.0
    %130 = vmatprep.subr.mxu0 0.0
    %131 = vmatpush1.msra.mxu0 0.0
    %132 = vmatprep.subr.mxu0 0.0
    %133 = vmatpush1.msra.mxu0 0.0
    %134 = vmatprep.subr.mxu0 0.0
    %135 = vmatpush1.msra.mxu0 0.0
    %136 = vmatprep.subr.mxu0 0.0
    %137 = vmatpush1.msra.mxu0 0.0
    %138 = vmatprep.subr.mxu0 0.0
    %139 = vmatpush1.msra.mxu0 0.0
    %140 = vmatprep.subr.mxu0 0.0
    %141 = vmatpush1.msra.mxu0 0.0
    %142 = vmatprep.subr.mxu0 0.0
    %143 = vmatpush1.msra.mxu0 0.0
    %144 = vmatprep.subr.mxu0 0.0
    %145 = vmatpush1.msra.mxu0 0.0
    %146 = vmatprep.subr.mxu0 0.0
    %147 = vmatpush1.msra.mxu0 0.0
    %148 = vmatprep.subr.mxu0 0.0
    %149 = vmatpush1.msra.mxu0 0.0
    %150 = vmatprep.subr.mxu0 0.0
    %151 = vmatpush1.msra.mxu0 0.0
    %152 = vmatprep.subr.mxu0 0.0
    %153 = vmatpush1.msra.mxu0 0.0
    %154 = vmatprep.subr.mxu0 0.0
    %155 = vmatpush1.msra.mxu0 0.0
    %156 = vmatprep.subr.mxu0 0.0
    %157 = vmatpush1.msra.mxu0 0.0
    %158 = vmatprep.subr.mxu0 0.0
    %159 = vmatpush1.msra.mxu0 0.0
    %160 = vmatprep.subr.mxu0 0.0
    %161 = vmatpush1.msra.mxu0 0.0
    %162 = vmatprep.subr.mxu0 0.0
    %163 = vmatpush1.msra.mxu0 0.0
    %164 = vmatprep.subr.mxu0 0.0
    %165 = vmatpush1.msra.mxu0 0.0
    %166 = vmatprep.subr.mxu0 0.0
    %167 = vmatpush1.msra.mxu0 0.0
    %168 = vmatprep.subr.mxu0 0.0
    %169 = vmatpush1.msra.mxu0 0.0
    %170 = vmatprep.subr.mxu0 0.0
    %171 = vmatpush1.msra.mxu0 0.0
    %172 = vmatprep.subr.mxu0 0.0
    %173 = vmatpush1.msra.mxu0 0.0
    %174 = vmatprep.subr.mxu0 0.0
    %175 = vmatpush1.msra.mxu0 0.0
    %176 = vmatprep.subr.mxu0 0.0
    %177 = vmatpush1.msra.mxu0 0.0
    %178 = vmatprep.subr.mxu0 0.0
    %179 = vmatpush1.msra.mxu0 0.0
    %180 = vmatprep.subr.mxu0 0.0
    %181 = vmatpush1.msra.mxu0 0.0
    %182 = vmatprep.mubr.f32.mxu0 0.0
    %183 = vmatmul.mubr.f32.gmra.mrb[0].mxu0 %v107
    %v184 = vpop.f32.mrb[0].mxu0
    %v185 = vadd.f32 0.0, %v184
    %v186 = vpop.f32.mrb[0].mxu0
    %v187 = vadd.f32 0.0, %v186
    %188 = vmatprep.mubr.f32.mxu0 0.0
    %189 = vmatmul.mubr.f32.gmra.mrb[0].mxu0 %v110
    %v190 = vpop.f32.mrb[0].mxu0
    %v191 = vadd.f32 0.0, %v190
    %v192 = vpop.f32.mrb[0].mxu0
    %v193 = vadd.f32 0.0, %v192
    %194 = vmatprep.mubr.f32.mxu0 0.0
    %195 = vmatmul.mubr.f32.gmra.mrb[0].mxu0 %v113
    %v196 = vpop.f32.mrb[0].mxu0
    %v197 = vadd.f32 0.0, %v196
    %v198 = vpop.f32.mrb[0].mxu0
    %v199 = vadd.f32 0.0, %v198
    %200 = vmatprep.mubr.f32.mxu0 0.0
    %201 = vmatmul.mubr.f32.gmra.mrb[0].mxu0 %v116
    %v202 = vpop.f32.mrb[0].mxu0
    %v203 = vadd.f32 0.0, %v202
    %v204 = vpop.f32.mrb[0].mxu0
    %v205 = vadd.f32 0.0, %v204
    %206 = vdwg.mxu0
    %v208 = vsel %vm105, %v80, 0
    %v211 = vsel %vm105, %v81, 0
    %v214 = vsel %vm105, %v82, 0
    %v217 = vsel %vm105, %v83, 0
    %219 = vmatprep.subr.mxu0 %v85
    %220 = vmatpush1.msra.mxu0 %v84
    %221 = vmatprep.subr.mxu0 %v87
    %222 = vmatpush1.msra.mxu0 %v86
    %223 = vmatprep.subr.mxu0 %v89
    %224 = vmatpush1.msra.mxu0 %v88
    %225 = vmatprep.subr.mxu0 %v91
    %226 = vmatpush1.msra.mxu0 %v90
    %227 = vmatprep.subr.mxu0 0.0
    %228 = vmatpush1.msra.mxu0 0.0
    %229 = vmatprep.subr.mxu0 0.0
    %230 = vmatpush1.msra.mxu0 0.0
    %231 = vmatprep.subr.mxu0 0.0
    %232 = vmatpush1.msra.mxu0 0.0
    %233 = vmatprep.subr.mxu0 0.0
    %234 = vmatpush1.msra.mxu0 0.0
    %235 = vmatprep.subr.mxu0 0.0
    %236 = vmatpush1.msra.mxu0 0.0
    %237 = vmatprep.subr.mxu0 0.0
    %238 = vmatpush1.msra.mxu0 0.0
    %239 = vmatprep.subr.mxu0 0.0
    %240 = vmatpush1.msra.mxu0 0.0
    %241 = vmatprep.subr.mxu0 0.0
    %242 = vmatpush1.msra.mxu0 0.0
    %243 = vmatprep.subr.mxu0 0.0
    %244 = vmatpush1.msra.mxu0 0.0
    %245 = vmatprep.subr.mxu0 0.0
    %246 = vmatpush1.msra.mxu0 0.0
    %247 = vmatprep.subr.mxu0 0.0
    %248 = vmatpush1.msra.mxu0 0.0
    %249 = vmatprep.subr.mxu0 0.0
    %250 = vmatpush1.msra.mxu0 0.0
    %251 = vmatprep.subr.mxu0 0.0
    %252 = vmatpush1.msra.mxu0 0.0
    %253 = vmatprep.subr.mxu0 0.0
    %254 = vmatpush1.msra.mxu0 0.0
    %255 = vmatprep.subr.mxu0 0.0
    %256 = vmatpush1.msra.mxu0 0.0
    %257 = vmatprep.subr.mxu0 0.0
    %258 = vmatpush1.msra.mxu0 0.0
    %259 = vmatprep.subr.mxu0 0.0
    %260 = vmatpush1.msra.mxu0 0.0
    %261 = vmatprep.subr.mxu0 0.0
    %262 = vmatpush1.msra.mxu0 0.0
    %263 = vmatprep.subr.mxu0 0.0
    %264 = vmatpush1.msra.mxu0 0.0
    %265 = vmatprep.subr.mxu0 0.0
    %266 = vmatpush1.msra.mxu0 0.0
    %267 = vmatprep.subr.mxu0 0.0
    %268 = vmatpush1.msra.mxu0 0.0
    %269 = vmatprep.subr.mxu0 0.0
    %270 = vmatpush1.msra.mxu0 0.0
    %271 = vmatprep.subr.mxu0 0.0
    %272 = vmatpush1.msra.mxu0 0.0
    %273 = vmatprep.subr.mxu0 0.0
    %274 = vmatpush1.msra.mxu0 0.0
    %275 = vmatprep.subr.mxu0 0.0
    %276 = vmatpush1.msra.mxu0 0.0
    %277 = vmatprep.subr.mxu0 0.0
    %278 = vmatpush1.msra.mxu0 0.0
    %279 = vmatprep.subr.mxu0 0.0
    %280 = vmatpush1.msra.mxu0 0.0
    %281 = vmatprep.subr.mxu0 0.0
    %282 = vmatpush1.msra.mxu0 0.0
    %283 = vmatprep.mubr.f32.mxu0 0.0
    %284 = vmatmul.mubr.f32.gmra.mrb[0].mxu0 %v208
    %v285 = vpop.f32.mrb[0].mxu0
    %v286 = vadd.f32 %v185, %v285
    %v287 = vpop.f32.mrb[0].mxu0
    %v288 = vadd.f32 %v187, %v287
    %289 = vmatprep.mubr.f32.mxu0 0.0
    %290 = vmatmul.mubr.f32.gmra.mrb[0].mxu0 %v211
    %v291 = vpop.f32.mrb[0].mxu0
    %v292 = vadd.f32 %v191, %v291
    %v293 = vpop.f32.mrb[0].mxu0
    %v294 = vadd.f32 %v193, %v293
    %295 = vmatprep.mubr.f32.mxu0 0.0
    %296 = vmatmul.mubr.f32.gmra.mrb[0].mxu0 %v214
    %v297 = vpop.f32.mrb[0].mxu0
    %v298 = vadd.f32 %v197, %v297
    %v299 = vpop.f32.mrb[0].mxu0
    %v300 = vadd.f32 %v199, %v299
    %301 = vmatprep.mubr.f32.mxu0 0.0
    %302 = vmatmul.mubr.f32.gmra.mrb[0].mxu0 %v217
    %v303 = vpop.f32.mrb[0].mxu0
    %v304 = vadd.f32 %v203, %v303
    %v305 = vpop.f32.mrb[0].mxu0
    %v306 = vadd.f32 %v205, %v305
    %307 = vdwg.mxu0
    %v308 = vld [vmem:[%s0 + $0x2] sm:$0xff]
    %v309 = vld [vmem:[%s0 + $0xa] sm:$0xff]
    %v310 = vld [vmem:[%s0 + $0x12] sm:$0xff]
    %v311 = vld [vmem:[%s0 + $0x1a] sm:$0xf]
    %s312 = scalar_lea.vmem [#allocation6], 128
    %v313 = vld [vmem:[%s312] sm:$0xff]
    %v314 = vld [vmem:[%s312 + $0x8] sm:$0xff]
    %v315 = vld [vmem:[%s312 + $0x10] sm:$0xff]
    %v316 = vld [vmem:[%s312 + $0x18] sm:$0xff]
    %v317 = vld [vmem:[%s312 + $0x20] sm:$0xff]
    %v318 = vld [vmem:[%s312 + $0x28] sm:$0xff]
    %v319 = vld [vmem:[%s312 + $0x30] sm:$0xff]
    %v320 = vld [vmem:[%s312 + $0x38] sm:$0xff]
    %v322 = vsel %vm105, %v308, 0
    %v325 = vsel %vm105, %v309, 0
    %v328 = vsel %vm105, %v310, 0
    %v331 = vsel %vm105, %v311, 0
    %333 = vmatprep.subr.mxu0 %v314
    %334 = vmatpush1.msra.mxu0 %v313
    %335 = vmatprep.subr.mxu0 %v316
    %336 = vmatpush1.msra.mxu0 %v315
    %337 = vmatprep.subr.mxu0 %v318
    %338 = vmatpush1.msra.mxu0 %v317
    %339 = vmatprep.subr.mxu0 %v320
    %340 = vmatpush1.msra.mxu0 %v319
    %341 = vmatprep.subr.mxu0 0.0
    %342 = vmatpush1.msra.mxu0 0.0
    %343 = vmatprep.subr.mxu0 0.0
    %344 = vmatpush1.msra.mxu0 0.0
    %345 = vmatprep.subr.mxu0 0.0
    %346 = vmatpush1.msra.mxu0 0.0
    %347 = vmatprep.subr.mxu0 0.0
    %348 = vmatpush1.msra.mxu0 0.0
    %349 = vmatprep.subr.mxu0 0.0
    %350 = vmatpush1.msra.mxu0 0.0
    %351 = vmatprep.subr.mxu0 0.0
    %352 = vmatpush1.msra.mxu0 0.0
    %353 = vmatprep.subr.mxu0 0.0
    %354 = vmatpush1.msra.mxu0 0.0
    %355 = vmatprep.subr.mxu0 0.0
    %356 = vmatpush1.msra.mxu0 0.0
    %357 = vmatprep.subr.mxu0 0.0
    %358 = vmatpush1.msra.mxu0 0.0
    %359 = vmatprep.subr.mxu0 0.0
    %360 = vmatpush1.msra.mxu0 0.0
    %361 = vmatprep.subr.mxu0 0.0
    %362 = vmatpush1.msra.mxu0 0.0
    %363 = vmatprep.subr.mxu0 0.0
    %364 = vmatpush1.msra.mxu0 0.0
    %365 = vmatprep.subr.mxu0 0.0
    %366 = vmatpush1.msra.mxu0 0.0
    %367 = vmatprep.subr.mxu0 0.0
    %368 = vmatpush1.msra.mxu0 0.0
    %369 = vmatprep.subr.mxu0 0.0
    %370 = vmatpush1.msra.mxu0 0.0
    %371 = vmatprep.subr.mxu0 0.0
    %372 = vmatpush1.msra.mxu0 0.0
    %373 = vmatprep.subr.mxu0 0.0
    %374 = vmatpush1.msra.mxu0 0.0
    %375 = vmatprep.subr.mxu0 0.0
    %376 = vmatpush1.msra.mxu0 0.0
    %377 = vmatprep.subr.mxu0 0.0
    %378 = vmatpush1.msra.mxu0 0.0
    %379 = vmatprep.subr.mxu0 0.0
    %380 = vmatpush1.msra.mxu0 0.0
    %381 = vmatprep.subr.mxu0 0.0
    %382 = vmatpush1.msra.mxu0 0.0
    %383 = vmatprep.subr.mxu0 0.0
    %384 = vmatpush1.msra.mxu0 0.0
    %385 = vmatprep.subr.mxu0 0.0
    %386 = vmatpush1.msra.mxu0 0.0
    %387 = vmatprep.subr.mxu0 0.0
    %388 = vmatpush1.msra.mxu0 0.0
    %389 = vmatprep.subr.mxu0 0.0
    %390 = vmatpush1.msra.mxu0 0.0
    %391 = vmatprep.subr.mxu0 0.0
    %392 = vmatpush1.msra.mxu0 0.0
    %393 = vmatprep.subr.mxu0 0.0
    %394 = vmatpush1.msra.mxu0 0.0
    %395 = vmatprep.subr.mxu0 0.0
    %396 = vmatpush1.msra.mxu0 0.0
    %397 = vmatprep.mubr.f32.mxu0 0.0
    %398 = vmatmul.mubr.f32.gmra.mrb[0].mxu0 %v322
    %v399 = vpop.f32.mrb[0].mxu0
    %v400 = vadd.f32 0.0, %v399
    %v401 = vpop.f32.mrb[0].mxu0
    %v402 = vadd.f32 0.0, %v401
    %403 = vmatprep.mubr.f32.mxu0 0.0
    %404 = vmatmul.mubr.f32.gmra.mrb[0].mxu0 %v325
    %v405 = vpop.f32.mrb[0].mxu0
    %v406 = vadd.f32 0.0, %v405
    %v407 = vpop.f32.mrb[0].mxu0
    %v408 = vadd.f32 0.0, %v407
    %409 = vmatprep.mubr.f32.mxu0 0.0
    %410 = vmatmul.mubr.f32.gmra.mrb[0].mxu0 %v328
    %v411 = vpop.f32.mrb[0].mxu0
    %v412 = vadd.f32 0.0, %v411
    %v413 = vpop.f32.mrb[0].mxu0
    %v414 = vadd.f32 0.0, %v413
    %415 = vmatprep.mubr.f32.mxu0 0.0
    %416 = vmatmul.mubr.f32.gmra.mrb[0].mxu0 %v331
    %v417 = vpop.f32.mrb[0].mxu0
    %v418 = vadd.f32 0.0, %v417
    %v419 = vpop.f32.mrb[0].mxu0
    %v420 = vadd.f32 0.0, %v419
    %421 = vdwg.mxu0
    %v422 = vadd.f32 %v286, %v400
    %v423 = vadd.f32 %v288, %v402
    %v424 = vadd.f32 %v292, %v406
    %v425 = vadd.f32 %v294, %v408
    %v426 = vadd.f32 %v298, %v412
    %v427 = vadd.f32 %v300, %v414
    %v428 = vadd.f32 %v304, %v418
    %v429 = vadd.f32 %v306, %v420
    %v430 = vld [vmem:[%s0 + $0x3] sm:$0xff]
    %v431 = vld [vmem:[%s0 + $0xb] sm:$0xff]
    %v432 = vld [vmem:[%s0 + $0x13] sm:$0xff]
    %v433 = vld [vmem:[%s0 + $0x1b] sm:$0xf]
    %s434 = scalar_lea.vmem [#allocation6], 192
    %v435 = vld [vmem:[%s434] sm:$0xff]
    %v436 = vld [vmem:[%s434 + $0x8] sm:$0xff]
    %v437 = vld [vmem:[%s434 + $0x10] sm:$0xff]
    %v438 = vld [vmem:[%s434 + $0x18] sm:$0xff]
    %v439 = vld [vmem:[%s434 + $0x20] sm:$0xff]
    %v440 = vld [vmem:[%s434 + $0x28] sm:$0xff]
    %v441 = vld [vmem:[%s434 + $0x30] sm:$0xff]
    %v442 = vld [vmem:[%s434 + $0x38] sm:$0xff]
    %v444 = vsel %vm105, %v430, 0
    %v447 = vsel %vm105, %v431, 0
    %v450 = vsel %vm105, %v432, 0
    %v453 = vsel %vm105, %v433, 0
    %455 = vmatprep.subr.mxu0 %v436
    %456 = vmatpush1.msra.mxu0 %v435
    %457 = vmatprep.subr.mxu0 %v438
    %458 = vmatpush1.msra.mxu0 %v437
    %459 = vmatprep.subr.mxu0 %v440
    %460 = vmatpush1.msra.mxu0 %v439
    %461 = vmatprep.subr.mxu0 %v442
    %462 = vmatpush1.msra.mxu0 %v441
    %463 = vmatprep.subr.mxu0 0.0
    %464 = vmatpush1.msra.mxu0 0.0
    %465 = vmatprep.subr.mxu0 0.0
    %466 = vmatpush1.msra.mxu0 0.0
    %467 = vmatprep.subr.mxu0 0.0
    %468 = vmatpush1.msra.mxu0 0.0
    %469 = vmatprep.subr.mxu0 0.0
    %470 = vmatpush1.msra.mxu0 0.0
    %471 = vmatprep.subr.mxu0 0.0
    %472 = vmatpush1.msra.mxu0 0.0
    %473 = vmatprep.subr.mxu0 0.0
    %474 = vmatpush1.msra.mxu0 0.0
    %475 = vmatprep.subr.mxu0 0.0
    %476 = vmatpush1.msra.mxu0 0.0
    %477 = vmatprep.subr.mxu0 0.0
    %478 = vmatpush1.msra.mxu0 0.0
    %479 = vmatprep.subr.mxu0 0.0
    %480 = vmatpush1.msra.mxu0 0.0
    %481 = vmatprep.subr.mxu0 0.0
    %482 = vmatpush1.msra.mxu0 0.0
    %483 = vmatprep.subr.mxu0 0.0
    %484 = vmatpush1.msra.mxu0 0.0
    %485 = vmatprep.subr.mxu0 0.0
    %486 = vmatpush1.msra.mxu0 0.0
    %487 = vmatprep.subr.mxu0 0.0
    %488 = vmatpush1.msra.mxu0 0.0
    %489 = vmatprep.subr.mxu0 0.0
    %490 = vmatpush1.msra.mxu0 0.0
    %491 = vmatprep.subr.mxu0 0.0
    %492 = vmatpush1.msra.mxu0 0.0
    %493 = vmatprep.subr.mxu0 0.0
    %494 = vmatpush1.msra.mxu0 0.0
    %495 = vmatprep.subr.mxu0 0.0
    %496 = vmatpush1.msra.mxu0 0.0
    %497 = vmatprep.subr.mxu0 0.0
    %498 = vmatpush1.msra.mxu0 0.0
    %499 = vmatprep.subr.mxu0 0.0
    %500 = vmatpush1.msra.mxu0 0.0
    %501 = vmatprep.subr.mxu0 0.0
    %502 = vmatpush1.msra.mxu0 0.0
    %503 = vmatprep.subr.mxu0 0.0
    %504 = vmatpush1.msra.mxu0 0.0
    %505 = vmatprep.subr.mxu0 0.0
    %506 = vmatpush1.msra.mxu0 0.0
    %507 = vmatprep.subr.mxu0 0.0
    %508 = vmatpush1.msra.mxu0 0.0
    %509 = vmatprep.subr.mxu0 0.0
    %510 = vmatpush1.msra.mxu0 0.0
    %511 = vmatprep.subr.mxu0 0.0
    %512 = vmatpush1.msra.mxu0 0.0
    %513 = vmatprep.subr.mxu0 0.0
    %514 = vmatpush1.msra.mxu0 0.0
    %515 = vmatprep.subr.mxu0 0.0
    %516 = vmatpush1.msra.mxu0 0.0
    %517 = vmatprep.subr.mxu0 0.0
    %518 = vmatpush1.msra.mxu0 0.0
    %519 = vmatprep.mubr.f32.mxu0 0.0
    %520 = vmatmul.mubr.f32.gmra.mrb[0].mxu0 %v444
    %v521 = vpop.f32.mrb[0].mxu0
    %v522 = vadd.f32 0.0, %v521
    %v523 = vpop.f32.mrb[0].mxu0
    %v524 = vadd.f32 0.0, %v523
    %525 = vmatprep.mubr.f32.mxu0 0.0
    %526 = vmatmul.mubr.f32.gmra.mrb[0].mxu0 %v447
    %v527 = vpop.f32.mrb[0].mxu0
    %v528 = vadd.f32 0.0, %v527
    %v529 = vpop.f32.mrb[0].mxu0
    %v530 = vadd.f32 0.0, %v529
    %531 = vmatprep.mubr.f32.mxu0 0.0
    %532 = vmatmul.mubr.f32.gmra.mrb[0].mxu0 %v450
    %v533 = vpop.f32.mrb[0].mxu0
    %v534 = vadd.f32 0.0, %v533
    %v535 = vpop.f32.mrb[0].mxu0
    %v536 = vadd.f32 0.0, %v535
    %537 = vmatprep.mubr.f32.mxu0 0.0
    %538 = vmatmul.mubr.f32.gmra.mrb[0].mxu0 %v453
    %v539 = vpop.f32.mrb[0].mxu0
    %v540 = vadd.f32 0.0, %v539
    %v541 = vpop.f32.mrb[0].mxu0
    %v542 = vadd.f32 0.0, %v541
    %543 = vdwg.mxu0
    %v544 = vadd.f32 %v422, %v522
    %v545 = vadd.f32 %v423, %v524
    %v546 = vadd.f32 %v424, %v528
    %v547 = vadd.f32 %v425, %v530
    %v548 = vadd.f32 %v426, %v534
    %v549 = vadd.f32 %v427, %v536
    %v550 = vadd.f32 %v428, %v540
    %v551 = vadd.f32 %v429, %v542
    %v552 = vld [vmem:[%s0 + $0x4] sm:$0xff]
    %v553 = vld [vmem:[%s0 + $0xc] sm:$0xff]
    %v554 = vld [vmem:[%s0 + $0x14] sm:$0xff]
    %v555 = vld [vmem:[%s0 + $0x1c] sm:$0xf]
    %s556 = scalar_lea.vmem [#allocation6], 256
    %v557 = vld [vmem:[%s556] sm:$0xff]
    %v558 = vld [vmem:[%s556 + $0x8] sm:$0xff]
    %v559 = vld [vmem:[%s556 + $0x10] sm:$0xff]
    %v560 = vld [vmem:[%s556 + $0x18] sm:$0xff]
    %v561 = vld [vmem:[%s556 + $0x20] sm:$0xff]
    %v562 = vld [vmem:[%s556 + $0x28] sm:$0xff]
    %v563 = vld [vmem:[%s556 + $0x30] sm:$0xff]
    %v564 = vld [vmem:[%s556 + $0x38] sm:$0xff]
    %v566 = vsel %vm105, %v552, 0
    %v569 = vsel %vm105, %v553, 0
    %v572 = vsel %vm105, %v554, 0
    %v575 = vsel %vm105, %v555, 0
    %577 = vmatprep.subr.mxu0 %v558
    %578 = vmatpush1.msra.mxu0 %v557
    %579 = vmatprep.subr.mxu0 %v560
    %580 = vmatpush1.msra.mxu0 %v559
    %581 = vmatprep.subr.mxu0 %v562
    %582 = vmatpush1.msra.mxu0 %v561
    %583 = vmatprep.subr.mxu0 %v564
    %584 = vmatpush1.msra.mxu0 %v563
    %585 = vmatprep.subr.mxu0 0.0
    %586 = vmatpush1.msra.mxu0 0.0
    %587 = vmatprep.subr.mxu0 0.0
    %588 = vmatpush1.msra.mxu0 0.0
    %589 = vmatprep.subr.mxu0 0.0
    %590 = vmatpush1.msra.mxu0 0.0
    %591 = vmatprep.subr.mxu0 0.0
    %592 = vmatpush1.msra.mxu0 0.0
    %593 = vmatprep.subr.mxu0 0.0
    %594 = vmatpush1.msra.mxu0 0.0
    %595 = vmatprep.subr.mxu0 0.0
    %596 = vmatpush1.msra.mxu0 0.0
    %597 = vmatprep.subr.mxu0 0.0
    %598 = vmatpush1.msra.mxu0 0.0
    %599 = vmatprep.subr.mxu0 0.0
    %600 = vmatpush1.msra.mxu0 0.0
    %601 = vmatprep.subr.mxu0 0.0
    %602 = vmatpush1.msra.mxu0 0.0
    %603 = vmatprep.subr.mxu0 0.0
    %604 = vmatpush1.msra.mxu0 0.0
    %605 = vmatprep.subr.mxu0 0.0
    %606 = vmatpush1.msra.mxu0 0.0
    %607 = vmatprep.subr.mxu0 0.0
    %608 = vmatpush1.msra.mxu0 0.0
    %609 = vmatprep.subr.mxu0 0.0
    %610 = vmatpush1.msra.mxu0 0.0
    %611 = vmatprep.subr.mxu0 0.0
    %612 = vmatpush1.msra.mxu0 0.0
    %613 = vmatprep.subr.mxu0 0.0
    %614 = vmatpush1.msra.mxu0 0.0
    %615 = vmatprep.subr.mxu0 0.0
    %616 = vmatpush1.msra.mxu0 0.0
    %617 = vmatprep.subr.mxu0 0.0
    %618 = vmatpush1.msra.mxu0 0.0
    %619 = vmatprep.subr.mxu0 0.0
    %620 = vmatpush1.msra.mxu0 0.0
    %621 = vmatprep.subr.mxu0 0.0
    %622 = vmatpush1.msra.mxu0 0.0
    %623 = vmatprep.subr.mxu0 0.0
    %624 = vmatpush1.msra.mxu0 0.0
    %625 = vmatprep.subr.mxu0 0.0
    %626 = vmatpush1.msra.mxu0 0.0
    %627 = vmatprep.subr.mxu0 0.0
    %628 = vmatpush1.msra.mxu0 0.0
    %629 = vmatprep.subr.mxu0 0.0
    %630 = vmatpush1.msra.mxu0 0.0
    %631 = vmatprep.subr.mxu0 0.0
    %632 = vmatpush1.msra.mxu0 0.0
    %633 = vmatprep.subr.mxu0 0.0
    %634 = vmatpush1.msra.mxu0 0.0
    %635 = vmatprep.subr.mxu0 0.0
    %636 = vmatpush1.msra.mxu0 0.0
    %637 = vmatprep.subr.mxu0 0.0
    %638 = vmatpush1.msra.mxu0 0.0
    %639 = vmatprep.subr.mxu0 0.0
    %640 = vmatpush1.msra.mxu0 0.0
    %641 = vmatprep.mubr.f32.mxu0 0.0
    %642 = vmatmul.mubr.f32.gmra.mrb[0].mxu0 %v566
    %v643 = vpop.f32.mrb[0].mxu0
    %v644 = vadd.f32 0.0, %v643
    %v645 = vpop.f32.mrb[0].mxu0
    %v646 = vadd.f32 0.0, %v645
    %647 = vmatprep.mubr.f32.mxu0 0.0
    %648 = vmatmul.mubr.f32.gmra.mrb[0].mxu0 %v569
    %v649 = vpop.f32.mrb[0].mxu0
    %v650 = vadd.f32 0.0, %v649
    %v651 = vpop.f32.mrb[0].mxu0
    %v652 = vadd.f32 0.0, %v651
    %653 = vmatprep.mubr.f32.mxu0 0.0
    %654 = vmatmul.mubr.f32.gmra.mrb[0].mxu0 %v572
    %v655 = vpop.f32.mrb[0].mxu0
    %v656 = vadd.f32 0.0, %v655
    %v657 = vpop.f32.mrb[0].mxu0
    %v658 = vadd.f32 0.0, %v657
    %659 = vmatprep.mubr.f32.mxu0 0.0
    %660 = vmatmul.mubr.f32.gmra.mrb[0].mxu0 %v575
    %v661 = vpop.f32.mrb[0].mxu0
    %v662 = vadd.f32 0.0, %v661
    %v663 = vpop.f32.mrb[0].mxu0
    %v664 = vadd.f32 0.0, %v663
    %665 = vdwg.mxu0
    %v666 = vadd.f32 %v544, %v644
    %v667 = vadd.f32 %v545, %v646
    %v668 = vadd.f32 %v546, %v650
    %v669 = vadd.f32 %v547, %v652
    %v670 = vadd.f32 %v548, %v656
    %v671 = vadd.f32 %v549, %v658
    %v672 = vadd.f32 %v550, %v662
    %v673 = vadd.f32 %v551, %v664
    %v674 = vld [vmem:[%s2] sm:$0x3]
    %v676 = vlaneseq
    %v677 = vshrl.u32 %v676, 7
    %v678 = vsub.s32 0, %v677
    %v679 = vrot.slane %v674, %v678
    %v680 = vlaneseq
    %v681 = vshrl.u32 %v680, 7
    %v682 = vsub.s32 1, %v681
    %v683 = vrot.slane %v674, %v682
    %v686 = vadd.f32 %v666, %v679
    %v687 = vadd.f32 %v667, %v683
    %v688 = vadd.f32 %v668, %v679
    %v689 = vadd.f32 %v669, %v683
    %v690 = vadd.f32 %v670, %v679
    %v691 = vadd.f32 %v671, %v683
    %v692 = vadd.f32 %v672, %v679
    %v693 = vadd.f32 %v673, %v683
    %694 = vst [vmem:[#allocation2] sm:$0xff] %v686
    %695 = vst [vmem:[#allocation2 + $0x8] sm:$0xff] %v687
    %696 = vst [vmem:[#allocation2 + $0x10] sm:$0xff] %v688
    %697 = vst [vmem:[#allocation2 + $0x18] sm:$0xff] %v689
    %698 = vst [vmem:[#allocation2 + $0x20] sm:$0xff] %v690
    %699 = vst [vmem:[#allocation2 + $0x28] sm:$0xff] %v691
    %700 = vst [vmem:[#allocation2 + $0x30] sm:$0xf] %v692
    %701 = vst [vmem:[#allocation2 + $0x38] sm:$0xf] %v693
    %v702 = vld [vmem:[#allocation2] ss:$0 sm:$0xff]
    %v703 = vld [vmem:[#allocation2 + $0x8] ss:$0 sm:$0xff]
    %v704 = vmax.f32 %v702, %v703
    %v705 = vld [vmem:[#allocation2 + $0x1] ss:$0 sm:$0xff]
    %v706 = vld [vmem:[#allocation2 + $0x9] ss:$0 sm:$0xff]
    %v707 = vmax.f32 %v705, %v706
    %v708 = vmax.f32 %v704, %v707
    %vm709 = vcmask 679936
    %710 = vst.msk [vmem:[#allocation3] sm:$0x1] %vm709, %v708
    %v711 = vld [vmem:[#allocation2 + $0x2] ss:$0 sm:$0xff]
    %v712 = vld [vmem:[#allocation2 + $0xa] ss:$0 sm:$0xff]
    %v713 = vmax.f32 %v711, %v712
    %v714 = vld [vmem:[#allocation2 + $0x3] ss:$0 sm:$0xff]
    %v715 = vld [vmem:[#allocation2 + $0xb] ss:$0 sm:$0xff]
    %v716 = vmax.f32 %v714, %v715
    %v717 = vmax.f32 %v713, %v716
    %718 = vst.msk [vmem:[#allocation3 + $0x1] sm:$0x1] %vm709, %v717
    %v719 = vld [vmem:[#allocation2 + $0x4] ss:$0 sm:$0xff]
    %v720 = vld [vmem:[#allocation2 + $0xc] ss:$0 sm:$0xff]
    %v721 = vmax.f32 %v719, %v720
    %v722 = vld [vmem:[#allocation2 + $0x5] ss:$0 sm:$0xff]
    %v723 = vld [vmem:[#allocation2 + $0xd] ss:$0 sm:$0xff]
    %v724 = vmax.f32 %v722, %v723
    %v725 = vmax.f32 %v721, %v724
    %726 = vst.msk [vmem:[#allocation3 + $0x2] sm:$0x1] %vm709, %v725
    %v727 = vld [vmem:[#allocation2 + $0x6] ss:$0 sm:$0xff]
    %v728 = vld [vmem:[#allocation2 + $0xe] ss:$0 sm:$0xff]
    %v729 = vmax.f32 %v727, %v728
    %v730 = vld [vmem:[#allocation2 + $0x7] ss:$0 sm:$0xff]
    %v731 = vld [vmem:[#allocation2 + $0xf] ss:$0 sm:$0xff]
    %v732 = vmax.f32 %v730, %v731
    %v733 = vmax.f32 %v729, %v732
    %734 = vst.msk [vmem:[#allocation3 + $0x3] sm:$0x1] %vm709, %v733
    %v735 = vld [vmem:[#allocation2 + $0x10] ss:$0 sm:$0xff]
    %v736 = vld [vmem:[#allocation2 + $0x18] ss:$0 sm:$0xff]
    %v737 = vmax.f32 %v735, %v736
    %v738 = vld [vmem:[#allocation2 + $0x11] ss:$0 sm:$0xff]
    %v739 = vld [vmem:[#allocation2 + $0x19] ss:$0 sm:$0xff]
    %v740 = vmax.f32 %v738, %v739
    %v741 = vmax.f32 %v737, %v740
    %742 = vst.msk [vmem:[#allocation3 + $0x4] sm:$0x1] %vm709, %v741
    %v743 = vld [vmem:[#allocation2 + $0x12] ss:$0 sm:$0xff]
    %v744 = vld [vmem:[#allocation2 + $0x1a] ss:$0 sm:$0xff]
    %v745 = vmax.f32 %v743, %v744
    %v746 = vld [vmem:[#allocation2 + $0x13] ss:$0 sm:$0xff]
    %v747 = vld [vmem:[#allocation2 + $0x1b] ss:$0 sm:$0xff]
    %v748 = vmax.f32 %v746, %v747
    %v749 = vmax.f32 %v745, %v748
    %750 = vst.msk [vmem:[#allocation3 + $0x5] sm:$0x1] %vm709, %v749
    %v751 = vld [vmem:[#allocation2 + $0x14] ss:$0 sm:$0xff]
    %v752 = vld [vmem:[#allocation2 + $0x1c] ss:$0 sm:$0xff]
    %v753 = vmax.f32 %v751, %v752
    %v754 = vld [vmem:[#allocation2 + $0x15] ss:$0 sm:$0xff]
    %v755 = vld [vmem:[#allocation2 + $0x1d] ss:$0 sm:$0xff]
    %v756 = vmax.f32 %v754, %v755
    %v757 = vmax.f32 %v753, %v756
    %758 = vst.msk [vmem:[#allocation3 + $0x6] sm:$0x1] %vm709, %v757
    %v759 = vld [vmem:[#allocation2 + $0x16] ss:$0 sm:$0xff]
    %v760 = vld [vmem:[#allocation2 + $0x1e] ss:$0 sm:$0xff]
    %v761 = vmax.f32 %v759, %v760
    %v762 = vld [vmem:[#allocation2 + $0x17] ss:$0 sm:$0xff]
    %v763 = vld [vmem:[#allocation2 + $0x1f] ss:$0 sm:$0xff]
    %v764 = vmax.f32 %v762, %v763
    %v765 = vmax.f32 %v761, %v764
    %766 = vst.msk [vmem:[#allocation3 + $0x7] sm:$0x1] %vm709, %v765
    %v767 = vld [vmem:[#allocation2 + $0x20] ss:$0 sm:$0xff]
    %v768 = vld [vmem:[#allocation2 + $0x28] ss:$0 sm:$0xff]
    %v769 = vmax.f32 %v767, %v768
    %v770 = vld [vmem:[#allocation2 + $0x21] ss:$0 sm:$0xff]
    %v771 = vld [vmem:[#allocation2 + $0x29] ss:$0 sm:$0xff]
    %v772 = vmax.f32 %v770, %v771
    %v773 = vmax.f32 %v769, %v772
    %774 = vst.msk [vmem:[#allocation3 + $0x8] sm:$0x1] %vm709, %v773
    %v775 = vld [vmem:[#allocation2 + $0x22] ss:$0 sm:$0xff]
    %v776 = vld [vmem:[#allocation2 + $0x2a] ss:$0 sm:$0xff]
    %v777 = vmax.f32 %v775, %v776
    %v778 = vld [vmem:[#allocation2 + $0x23] ss:$0 sm:$0xff]
    %v779 = vld [vmem:[#allocation2 + $0x2b] ss:$0 sm:$0xff]
    %v780 = vmax.f32 %v778, %v779
    %v781 = vmax.f32 %v777, %v780
    %782 = vst.msk [vmem:[#allocation3 + $0x9] sm:$0x1] %vm709, %v781
    %v783 = vld [vmem:[#allocation2 + $0x24] ss:$0 sm:$0xff]
    %v784 = vld [vmem:[#allocation2 + $0x2c] ss:$0 sm:$0xff]
    %v785 = vmax.f32 %v783, %v784
    %v786 = vld [vmem:[#allocation2 + $0x25] ss:$0 sm:$0xff]
    %v787 = vld [vmem:[#allocation2 + $0x2d] ss:$0 sm:$0xff]
    %v788 = vmax.f32 %v786, %v787
    %v789 = vmax.f32 %v785, %v788
    %790 = vst.msk [vmem:[#allocation3 + $0xa] sm:$0x1] %vm709, %v789
    %v791 = vld [vmem:[#allocation2 + $0x26] ss:$0 sm:$0xff]
    %v792 = vld [vmem:[#allocation2 + $0x2e] ss:$0 sm:$0xff]
    %v793 = vmax.f32 %v791, %v792
    %v794 = vld [vmem:[#allocation2 + $0x27] ss:$0 sm:$0xff]
    %v795 = vld [vmem:[#allocation2 + $0x2f] ss:$0 sm:$0xff]
    %v796 = vmax.f32 %v794, %v795
    %v797 = vmax.f32 %v793, %v796
    %798 = vst.msk [vmem:[#allocation3 + $0xb] sm:$0x1] %vm709, %v797
    %v799 = vld [vmem:[#allocation2 + $0x30] ss:$0 sm:$0xff]
    %v800 = vld [vmem:[#allocation2 + $0x38] ss:$0 sm:$0xff]
    %v801 = vmax.f32 %v799, %v800
    %v802 = vld [vmem:[#allocation2 + $0x31] ss:$0 sm:$0xff]
    %v803 = vld [vmem:[#allocation2 + $0x39] ss:$0 sm:$0xff]
    %v804 = vmax.f32 %v802, %v803
    %v805 = vmax.f32 %v801, %v804
    %806 = vst.msk [vmem:[#allocation3 + $0xc] sm:$0x1] %vm709, %v805
    %v807 = vld [vmem:[#allocation2 + $0x32] ss:$0 sm:$0xff]
    %v808 = vld [vmem:[#allocation2 + $0x3a] ss:$0 sm:$0xff]
    %v809 = vmax.f32 %v807, %v808
    %v810 = vld [vmem:[#allocation2 + $0x33] ss:$0 sm:$0xff]
    %v811 = vld [vmem:[#allocation2 + $0x3b] ss:$0 sm:$0xff]
    %v812 = vmax.f32 %v810, %v811
    %v813 = vmax.f32 %v809, %v812
    %814 = vst.msk [vmem:[#allocation3 + $0xd] sm:$0x1] %vm709, %v813
    %v815 = vld [vmem:[#allocation3] sm:$0xff]
    %v816 = vld [vmem:[#allocation3 + $0x8] sm:$0x3]
    %v817 = vld [vmem:[#allocation9] sm:$0xff]
    %v818 = vld [vmem:[#allocation9 + $0x8] sm:$0xff]
    %v819 = vld [vmem:[#allocation9 + $0x10] sm:$0xff]
    %v820 = vld [vmem:[#allocation9 + $0x18] sm:$0xff]
    %v821 = vld [vmem:[#allocation9 + $0x20] sm:$0xff]
    %v822 = vld [vmem:[#allocation9 + $0x28] sm:$0xff]
    %v823 = vld [vmem:[#allocation9 + $0x30] sm:$0xff]
    %v824 = vld [vmem:[#allocation9 + $0x38] sm:$0xff]
    %v825 = vld [vmem:[#allocation9 + $0x40] sm:$0xff]
    %v826 = vld [vmem:[#allocation9 + $0x48] sm:$0xff]
    %v827 = vld [vmem:[#allocation9 + $0x50] sm:$0xff]
    %v828 = vld [vmem:[#allocation9 + $0x58] sm:$0xff]
    %v829 = vld [vmem:[#allocation9 + $0x60] sm:$0xff]
    %v830 = vld [vmem:[#allocation9 + $0x68] sm:$0xff]
    %v831 = vld [vmem:[#allocation9 + $0x70] sm:$0xff]
    %v832 = vld [vmem:[#allocation9 + $0x78] sm:$0xff]
    %v833 = vld [vmem:[#allocation9 + $0x80] sm:$0xff]
    %v834 = vld [vmem:[#allocation9 + $0x88] sm:$0xff]
    %v835 = vld [vmem:[#allocation9 + $0x90] sm:$0xff]
    %v836 = vld [vmem:[#allocation9 + $0x98] sm:$0xff]
    %v837 = vld [vmem:[#allocation9 + $0xa0] sm:$0xf]
    %v838 = vld [vmem:[#allocation9 + $0xa8] sm:$0xf]
    %v839 = vld [vmem:[#allocation3 + $0x1] sm:$0xff]
    %v840 = vld [vmem:[#allocation3 + $0x9] sm:$0x3]
    %s841 = scalar_lea.vmem [#allocation9], 176
    %v842 = vld [vmem:[%s841] sm:$0xff]
    %v843 = vld [vmem:[%s841 + $0x8] sm:$0xff]
    %v844 = vld [vmem:[%s841 + $0x10] sm:$0xff]
    %v845 = vld [vmem:[%s841 + $0x18] sm:$0xff]
    %v846 = vld [vmem:[%s841 + $0x20] sm:$0xff]
    %v847 = vld [vmem:[%s841 + $0x28] sm:$0xff]
    %v848 = vld [vmem:[%s841 + $0x30] sm:$0xff]
    %v849 = vld [vmem:[%s841 + $0x38] sm:$0xff]
    %v850 = vld [vmem:[%s841 + $0x40] sm:$0xff]
    %v851 = vld [vmem:[%s841 + $0x48] sm:$0xff]
    %v852 = vld [vmem:[%s841 + $0x50] sm:$0xff]
    %v853 = vld [vmem:[%s841 + $0x58] sm:$0xff]
    %v854 = vld [vmem:[%s841 + $0x60] sm:$0xff]
    %v855 = vld [vmem:[%s841 + $0x68] sm:$0xff]
    %v856 = vld [vmem:[%s841 + $0x70] sm:$0xff]
    %v857 = vld [vmem:[%s841 + $0x78] sm:$0xff]
    %v858 = vld [vmem:[%s841 + $0x80] sm:$0xff]
    %v859 = vld [vmem:[%s841 + $0x88] sm:$0xff]
    %v860 = vld [vmem:[%s841 + $0x90] sm:$0xff]
    %v861 = vld [vmem:[%s841 + $0x98] sm:$0xff]
    %v862 = vld [vmem:[%s841 + $0xa0] sm:$0xf]
    %v863 = vld [vmem:[%s841 + $0xa8] sm:$0xf]
    %vm864 = vcmask 687104
    %v866 = vsel %vm864, %v839, 0
    %v869 = vsel %vm864, %v840, 0
    %vm871 = vcmask 1043456
    %v873 = vsel %vm871, %v862, 0
    %v876 = vsel %vm871, %v863, 0
    %878 = vmatprep.subr.mxu0 %v843
    %879 = vmatpush1.msra.mxu0 %v842
    %880 = vmatprep.subr.mxu0 %v845
    %881 = vmatpush1.msra.mxu0 %v844
    %882 = vmatprep.subr.mxu0 %v847
    %883 = vmatpush1.msra.mxu0 %v846
    %884 = vmatprep.subr.mxu0 %v849
    %885 = vmatpush1.msra.mxu0 %v848
    %886 = vmatprep.subr.mxu0 %v851
    %887 = vmatpush1.msra.mxu0 %v850
    %888 = vmatprep.subr.mxu0 %v853
    %889 = vmatpush1.msra.mxu0 %v852
    %890 = vmatprep.subr.mxu0 %v855
    %891 = vmatpush1.msra.mxu0 %v854
    %892 = vmatprep.subr.mxu0 %v857
    %893 = vmatpush1.msra.mxu0 %v856
    %894 = vmatprep.subr.mxu0 %v859
    %895 = vmatpush1.msra.mxu0 %v858
    %896 = vmatprep.subr.mxu0 %v861
    %897 = vmatpush1.msra.mxu0 %v860
    %898 = vmatprep.subr.mxu0 %v876
    %899 = vmatpush1.msra.mxu0 %v873
    %900 = vmatprep.subr.mxu0 0.0
    %901 = vmatpush1.msra.mxu0 0.0
    %902 = vmatprep.subr.mxu0 0.0
    %903 = vmatpush1.msra.mxu0 0.0
    %904 = vmatprep.subr.mxu0 0.0
    %905 = vmatpush1.msra.mxu0 0.0
    %906 = vmatprep.subr.mxu0 0.0
    %907 = vmatpush1.msra.mxu0 0.0
    %908 = vmatprep.subr.mxu0 0.0
    %909 = vmatpush1.msra.mxu0 0.0
    %910 = vmatprep.subr.mxu0 0.0
    %911 = vmatpush1.msra.mxu0 0.0
    %912 = vmatprep.subr.mxu0 0.0
    %913 = vmatpush1.msra.mxu0 0.0
    %914 = vmatprep.subr.mxu0 0.0
    %915 = vmatpush1.msra.mxu0 0.0
    %916 = vmatprep.subr.mxu0 0.0
    %917 = vmatpush1.msra.mxu0 0.0
    %918 = vmatprep.subr.mxu0 0.0
    %919 = vmatpush1.msra.mxu0 0.0
    %920 = vmatprep.subr.mxu0 0.0
    %921 = vmatpush1.msra.mxu0 0.0
    %922 = vmatprep.subr.mxu0 0.0
    %923 = vmatpush1.msra.mxu0 0.0
    %924 = vmatprep.subr.mxu0 0.0
    %925 = vmatpush1.msra.mxu0 0.0
    %926 = vmatprep.subr.mxu0 0.0
    %927 = vmatpush1.msra.mxu0 0.0
    %928 = vmatprep.subr.mxu0 0.0
    %929 = vmatpush1.msra.mxu0 0.0
    %930 = vmatprep.subr.mxu0 0.0
    %931 = vmatpush1.msra.mxu0 0.0
    %932 = vmatprep.subr.mxu0 0.0
    %933 = vmatpush1.msra.mxu0 0.0
    %934 = vmatprep.subr.mxu0 0.0
    %935 = vmatpush1.msra.mxu0 0.0
    %936 = vmatprep.subr.mxu0 0.0
    %937 = vmatpush1.msra.mxu0 0.0
    %938 = vmatprep.subr.mxu0 0.0
    %939 = vmatpush1.msra.mxu0 0.0
    %940 = vmatprep.subr.mxu0 0.0
    %941 = vmatpush1.msra.mxu0 0.0
    %942 = vmatprep.mubr.f32.mxu0 0.0
    %943 = vmatmul.mubr.f32.gmra.mrb[0].mxu0 %v866
    %v944 = vpop.f32.mrb[0].mxu0
    %v945 = vadd.f32 0.0, %v944
    %v946 = vpop.f32.mrb[0].mxu0
    %v947 = vadd.f32 0.0, %v946
    %948 = vmatprep.mubr.f32.mxu0 0.0
    %949 = vmatmul.mubr.f32.gmra.mrb[0].mxu0 %v869
    %v950 = vpop.f32.mrb[0].mxu0
    %v951 = vadd.f32 0.0, %v950
    %v952 = vpop.f32.mrb[0].mxu0
    %v953 = vadd.f32 0.0, %v952
    %954 = vdwg.mxu0
    %v956 = vsel %vm864, %v815, 0
    %v959 = vsel %vm864, %v816, 0
    %v962 = vsel %vm871, %v837, 0
    %v965 = vsel %vm871, %v838, 0
    %967 = vmatprep.subr.mxu0 %v818
    %968 = vmatpush1.msra.mxu0 %v817
    %969 = vmatprep.subr.mxu0 %v820
    %970 = vmatpush1.msra.mxu0 %v819
    %971 = vmatprep.subr.mxu0 %v822
    %972 = vmatpush1.msra.mxu0 %v821
    %973 = vmatprep.subr.mxu0 %v824
    %974 = vmatpush1.msra.mxu0 %v823
    %975 = vmatprep.subr.mxu0 %v826
    %976 = vmatpush1.msra.mxu0 %v825
    %977 = vmatprep.subr.mxu0 %v828
    %978 = vmatpush1.msra.mxu0 %v827
    %979 = vmatprep.subr.mxu0 %v830
    %980 = vmatpush1.msra.mxu0 %v829
    %981 = vmatprep.subr.mxu0 %v832
    %982 = vmatpush1.msra.mxu0 %v831
    %983 = vmatprep.subr.mxu0 %v834
    %984 = vmatpush1.msra.mxu0 %v833
    %985 = vmatprep.subr.mxu0 %v836
    %986 = vmatpush1.msra.mxu0 %v835
    %987 = vmatprep.subr.mxu0 %v965
    %988 = vmatpush1.msra.mxu0 %v962
    %989 = vmatprep.subr.mxu0 0.0
    %990 = vmatpush1.msra.mxu0 0.0
    %991 = vmatprep.subr.mxu0 0.0
    %992 = vmatpush1.msra.mxu0 0.0
    %993 = vmatprep.subr.mxu0 0.0
    %994 = vmatpush1.msra.mxu0 0.0
    %995 = vmatprep.subr.mxu0 0.0
    %996 = vmatpush1.msra.mxu0 0.0
    %997 = vmatprep.subr.mxu0 0.0
    %998 = vmatpush1.msra.mxu0 0.0
    %999 = vmatprep.subr.mxu0 0.0
    %1000 = vmatpush1.msra.mxu0 0.0
    %1001 = vmatprep.subr.mxu0 0.0
    %1002 = vmatpush1.msra.mxu0 0.0
    %1003 = vmatprep.subr.mxu0 0.0
    %1004 = vmatpush1.msra.mxu0 0.0
    %1005 = vmatprep.subr.mxu0 0.0
    %1006 = vmatpush1.msra.mxu0 0.0
    %1007 = vmatprep.subr.mxu0 0.0
    %1008 = vmatpush1.msra.mxu0 0.0
    %1009 = vmatprep.subr.mxu0 0.0
    %1010 = vmatpush1.msra.mxu0 0.0
    %1011 = vmatprep.subr.mxu0 0.0
    %1012 = vmatpush1.msra.mxu0 0.0
    %1013 = vmatprep.subr.mxu0 0.0
    %1014 = vmatpush1.msra.mxu0 0.0
    %1015 = vmatprep.subr.mxu0 0.0
    %1016 = vmatpush1.msra.mxu0 0.0
    %1017 = vmatprep.subr.mxu0 0.0
    %1018 = vmatpush1.msra.mxu0 0.0
    %1019 = vmatprep.subr.mxu0 0.0
    %1020 = vmatpush1.msra.mxu0 0.0
    %1021 = vmatprep.subr.mxu0 0.0
    %1022 = vmatpush1.msra.mxu0 0.0
    %1023 = vmatprep.subr.mxu0 0.0
    %1024 = vmatpush1.msra.mxu0 0.0
    %1025 = vmatprep.subr.mxu0 0.0
    %1026 = vmatpush1.msra.mxu0 0.0
    %1027 = vmatprep.subr.mxu0 0.0
    %1028 = vmatpush1.msra.mxu0 0.0
    %1029 = vmatprep.subr.mxu0 0.0
    %1030 = vmatpush1.msra.mxu0 0.0
    %1031 = vmatprep.mubr.f32.mxu0 0.0
    %1032 = vmatmul.mubr.f32.gmra.mrb[0].mxu0 %v956
    %v1033 = vpop.f32.mrb[0].mxu0
    %v1034 = vadd.f32 %v945, %v1033
    %v1035 = vpop.f32.mrb[0].mxu0
    %v1036 = vadd.f32 %v947, %v1035
    %1037 = vmatprep.mubr.f32.mxu0 0.0
    %1038 = vmatmul.mubr.f32.gmra.mrb[0].mxu0 %v959
    %v1039 = vpop.f32.mrb[0].mxu0
    %v1040 = vadd.f32 %v951, %v1039
    %v1041 = vpop.f32.mrb[0].mxu0
    %v1042 = vadd.f32 %v953, %v1041
    %1043 = vdwg.mxu0
    %v1044 = vld [vmem:[#allocation3 + $0x2] sm:$0xff]
    %v1045 = vld [vmem:[#allocation3 + $0xa] sm:$0x3]
    %s1046 = scalar_lea.vmem [#allocation9], 352
    %v1047 = vld [vmem:[%s1046] sm:$0xff]
    %v1048 = vld [vmem:[%s1046 + $0x8] sm:$0xff]
    %v1049 = vld [vmem:[%s1046 + $0x10] sm:$0xff]
    %v1050 = vld [vmem:[%s1046 + $0x18] sm:$0xff]
    %v1051 = vld [vmem:[%s1046 + $0x20] sm:$0xff]
    %v1052 = vld [vmem:[%s1046 + $0x28] sm:$0xff]
    %v1053 = vld [vmem:[%s1046 + $0x30] sm:$0xff]
    %v1054 = vld [vmem:[%s1046 + $0x38] sm:$0xff]
    %v1055 = vld [vmem:[%s1046 + $0x40] sm:$0xff]
    %v1056 = vld [vmem:[%s1046 + $0x48] sm:$0xff]
    %v1057 = vld [vmem:[%s1046 + $0x50] sm:$0xff]
    %v1058 = vld [vmem:[%s1046 + $0x58] sm:$0xff]
    %v1059 = vld [vmem:[%s1046 + $0x60] sm:$0xff]
    %v1060 = vld [vmem:[%s1046 + $0x68] sm:$0xff]
    %v1061 = vld [vmem:[%s1046 + $0x70] sm:$0xff]
    %v1062 = vld [vmem:[%s1046 + $0x78] sm:$0xff]
    %v1063 = vld [vmem:[%s1046 + $0x80] sm:$0xff]
    %v1064 = vld [vmem:[%s1046 + $0x88] sm:$0xff]
    %v1065 = vld [vmem:[%s1046 + $0x90] sm:$0xff]
    %v1066 = vld [vmem:[%s1046 + $0x98] sm:$0xff]
    %v1067 = vld [vmem:[%s1046 + $0xa0] sm:$0xf]
    %v1068 = vld [vmem:[%s1046 + $0xa8] sm:$0xf]
    %v1070 = vsel %vm864, %v1044, 0
    %v1073 = vsel %vm864, %v1045, 0
    %v1076 = vsel %vm871, %v1067, 0
    %v1079 = vsel %vm871, %v1068, 0
    %1081 = vmatprep.subr.mxu0 %v1048
    %1082 = vmatpush1.msra.mxu0 %v1047
    %1083 = vmatprep.subr.mxu0 %v1050
    %1084 = vmatpush1.msra.mxu0 %v1049
    %1085 = vmatprep.subr.mxu0 %v1052
    %1086 = vmatpush1.msra.mxu0 %v1051
    %1087 = vmatprep.subr.mxu0 %v1054
    %1088 = vmatpush1.msra.mxu0 %v1053
    %1089 = vmatprep.subr.mxu0 %v1056
    %1090 = vmatpush1.msra.mxu0 %v1055
    %1091 = vmatprep.subr.mxu0 %v1058
    %1092 = vmatpush1.msra.mxu0 %v1057
    %1093 = vmatprep.subr.mxu0 %v1060
    %1094 = vmatpush1.msra.mxu0 %v1059
    %1095 = vmatprep.subr.mxu0 %v1062
    %1096 = vmatpush1.msra.mxu0 %v1061
    %1097 = vmatprep.subr.mxu0 %v1064
    %1098 = vmatpush1.msra.mxu0 %v1063
    %1099 = vmatprep.subr.mxu0 %v1066
    %1100 = vmatpush1.msra.mxu0 %v1065
    %1101 = vmatprep.subr.mxu0 %v1079
    %1102 = vmatpush1.msra.mxu0 %v1076
    %1103 = vmatprep.subr.mxu0 0.0
    %1104 = vmatpush1.msra.mxu0 0.0
    %1105 = vmatprep.subr.mxu0 0.0
    %1106 = vmatpush1.msra.mxu0 0.0
    %1107 = vmatprep.subr.mxu0 0.0
    %1108 = vmatpush1.msra.mxu0 0.0
    %1109 = vmatprep.subr.mxu0 0.0
    %1110 = vmatpush1.msra.mxu0 0.0
    %1111 = vmatprep.subr.mxu0 0.0
    %1112 = vmatpush1.msra.mxu0 0.0
    %1113 = vmatprep.subr.mxu0 0.0
    %1114 = vmatpush1.msra.mxu0 0.0
    %1115 = vmatprep.subr.mxu0 0.0
    %1116 = vmatpush1.msra.mxu0 0.0
    %1117 = vmatprep.subr.mxu0 0.0
    %1118 = vmatpush1.msra.mxu0 0.0
    %1119 = vmatprep.subr.mxu0 0.0
    %1120 = vmatpush1.msra.mxu0 0.0
    %1121 = vmatprep.subr.mxu0 0.0
    %1122 = vmatpush1.msra.mxu0 0.0
    %1123 = vmatprep.subr.mxu0 0.0
    %1124 = vmatpush1.msra.mxu0 0.0
    %1125 = vmatprep.subr.mxu0 0.0
    %1126 = vmatpush1.msra.mxu0 0.0
    %1127 = vmatprep.subr.mxu0 0.0
    %1128 = vmatpush1.msra.mxu0 0.0
    %1129 = vmatprep.subr.mxu0 0.0
    %1130 = vmatpush1.msra.mxu0 0.0
    %1131 = vmatprep.subr.mxu0 0.0
    %1132 = vmatpush1.msra.mxu0 0.0
    %1133 = vmatprep.subr.mxu0 0.0
    %1134 = vmatpush1.msra.mxu0 0.0
    %1135 = vmatprep.subr.mxu0 0.0
    %1136 = vmatpush1.msra.mxu0 0.0
    %1137 = vmatprep.subr.mxu0 0.0
    %1138 = vmatpush1.msra.mxu0 0.0
    %1139 = vmatprep.subr.mxu0 0.0
    %1140 = vmatpush1.msra.mxu0 0.0
    %1141 = vmatprep.subr.mxu0 0.0
    %1142 = vmatpush1.msra.mxu0 0.0
    %1143 = vmatprep.subr.mxu0 0.0
    %1144 = vmatpush1.msra.mxu0 0.0
    %1145 = vmatprep.mubr.f32.mxu0 0.0
    %1146 = vmatmul.mubr.f32.gmra.mrb[0].mxu0 %v1070
    %v1147 = vpop.f32.mrb[0].mxu0
    %v1148 = vadd.f32 0.0, %v1147
    %v1149 = vpop.f32.mrb[0].mxu0
    %v1150 = vadd.f32 0.0, %v1149
    %1151 = vmatprep.mubr.f32.mxu0 0.0
    %1152 = vmatmul.mubr.f32.gmra.mrb[0].mxu0 %v1073
    %v1153 = vpop.f32.mrb[0].mxu0
    %v1154 = vadd.f32 0.0, %v1153
    %v1155 = vpop.f32.mrb[0].mxu0
    %v1156 = vadd.f32 0.0, %v1155
    %1157 = vdwg.mxu0
    %v1158 = vadd.f32 %v1034, %v1148
    %v1159 = vadd.f32 %v1036, %v1150
    %v1160 = vadd.f32 %v1040, %v1154
    %v1161 = vadd.f32 %v1042, %v1156
    %v1162 = vld [vmem:[#allocation3 + $0x3] sm:$0xff]
    %v1163 = vld [vmem:[#allocation3 + $0xb] sm:$0x3]
    %s1164 = scalar_lea.vmem [#allocation9], 528
    %v1165 = vld [vmem:[%s1164] sm:$0xff]
    %v1166 = vld [vmem:[%s1164 + $0x8] sm:$0xff]
    %v1167 = vld [vmem:[%s1164 + $0x10] sm:$0xff]
    %v1168 = vld [vmem:[%s1164 + $0x18] sm:$0xff]
    %v1169 = vld [vmem:[%s1164 + $0x20] sm:$0xff]
    %v1170 = vld [vmem:[%s1164 + $0x28] sm:$0xff]
    %v1171 = vld [vmem:[%s1164 + $0x30] sm:$0xff]
    %v1172 = vld [vmem:[%s1164 + $0x38] sm:$0xff]
    %v1173 = vld [vmem:[%s1164 + $0x40] sm:$0xff]
    %v1174 = vld [vmem:[%s1164 + $0x48] sm:$0xff]
    %v1175 = vld [vmem:[%s1164 + $0x50] sm:$0xff]
    %v1176 = vld [vmem:[%s1164 + $0x58] sm:$0xff]
    %v1177 = vld [vmem:[%s1164 + $0x60] sm:$0xff]
    %v1178 = vld [vmem:[%s1164 + $0x68] sm:$0xff]
    %v1179 = vld [vmem:[%s1164 + $0x70] sm:$0xff]
    %v1180 = vld [vmem:[%s1164 + $0x78] sm:$0xff]
    %v1181 = vld [vmem:[%s1164 + $0x80] sm:$0xff]
    %v1182 = vld [vmem:[%s1164 + $0x88] sm:$0xff]
    %v1183 = vld [vmem:[%s1164 + $0x90] sm:$0xff]
    %v1184 = vld [vmem:[%s1164 + $0x98] sm:$0xff]
    %v1185 = vld [vmem:[%s1164 + $0xa0] sm:$0xf]
    %v1186 = vld [vmem:[%s1164 + $0xa8] sm:$0xf]
    %v1188 = vsel %vm864, %v1162, 0
    %v1191 = vsel %vm864, %v1163, 0
    %v1194 = vsel %vm871, %v1185, 0
    %v1197 = vsel %vm871, %v1186, 0
    %1199 = vmatprep.subr.mxu0 %v1166
    %1200 = vmatpush1.msra.mxu0 %v1165
    %1201 = vmatprep.subr.mxu0 %v1168
    %1202 = vmatpush1.msra.mxu0 %v1167
    %1203 = vmatprep.subr.mxu0 %v1170
    %1204 = vmatpush1.msra.mxu0 %v1169
    %1205 = vmatprep.subr.mxu0 %v1172
    %1206 = vmatpush1.msra.mxu0 %v1171
    %1207 = vmatprep.subr.mxu0 %v1174
    %1208 = vmatpush1.msra.mxu0 %v1173
    %1209 = vmatprep.subr.mxu0 %v1176
    %1210 = vmatpush1.msra.mxu0 %v1175
    %1211 = vmatprep.subr.mxu0 %v1178
    %1212 = vmatpush1.msra.mxu0 %v1177
    %1213 = vmatprep.subr.mxu0 %v1180
    %1214 = vmatpush1.msra.mxu0 %v1179
    %1215 = vmatprep.subr.mxu0 %v1182
    %1216 = vmatpush1.msra.mxu0 %v1181
    %1217 = vmatprep.subr.mxu0 %v1184
    %1218 = vmatpush1.msra.mxu0 %v1183
    %1219 = vmatprep.subr.mxu0 %v1197
    %1220 = vmatpush1.msra.mxu0 %v1194
    %1221 = vmatprep.subr.mxu0 0.0
    %1222 = vmatpush1.msra.mxu0 0.0
    %1223 = vmatprep.subr.mxu0 0.0
    %1224 = vmatpush1.msra.mxu0 0.0
    %1225 = vmatprep.subr.mxu0 0.0
    %1226 = vmatpush1.msra.mxu0 0.0
    %1227 = vmatprep.subr.mxu0 0.0
    %1228 = vmatpush1.msra.mxu0 0.0
    %1229 = vmatprep.subr.mxu0 0.0
    %1230 = vmatpush1.msra.mxu0 0.0
    %1231 = vmatprep.subr.mxu0 0.0
    %1232 = vmatpush1.msra.mxu0 0.0
    %1233 = vmatprep.subr.mxu0 0.0
    %1234 = vmatpush1.msra.mxu0 0.0
    %1235 = vmatprep.subr.mxu0 0.0
    %1236 = vmatpush1.msra.mxu0 0.0
    %1237 = vmatprep.subr.mxu0 0.0
    %1238 = vmatpush1.msra.mxu0 0.0
    %1239 = vmatprep.subr.mxu0 0.0
    %1240 = vmatpush1.msra.mxu0 0.0
    %1241 = vmatprep.subr.mxu0 0.0
    %1242 = vmatpush1.msra.mxu0 0.0
    %1243 = vmatprep.subr.mxu0 0.0
    %1244 = vmatpush1.msra.mxu0 0.0
    %1245 = vmatprep.subr.mxu0 0.0
    %1246 = vmatpush1.msra.mxu0 0.0
    %1247 = vmatprep.subr.mxu0 0.0
    %1248 = vmatpush1.msra.mxu0 0.0
    %1249 = vmatprep.subr.mxu0 0.0
    %1250 = vmatpush1.msra.mxu0 0.0
    %1251 = vmatprep.subr.mxu0 0.0
    %1252 = vmatpush1.msra.mxu0 0.0
    %1253 = vmatprep.subr.mxu0 0.0
    %1254 = vmatpush1.msra.mxu0 0.0
    %1255 = vmatprep.subr.mxu0 0.0
    %1256 = vmatpush1.msra.mxu0 0.0
    %1257 = vmatprep.subr.mxu0 0.0
    %1258 = vmatpush1.msra.mxu0 0.0
    %1259 = vmatprep.subr.mxu0 0.0
    %1260 = vmatpush1.msra.mxu0 0.0
    %1261 = vmatprep.subr.mxu0 0.0
    %1262 = vmatpush1.msra.mxu0 0.0
    %1263 = vmatprep.mubr.f32.mxu0 0.0
    %1264 = vmatmul.mubr.f32.gmra.mrb[0].mxu0 %v1188
    %v1265 = vpop.f32.mrb[0].mxu0
    %v1266 = vadd.f32 0.0, %v1265
    %v1267 = vpop.f32.mrb[0].mxu0
    %v1268 = vadd.f32 0.0, %v1267
    %1269 = vmatprep.mubr.f32.mxu0 0.0
    %1270 = vmatmul.mubr.f32.gmra.mrb[0].mxu0 %v1191
    %v1271 = vpop.f32.mrb[0].mxu0
    %v1272 = vadd.f32 0.0, %v1271
    %v1273 = vpop.f32.mrb[0].mxu0
    %v1274 = vadd.f32 0.0, %v1273
    %1275 = vdwg.mxu0
    %v1276 = vadd.f32 %v1158, %v1266
    %v1277 = vadd.f32 %v1159, %v1268
    %v1278 = vadd.f32 %v1160, %v1272
    %v1279 = vadd.f32 %v1161, %v1274
    %v1280 = vld [vmem:[#allocation3 + $0x4] sm:$0xff]
    %v1281 = vld [vmem:[#allocation3 + $0xc] sm:$0x3]
    %s1282 = scalar_lea.vmem [#allocation9], 704
    %v1283 = vld [vmem:[%s1282] sm:$0xff]
    %v1284 = vld [vmem:[%s1282 + $0x8] sm:$0xff]
    %v1285 = vld [vmem:[%s1282 + $0x10] sm:$0xff]
    %v1286 = vld [vmem:[%s1282 + $0x18] sm:$0xff]
    %v1287 = vld [vmem:[%s1282 + $0x20] sm:$0xff]
    %v1288 = vld [vmem:[%s1282 + $0x28] sm:$0xff]
    %v1289 = vld [vmem:[%s1282 + $0x30] sm:$0xff]
    %v1290 = vld [vmem:[%s1282 + $0x38] sm:$0xff]
    %v1291 = vld [vmem:[%s1282 + $0x40] sm:$0xff]
    %v1292 = vld [vmem:[%s1282 + $0x48] sm:$0xff]
    %v1293 = vld [vmem:[%s1282 + $0x50] sm:$0xff]
    %v1294 = vld [vmem:[%s1282 + $0x58] sm:$0xff]
    %v1295 = vld [vmem:[%s1282 + $0x60] sm:$0xff]
    %v1296 = vld [vmem:[%s1282 + $0x68] sm:$0xff]
    %v1297 = vld [vmem:[%s1282 + $0x70] sm:$0xff]
    %v1298 = vld [vmem:[%s1282 + $0x78] sm:$0xff]
    %v1299 = vld [vmem:[%s1282 + $0x80] sm:$0xff]
    %v1300 = vld [vmem:[%s1282 + $0x88] sm:$0xff]
    %v1301 = vld [vmem:[%s1282 + $0x90] sm:$0xff]
    %v1302 = vld [vmem:[%s1282 + $0x98] sm:$0xff]
    %v1303 = vld [vmem:[%s1282 + $0xa0] sm:$0xf]
    %v1304 = vld [vmem:[%s1282 + $0xa8] sm:$0xf]
    %v1306 = vsel %vm864, %v1280, 0
    %v1309 = vsel %vm864, %v1281, 0
    %v1312 = vsel %vm871, %v1303, 0
    %v1315 = vsel %vm871, %v1304, 0
    %1317 = vmatprep.subr.mxu0 %v1284
    %1318 = vmatpush1.msra.mxu0 %v1283
    %1319 = vmatprep.subr.mxu0 %v1286
    %1320 = vmatpush1.msra.mxu0 %v1285
    %1321 = vmatprep.subr.mxu0 %v1288
    %1322 = vmatpush1.msra.mxu0 %v1287
    %1323 = vmatprep.subr.mxu0 %v1290
    %1324 = vmatpush1.msra.mxu0 %v1289
    %1325 = vmatprep.subr.mxu0 %v1292
    %1326 = vmatpush1.msra.mxu0 %v1291
    %1327 = vmatprep.subr.mxu0 %v1294
    %1328 = vmatpush1.msra.mxu0 %v1293
    %1329 = vmatprep.subr.mxu0 %v1296
    %1330 = vmatpush1.msra.mxu0 %v1295
    %1331 = vmatprep.subr.mxu0 %v1298
    %1332 = vmatpush1.msra.mxu0 %v1297
    %1333 = vmatprep.subr.mxu0 %v1300
    %1334 = vmatpush1.msra.mxu0 %v1299
    %1335 = vmatprep.subr.mxu0 %v1302
    %1336 = vmatpush1.msra.mxu0 %v1301
    %1337 = vmatprep.subr.mxu0 %v1315
    %1338 = vmatpush1.msra.mxu0 %v1312
    %1339 = vmatprep.subr.mxu0 0.0
    %1340 = vmatpush1.msra.mxu0 0.0
    %1341 = vmatprep.subr.mxu0 0.0
    %1342 = vmatpush1.msra.mxu0 0.0
    %1343 = vmatprep.subr.mxu0 0.0
    %1344 = vmatpush1.msra.mxu0 0.0
    %1345 = vmatprep.subr.mxu0 0.0
    %1346 = vmatpush1.msra.mxu0 0.0
    %1347 = vmatprep.subr.mxu0 0.0
    %1348 = vmatpush1.msra.mxu0 0.0
    %1349 = vmatprep.subr.mxu0 0.0
    %1350 = vmatpush1.msra.mxu0 0.0
    %1351 = vmatprep.subr.mxu0 0.0
    %1352 = vmatpush1.msra.mxu0 0.0
    %1353 = vmatprep.subr.mxu0 0.0
    %1354 = vmatpush1.msra.mxu0 0.0
    %1355 = vmatprep.subr.mxu0 0.0
    %1356 = vmatpush1.msra.mxu0 0.0
    %1357 = vmatprep.subr.mxu0 0.0
    %1358 = vmatpush1.msra.mxu0 0.0
    %1359 = vmatprep.subr.mxu0 0.0
    %1360 = vmatpush1.msra.mxu0 0.0
    %1361 = vmatprep.subr.mxu0 0.0
    %1362 = vmatpush1.msra.mxu0 0.0
    %1363 = vmatprep.subr.mxu0 0.0
    %1364 = vmatpush1.msra.mxu0 0.0
    %1365 = vmatprep.subr.mxu0 0.0
    %1366 = vmatpush1.msra.mxu0 0.0
    %1367 = vmatprep.subr.mxu0 0.0
    %1368 = vmatpush1.msra.mxu0 0.0
    %1369 = vmatprep.subr.mxu0 0.0
    %1370 = vmatpush1.msra.mxu0 0.0
    %1371 = vmatprep.subr.mxu0 0.0
    %1372 = vmatpush1.msra.mxu0 0.0
    %1373 = vmatprep.subr.mxu0 0.0
    %1374 = vmatpush1.msra.mxu0 0.0
    %1375 = vmatprep.subr.mxu0 0.0
    %1376 = vmatpush1.msra.mxu0 0.0
    %1377 = vmatprep.subr.mxu0 0.0
    %1378 = vmatpush1.msra.mxu0 0.0
    %1379 = vmatprep.subr.mxu0 0.0
    %1380 = vmatpush1.msra.mxu0 0.0
    %1381 = vmatprep.mubr.f32.mxu0 0.0
    %1382 = vmatmul.mubr.f32.gmra.mrb[0].mxu0 %v1306
    %v1383 = vpop.f32.mrb[0].mxu0
    %v1384 = vadd.f32 0.0, %v1383
    %v1385 = vpop.f32.mrb[0].mxu0
    %v1386 = vadd.f32 0.0, %v1385
    %1387 = vmatprep.mubr.f32.mxu0 0.0
    %1388 = vmatmul.mubr.f32.gmra.mrb[0].mxu0 %v1309
    %v1389 = vpop.f32.mrb[0].mxu0
    %v1390 = vadd.f32 0.0, %v1389
    %v1391 = vpop.f32.mrb[0].mxu0
    %v1392 = vadd.f32 0.0, %v1391
    %1393 = vdwg.mxu0
    %v1394 = vadd.f32 %v1276, %v1384
    %v1395 = vadd.f32 %v1277, %v1386
    %v1396 = vadd.f32 %v1278, %v1390
    %v1397 = vadd.f32 %v1279, %v1392
    %v1398 = vld [vmem:[%s4] sm:$0x3]
    %v1400 = vlaneseq
    %v1401 = vshrl.u32 %v1400, 7
    %v1402 = vsub.s32 0, %v1401
    %v1403 = vrot.slane %v1398, %v1402
    %v1404 = vlaneseq
    %v1405 = vshrl.u32 %v1404, 7
    %v1406 = vsub.s32 1, %v1405
    %v1407 = vrot.slane %v1398, %v1406
    %v1410 = vadd.f32 %v1394, %v1403
    %v1411 = vadd.f32 %v1395, %v1407
    %v1412 = vadd.f32 %v1396, %v1403
    %v1413 = vadd.f32 %v1397, %v1407
    %1414 = vst [vmem:[#allocation4] sm:$0xff] %v1410
    %1415 = vst [vmem:[#allocation4 + $0x8] sm:$0xff] %v1411
    %1416 = vst [vmem:[#allocation4 + $0x10] sm:$0x3] %v1412
    %1417 = vst [vmem:[#allocation4 + $0x18] sm:$0x3] %v1413
    %v1418 = vld [vmem:[#allocation4] ss:$0 sm:$0xff]
    %v1419 = vld [vmem:[#allocation4 + $0x8] ss:$0 sm:$0xff]
    %v1420 = vmax.f32 %v1418, %v1419
    %v1421 = vld [vmem:[#allocation4 + $0x1] ss:$0 sm:$0xff]
    %v1422 = vld [vmem:[#allocation4 + $0x9] ss:$0 sm:$0xff]
    %v1423 = vmax.f32 %v1421, %v1422
    %v1424 = vmax.f32 %v1420, %v1423
    %vm1425 = vcmask 647168
    %1426 = vst.msk [vmem:[#allocation5] sm:$0x1] %vm1425, %v1424
    %v1427 = vld [vmem:[#allocation4 + $0x2] ss:$0 sm:$0xff]
    %v1428 = vld [vmem:[#allocation4 + $0xa] ss:$0 sm:$0xff]
    %v1429 = vmax.f32 %v1427, %v1428
    %v1430 = vld [vmem:[#allocation4 + $0x3] ss:$0 sm:$0xff]
    %v1431 = vld [vmem:[#allocation4 + $0xb] ss:$0 sm:$0xff]
    %v1432 = vmax.f32 %v1430, %v1431
    %v1433 = vmax.f32 %v1429, %v1432
    %s1434 = scalar_lea.vmem [#allocation5], 2
    %1435 = vst.msk [vmem:[%s1434] sm:$0x1] %vm1425, %v1433
    %v1436 = vld [vmem:[#allocation4 + $0x4] ss:$0 sm:$0xff]
    %v1437 = vld [vmem:[#allocation4 + $0xc] ss:$0 sm:$0xff]
    %v1438 = vmax.f32 %v1436, %v1437
    %v1439 = vld [vmem:[#allocation4 + $0x5] ss:$0 sm:$0xff]
    %v1440 = vld [vmem:[#allocation4 + $0xd] ss:$0 sm:$0xff]
    %v1441 = vmax.f32 %v1439, %v1440
    %v1442 = vmax.f32 %v1438, %v1441
    %s1443 = scalar_lea.vmem [#allocation5], 4
    %1444 = vst.msk [vmem:[%s1443] sm:$0x1] %vm1425, %v1442
    %v1445 = vld [vmem:[#allocation4 + $0x6] ss:$0 sm:$0xff]
    %v1446 = vld [vmem:[#allocation4 + $0xe] ss:$0 sm:$0xff]
    %v1447 = vmax.f32 %v1445, %v1446
    %v1448 = vld [vmem:[#allocation4 + $0x7] ss:$0 sm:$0xff]
    %v1449 = vld [vmem:[#allocation4 + $0xf] ss:$0 sm:$0xff]
    %v1450 = vmax.f32 %v1448, %v1449
    %v1451 = vmax.f32 %v1447, %v1450
    %s1452 = scalar_lea.vmem [#allocation5], 6
    %1453 = vst.msk [vmem:[%s1452] sm:$0x1] %vm1425, %v1451
    %v1454 = vld [vmem:[#allocation4 + $0x10] ss:$0 sm:$0xff]
    %v1455 = vld [vmem:[#allocation4 + $0x18] ss:$0 sm:$0xff]
    %v1456 = vmax.f32 %v1454, %v1455
    %v1457 = vld [vmem:[#allocation4 + $0x11] ss:$0 sm:$0xff]
    %v1458 = vld [vmem:[#allocation4 + $0x19] ss:$0 sm:$0xff]
    %v1459 = vmax.f32 %v1457, %v1458
    %v1460 = vmax.f32 %v1456, %v1459
    %s1461 = scalar_lea.vmem [#allocation5], 8
    %1462 = vst.msk [vmem:[%s1461] sm:$0x1] %vm1425, %v1460
    %s1463 = scalar_lea.vmem %s0, 32
    %v1464 = vld [vmem:[%s1463] sm:$0xff]
    %v1465 = vld [vmem:[%s1463 + $0x8] sm:$0xff]
    %v1466 = vld [vmem:[%s1463 + $0x10] sm:$0xff]
    %v1467 = vld [vmem:[%s1463 + $0x18] sm:$0xf]
    %v1468 = vld [vmem:[#allocation6] sm:$0xff]
    %v1469 = vld [vmem:[#allocation6 + $0x8] sm:$0xff]
    %v1470 = vld [vmem:[#allocation6 + $0x10] sm:$0xff]
    %v1471 = vld [vmem:[#allocation6 + $0x18] sm:$0xff]
    %v1472 = vld [vmem:[#allocation6 + $0x20] sm:$0xff]
    %v1473 = vld [vmem:[#allocation6 + $0x28] sm:$0xff]
    %v1474 = vld [vmem:[#allocation6 + $0x30] sm:$0xff]
    %v1475 = vld [vmem:[#allocation6 + $0x38] sm:$0xff]
    %v1476 = vld [vmem:[%s1463 + $0x1] sm:$0xff]
    %v1477 = vld [vmem:[%s1463 + $0x9] sm:$0xff]
    %v1478 = vld [vmem:[%s1463 + $0x11] sm:$0xff]
    %v1479 = vld [vmem:[%s1463 + $0x19] sm:$0xf]
    %v1480 = vld [vmem:[%s96] sm:$0xff]
    %v1481 = vld [vmem:[%s96 + $0x8] sm:$0xff]
    %v1482 = vld [vmem:[%s96 + $0x10] sm:$0xff]
    %v1483 = vld [vmem:[%s96 + $0x18] sm:$0xff]
    %v1484 = vld [vmem:[%s96 + $0x20] sm:$0xff]
    %v1485 = vld [vmem:[%s96 + $0x28] sm:$0xff]
    %v1486 = vld [vmem:[%s96 + $0x30] sm:$0xff]
    %v1487 = vld [vmem:[%s96 + $0x38] sm:$0xff]
    %v1489 = vsel %vm105, %v1476, 0
    %v1492 = vsel %vm105, %v1477, 0
    %v1495 = vsel %vm105, %v1478, 0
    %v1498 = vsel %vm105, %v1479, 0
    %1500 = vmatprep.subr.mxu0 %v1481
    %1501 = vmatpush1.msra.mxu0 %v1480
    %1502 = vmatprep.subr.mxu0 %v1483
    %1503 = vmatpush1.msra.mxu0 %v1482
    %1504 = vmatprep.subr.mxu0 %v1485
    %1505 = vmatpush1.msra.mxu0 %v1484
    %1506 = vmatprep.subr.mxu0 %v1487
    %1507 = vmatpush1.msra.mxu0 %v1486
    %1508 = vmatprep.subr.mxu0 0.0
    %1509 = vmatpush1.msra.mxu0 0.0
    %1510 = vmatprep.subr.mxu0 0.0
    %1511 = vmatpush1.msra.mxu0 0.0
    %1512 = vmatprep.subr.mxu0 0.0
    %1513 = vmatpush1.msra.mxu0 0.0
    %1514 = vmatprep.subr.mxu0 0.0
    %1515 = vmatpush1.msra.mxu0 0.0
    %1516 = vmatprep.subr.mxu0 0.0
    %1517 = vmatpush1.msra.mxu0 0.0
    %1518 = vmatprep.subr.mxu0 0.0
    %1519 = vmatpush1.msra.mxu0 0.0
    %1520 = vmatprep.subr.mxu0 0.0
    %1521 = vmatpush1.msra.mxu0 0.0
    %1522 = vmatprep.subr.mxu0 0.0
    %1523 = vmatpush1.msra.mxu0 0.0
    %1524 = vmatprep.subr.mxu0 0.0
    %1525 = vmatpush1.msra.mxu0 0.0
    %1526 = vmatprep.subr.mxu0 0.0
    %1527 = vmatpush1.msra.mxu0 0.0
    %1528 = vmatprep.subr.mxu0 0.0
    %1529 = vmatpush1.msra.mxu0 0.0
    %1530 = vmatprep.subr.mxu0 0.0
    %1531 = vmatpush1.msra.mxu0 0.0
    %1532 = vmatprep.subr.mxu0 0.0
    %1533 = vmatpush1.msra.mxu0 0.0
    %1534 = vmatprep.subr.mxu0 0.0
    %1535 = vmatpush1.msra.mxu0 0.0
    %1536 = vmatprep.subr.mxu0 0.0
    %1537 = vmatpush1.msra.mxu0 0.0
    %1538 = vmatprep.subr.mxu0 0.0
    %1539 = vmatpush1.msra.mxu0 0.0
    %1540 = vmatprep.subr.mxu0 0.0
    %1541 = vmatpush1.msra.mxu0 0.0
    %1542 = vmatprep.subr.mxu0 0.0
    %1543 = vmatpush1.msra.mxu0 0.0
    %1544 = vmatprep.subr.mxu0 0.0
    %1545 = vmatpush1.msra.mxu0 0.0
    %1546 = vmatprep.subr.mxu0 0.0
    %1547 = vmatpush1.msra.mxu0 0.0
    %1548 = vmatprep.subr.mxu0 0.0
    %1549 = vmatpush1.msra.mxu0 0.0
    %1550 = vmatprep.subr.mxu0 0.0
    %1551 = vmatpush1.msra.mxu0 0.0
    %1552 = vmatprep.subr.mxu0 0.0
    %1553 = vmatpush1.msra.mxu0 0.0
    %1554 = vmatprep.subr.mxu0 0.0
    %1555 = vmatpush1.msra.mxu0 0.0
    %1556 = vmatprep.subr.mxu0 0.0
    %1557 = vmatpush1.msra.mxu0 0.0
    %1558 = vmatprep.subr.mxu0 0.0
    %1559 = vmatpush1.msra.mxu0 0.0
    %1560 = vmatprep.subr.mxu0 0.0
    %1561 = vmatpush1.msra.mxu0 0.0
    %1562 = vmatprep.subr.mxu0 0.0
    %1563 = vmatpush1.msra.mxu0 0.0
    %1564 = vmatprep.mubr.f32.mxu0 0.0
    %1565 = vmatmul.mubr.f32.gmra.mrb[0].mxu0 %v1489
    %v1566 = vpop.f32.mrb[0].mxu0
    %v1567 = vadd.f32 0.0, %v1566
    %v1568 = vpop.f32.mrb[0].mxu0
    %v1569 = vadd.f32 0.0, %v1568
    %1570 = vmatprep.mubr.f32.mxu0 0.0
    %1571 = vmatmul.mubr.f32.gmra.mrb[0].mxu0 %v1492
    %v1572 = vpop.f32.mrb[0].mxu0
    %v1573 = vadd.f32 0.0, %v1572
    %v1574 = vpop.f32.mrb[0].mxu0
    %v1575 = vadd.f32 0.0, %v1574
    %1576 = vmatprep.mubr.f32.mxu0 0.0
    %1577 = vmatmul.mubr.f32.gmra.mrb[0].mxu0 %v1495
    %v1578 = vpop.f32.mrb[0].mxu0
    %v1579 = vadd.f32 0.0, %v1578
    %v1580 = vpop.f32.mrb[0].mxu0
    %v1581 = vadd.f32 0.0, %v1580
    %1582 = vmatprep.mubr.f32.mxu0 0.0
    %1583 = vmatmul.mubr.f32.gmra.mrb[0].mxu0 %v1498
    %v1584 = vpop.f32.mrb[0].mxu0
    %v1585 = vadd.f32 0.0, %v1584
    %v1586 = vpop.f32.mrb[0].mxu0
    %v1587 = vadd.f32 0.0, %v1586
    %1588 = vdwg.mxu0
    %v1590 = vsel %vm105, %v1464, 0
    %v1593 = vsel %vm105, %v1465, 0
    %v1596 = vsel %vm105, %v1466, 0
    %v1599 = vsel %vm105, %v1467, 0
    %1601 = vmatprep.subr.mxu0 %v1469
    %1602 = vmatpush1.msra.mxu0 %v1468
    %1603 = vmatprep.subr.mxu0 %v1471
    %1604 = vmatpush1.msra.mxu0 %v1470
    %1605 = vmatprep.subr.mxu0 %v1473
    %1606 = vmatpush1.msra.mxu0 %v1472
    %1607 = vmatprep.subr.mxu0 %v1475
    %1608 = vmatpush1.msra.mxu0 %v1474
    %1609 = vmatprep.subr.mxu0 0.0
    %1610 = vmatpush1.msra.mxu0 0.0
    %1611 = vmatprep.subr.mxu0 0.0
    %1612 = vmatpush1.msra.mxu0 0.0
    %1613 = vmatprep.subr.mxu0 0.0
    %1614 = vmatpush1.msra.mxu0 0.0
    %1615 = vmatprep.subr.mxu0 0.0
    %1616 = vmatpush1.msra.mxu0 0.0
    %1617 = vmatprep.subr.mxu0 0.0
    %1618 = vmatpush1.msra.mxu0 0.0
    %1619 = vmatprep.subr.mxu0 0.0
    %1620 = vmatpush1.msra.mxu0 0.0
    %1621 = vmatprep.subr.mxu0 0.0
    %1622 = vmatpush1.msra.mxu0 0.0
    %1623 = vmatprep.subr.mxu0 0.0
    %1624 = vmatpush1.msra.mxu0 0.0
    %1625 = vmatprep.subr.mxu0 0.0
    %1626 = vmatpush1.msra.mxu0 0.0
    %1627 = vmatprep.subr.mxu0 0.0
    %1628 = vmatpush1.msra.mxu0 0.0
    %1629 = vmatprep.subr.mxu0 0.0
    %1630 = vmatpush1.msra.mxu0 0.0
    %1631 = vmatprep.subr.mxu0 0.0
    %1632 = vmatpush1.msra.mxu0 0.0
    %1633 = vmatprep.subr.mxu0 0.0
    %1634 = vmatpush1.msra.mxu0 0.0
    %1635 = vmatprep.subr.mxu0 0.0
    %1636 = vmatpush1.msra.mxu0 0.0
    %1637 = vmatprep.subr.mxu0 0.0
    %1638 = vmatpush1.msra.mxu0 0.0
    %1639 = vmatprep.subr.mxu0 0.0
    %1640 = vmatpush1.msra.mxu0 0.0
    %1641 = vmatprep.subr.mxu0 0.0
    %1642 = vmatpush1.msra.mxu0 0.0
    %1643 = vmatprep.subr.mxu0 0.0
    %1644 = vmatpush1.msra.mxu0 0.0
    %1645 = vmatprep.subr.mxu0 0.0
    %1646 = vmatpush1.msra.mxu0 0.0
    %1647 = vmatprep.subr.mxu0 0.0
    %1648 = vmatpush1.msra.mxu0 0.0
    %1649 = vmatprep.subr.mxu0 0.0
    %1650 = vmatpush1.msra.mxu0 0.0
    %1651 = vmatprep.subr.mxu0 0.0
    %1652 = vmatpush1.msra.mxu0 0.0
    %1653 = vmatprep.subr.mxu0 0.0
    %1654 = vmatpush1.msra.mxu0 0.0
    %1655 = vmatprep.subr.mxu0 0.0
    %1656 = vmatpush1.msra.mxu0 0.0
    %1657 = vmatprep.subr.mxu0 0.0
    %1658 = vmatpush1.msra.mxu0 0.0
    %1659 = vmatprep.subr.mxu0 0.0
    %1660 = vmatpush1.msra.mxu0 0.0
    %1661 = vmatprep.subr.mxu0 0.0
    %1662 = vmatpush1.msra.mxu0 0.0
    %1663 = vmatprep.subr.mxu0 0.0
    %1664 = vmatpush1.msra.mxu0 0.0
    %1665 = vmatprep.mubr.f32.mxu0 0.0
    %1666 = vmatmul.mubr.f32.gmra.mrb[0].mxu0 %v1590
    %v1667 = vpop.f32.mrb[0].mxu0
    %v1668 = vadd.f32 %v1567, %v1667
    %v1669 = vpop.f32.mrb[0].mxu0
    %v1670 = vadd.f32 %v1569, %v1669
    %1671 = vmatprep.mubr.f32.mxu0 0.0
    %1672 = vmatmul.mubr.f32.gmra.mrb[0].mxu0 %v1593
    %v1673 = vpop.f32.mrb[0].mxu0
    %v1674 = vadd.f32 %v1573, %v1673
    %v1675 = vpop.f32.mrb[0].mxu0
    %v1676 = vadd.f32 %v1575, %v1675
    %1677 = vmatprep.mubr.f32.mxu0 0.0
    %1678 = vmatmul.mubr.f32.gmra.mrb[0].mxu0 %v1596
    %v1679 = vpop.f32.mrb[0].mxu0
    %v1680 = vadd.f32 %v1579, %v1679
    %v1681 = vpop.f32.mrb[0].mxu0
    %v1682 = vadd.f32 %v1581, %v1681
    %1683 = vmatprep.mubr.f32.mxu0 0.0
    %1684 = vmatmul.mubr.f32.gmra.mrb[0].mxu0 %v1599
    %v1685 = vpop.f32.mrb[0].mxu0
    %v1686 = vadd.f32 %v1585, %v1685
    %v1687 = vpop.f32.mrb[0].mxu0
    %v1688 = vadd.f32 %v1587, %v1687
    %1689 = vdwg.mxu0
    %v1690 = vld [vmem:[%s1463 + $0x2] sm:$0xff]
    %v1691 = vld [vmem:[%s1463 + $0xa] sm:$0xff]
    %v1692 = vld [vmem:[%s1463 + $0x12] sm:$0xff]
    %v1693 = vld [vmem:[%s1463 + $0x1a] sm:$0xf]
    %v1694 = vld [vmem:[%s312] sm:$0xff]
    %v1695 = vld [vmem:[%s312 + $0x8] sm:$0xff]
    %v1696 = vld [vmem:[%s312 + $0x10] sm:$0xff]
    %v1697 = vld [vmem:[%s312 + $0x18] sm:$0xff]
    %v1698 = vld [vmem:[%s312 + $0x20] sm:$0xff]
    %v1699 = vld [vmem:[%s312 + $0x28] sm:$0xff]
    %v1700 = vld [vmem:[%s312 + $0x30] sm:$0xff]
    %v1701 = vld [vmem:[%s312 + $0x38] sm:$0xff]
    %v1703 = vsel %vm105, %v1690, 0
    %v1706 = vsel %vm105, %v1691, 0
    %v1709 = vsel %vm105, %v1692, 0
    %v1712 = vsel %vm105, %v1693, 0
    %1714 = vmatprep.subr.mxu0 %v1695
    %1715 = vmatpush1.msra.mxu0 %v1694
    %1716 = vmatprep.subr.mxu0 %v1697
    %1717 = vmatpush1.msra.mxu0 %v1696
    %1718 = vmatprep.subr.mxu0 %v1699
    %1719 = vmatpush1.msra.mxu0 %v1698
    %1720 = vmatprep.subr.mxu0 %v1701
    %1721 = vmatpush1.msra.mxu0 %v1700
    %1722 = vmatprep.subr.mxu0 0.0
    %1723 = vmatpush1.msra.mxu0 0.0
    %1724 = vmatprep.subr.mxu0 0.0
    %1725 = vmatpush1.msra.mxu0 0.0
    %1726 = vmatprep.subr.mxu0 0.0
    %1727 = vmatpush1.msra.mxu0 0.0
    %1728 = vmatprep.subr.mxu0 0.0
    %1729 = vmatpush1.msra.mxu0 0.0
    %1730 = vmatprep.subr.mxu0 0.0
    %1731 = vmatpush1.msra.mxu0 0.0
    %1732 = vmatprep.subr.mxu0 0.0
    %1733 = vmatpush1.msra.mxu0 0.0
    %1734 = vmatprep.subr.mxu0 0.0
    %1735 = vmatpush1.msra.mxu0 0.0
    %1736 = vmatprep.subr.mxu0 0.0
    %1737 = vmatpush1.msra.mxu0 0.0
    %1738 = vmatprep.subr.mxu0 0.0
    %1739 = vmatpush1.msra.mxu0 0.0
    %1740 = vmatprep.subr.mxu0 0.0
    %1741 = vmatpush1.msra.mxu0 0.0
    %1742 = vmatprep.subr.mxu0 0.0
    %1743 = vmatpush1.msra.mxu0 0.0
    %1744 = vmatprep.subr.mxu0 0.0
    %1745 = vmatpush1.msra.mxu0 0.0
    %1746 = vmatprep.subr.mxu0 0.0
    %1747 = vmatpush1.msra.mxu0 0.0
    %1748 = vmatprep.subr.mxu0 0.0
    %1749 = vmatpush1.msra.mxu0 0.0
    %1750 = vmatprep.subr.mxu0 0.0
    %1751 = vmatpush1.msra.mxu0 0.0
    %1752 = vmatprep.subr.mxu0 0.0
    %1753 = vmatpush1.msra.mxu0 0.0
    %1754 = vmatprep.subr.mxu0 0.0
    %1755 = vmatpush1.msra.mxu0 0.0
    %1756 = vmatprep.subr.mxu0 0.0
    %1757 = vmatpush1.msra.mxu0 0.0
    %1758 = vmatprep.subr.mxu0 0.0
    %1759 = vmatpush1.msra.mxu0 0.0
    %1760 = vmatprep.subr.mxu0 0.0
    %1761 = vmatpush1.msra.mxu0 0.0
    %1762 = vmatprep.subr.mxu0 0.0
    %1763 = vmatpush1.msra.mxu0 0.0
    %1764 = vmatprep.subr.mxu0 0.0
    %1765 = vmatpush1.msra.mxu0 0.0
    %1766 = vmatprep.subr.mxu0 0.0
    %1767 = vmatpush1.msra.mxu0 0.0
    %1768 = vmatprep.subr.mxu0 0.0
    %1769 = vmatpush1.msra.mxu0 0.0
    %1770 = vmatprep.subr.mxu0 0.0
    %1771 = vmatpush1.msra.mxu0 0.0
    %1772 = vmatprep.subr.mxu0 0.0
    %1773 = vmatpush1.msra.mxu0 0.0
    %1774 = vmatprep.subr.mxu0 0.0
    %1775 = vmatpush1.msra.mxu0 0.0
    %1776 = vmatprep.subr.mxu0 0.0
    %1777 = vmatpush1.msra.mxu0 0.0
    %1778 = vmatprep.mubr.f32.mxu0 0.0
    %1779 = vmatmul.mubr.f32.gmra.mrb[0].mxu0 %v1703
    %v1780 = vpop.f32.mrb[0].mxu0
    %v1781 = vadd.f32 0.0, %v1780
    %v1782 = vpop.f32.mrb[0].mxu0
    %v1783 = vadd.f32 0.0, %v1782
    %1784 = vmatprep.mubr.f32.mxu0 0.0
    %1785 = vmatmul.mubr.f32.gmra.mrb[0].mxu0 %v1706
    %v1786 = vpop.f32.mrb[0].mxu0
    %v1787 = vadd.f32 0.0, %v1786
    %v1788 = vpop.f32.mrb[0].mxu0
    %v1789 = vadd.f32 0.0, %v1788
    %1790 = vmatprep.mubr.f32.mxu0 0.0
    %1791 = vmatmul.mubr.f32.gmra.mrb[0].mxu0 %v1709
    %v1792 = vpop.f32.mrb[0].mxu0
    %v1793 = vadd.f32 0.0, %v1792
    %v1794 = vpop.f32.mrb[0].mxu0
    %v1795 = vadd.f32 0.0, %v1794
    %1796 = vmatprep.mubr.f32.mxu0 0.0
    %1797 = vmatmul.mubr.f32.gmra.mrb[0].mxu0 %v1712
    %v1798 = vpop.f32.mrb[0].mxu0
    %v1799 = vadd.f32 0.0, %v1798
    %v1800 = vpop.f32.mrb[0].mxu0
    %v1801 = vadd.f32 0.0, %v1800
    %1802 = vdwg.mxu0
    %v1803 = vadd.f32 %v1668, %v1781
    %v1804 = vadd.f32 %v1670, %v1783
    %v1805 = vadd.f32 %v1674, %v1787
    %v1806 = vadd.f32 %v1676, %v1789
    %v1807 = vadd.f32 %v1680, %v1793
    %v1808 = vadd.f32 %v1682, %v1795
    %v1809 = vadd.f32 %v1686, %v1799
    %v1810 = vadd.f32 %v1688, %v1801
    %v1811 = vld [vmem:[%s1463 + $0x3] sm:$0xff]
    %v1812 = vld [vmem:[%s1463 + $0xb] sm:$0xff]
    %v1813 = vld [vmem:[%s1463 + $0x13] sm:$0xff]
    %v1814 = vld [vmem:[%s1463 + $0x1b] sm:$0xf]
    %v1815 = vld [vmem:[%s434] sm:$0xff]
    %v1816 = vld [vmem:[%s434 + $0x8] sm:$0xff]
    %v1817 = vld [vmem:[%s434 + $0x10] sm:$0xff]
    %v1818 = vld [vmem:[%s434 + $0x18] sm:$0xff]
    %v1819 = vld [vmem:[%s434 + $0x20] sm:$0xff]
    %v1820 = vld [vmem:[%s434 + $0x28] sm:$0xff]
    %v1821 = vld [vmem:[%s434 + $0x30] sm:$0xff]
    %v1822 = vld [vmem:[%s434 + $0x38] sm:$0xff]
    %v1824 = vsel %vm105, %v1811, 0
    %v1827 = vsel %vm105, %v1812, 0
    %v1830 = vsel %vm105, %v1813, 0
    %v1833 = vsel %vm105, %v1814, 0
    %1835 = vmatprep.subr.mxu0 %v1816
    %1836 = vmatpush1.msra.mxu0 %v1815
    %1837 = vmatprep.subr.mxu0 %v1818
    %1838 = vmatpush1.msra.mxu0 %v1817
    %1839 = vmatprep.subr.mxu0 %v1820
    %1840 = vmatpush1.msra.mxu0 %v1819
    %1841 = vmatprep.subr.mxu0 %v1822
    %1842 = vmatpush1.msra.mxu0 %v1821
    %1843 = vmatprep.subr.mxu0 0.0
    %1844 = vmatpush1.msra.mxu0 0.0
    %1845 = vmatprep.subr.mxu0 0.0
    %1846 = vmatpush1.msra.mxu0 0.0
    %1847 = vmatprep.subr.mxu0 0.0
    %1848 = vmatpush1.msra.mxu0 0.0
    %1849 = vmatprep.subr.mxu0 0.0
    %1850 = vmatpush1.msra.mxu0 0.0
    %1851 = vmatprep.subr.mxu0 0.0
    %1852 = vmatpush1.msra.mxu0 0.0
    %1853 = vmatprep.subr.mxu0 0.0
    %1854 = vmatpush1.msra.mxu0 0.0
    %1855 = vmatprep.subr.mxu0 0.0
    %1856 = vmatpush1.msra.mxu0 0.0
    %1857 = vmatprep.subr.mxu0 0.0
    %1858 = vmatpush1.msra.mxu0 0.0
    %1859 = vmatprep.subr.mxu0 0.0
    %1860 = vmatpush1.msra.mxu0 0.0
    %1861 = vmatprep.subr.mxu0 0.0
    %1862 = vmatpush1.msra.mxu0 0.0
    %1863 = vmatprep.subr.mxu0 0.0
    %1864 = vmatpush1.msra.mxu0 0.0
    %1865 = vmatprep.subr.mxu0 0.0
    %1866 = vmatpush1.msra.mxu0 0.0
    %1867 = vmatprep.subr.mxu0 0.0
    %1868 = vmatpush1.msra.mxu0 0.0
    %1869 = vmatprep.subr.mxu0 0.0
    %1870 = vmatpush1.msra.mxu0 0.0
    %1871 = vmatprep.subr.mxu0 0.0
    %1872 = vmatpush1.msra.mxu0 0.0
    %1873 = vmatprep.subr.mxu0 0.0
    %1874 = vmatpush1.msra.mxu0 0.0
    %1875 = vmatprep.subr.mxu0 0.0
    %1876 = vmatpush1.msra.mxu0 0.0
    %1877 = vmatprep.subr.mxu0 0.0
    %1878 = vmatpush1.msra.mxu0 0.0
    %1879 = vmatprep.subr.mxu0 0.0
    %1880 = vmatpush1.msra.mxu0 0.0
    %1881 = vmatprep.subr.mxu0 0.0
    %1882 = vmatpush1.msra.mxu0 0.0
    %1883 = vmatprep.subr.mxu0 0.0
    %1884 = vmatpush1.msra.mxu0 0.0
    %1885 = vmatprep.subr.mxu0 0.0
    %1886 = vmatpush1.msra.mxu0 0.0
    %1887 = vmatprep.subr.mxu0 0.0
    %1888 = vmatpush1.msra.mxu0 0.0
    %1889 = vmatprep.subr.mxu0 0.0
    %1890 = vmatpush1.msra.mxu0 0.0
    %1891 = vmatprep.subr.mxu0 0.0
    %1892 = vmatpush1.msra.mxu0 0.0
    %1893 = vmatprep.subr.mxu0 0.0
    %1894 = vmatpush1.msra.mxu0 0.0
    %1895 = vmatprep.subr.mxu0 0.0
    %1896 = vmatpush1.msra.mxu0 0.0
    %1897 = vmatprep.subr.mxu0 0.0
    %1898 = vmatpush1.msra.mxu0 0.0
    %1899 = vmatprep.mubr.f32.mxu0 0.0
    %1900 = vmatmul.mubr.f32.gmra.mrb[0].mxu0 %v1824
    %v1901 = vpop.f32.mrb[0].mxu0
    %v1902 = vadd.f32 0.0, %v1901
    %v1903 = vpop.f32.mrb[0].mxu0
    %v1904 = vadd.f32 0.0, %v1903
    %1905 = vmatprep.mubr.f32.mxu0 0.0
    %1906 = vmatmul.mubr.f32.gmra.mrb[0].mxu0 %v1827
    %v1907 = vpop.f32.mrb[0].mxu0
    %v1908 = vadd.f32 0.0, %v1907
    %v1909 = vpop.f32.mrb[0].mxu0
    %v1910 = vadd.f32 0.0, %v1909
    %1911 = vmatprep.mubr.f32.mxu0 0.0
    %1912 = vmatmul.mubr.f32.gmra.mrb[0].mxu0 %v1830
    %v1913 = vpop.f32.mrb[0].mxu0
    %v1914 = vadd.f32 0.0, %v1913
    %v1915 = vpop.f32.mrb[0].mxu0
    %v1916 = vadd.f32 0.0, %v1915
    %1917 = vmatprep.mubr.f32.mxu0 0.0
    %1918 = vmatmul.mubr.f32.gmra.mrb[0].mxu0 %v1833
    %v1919 = vpop.f32.mrb[0].mxu0
    %v1920 = vadd.f32 0.0, %v1919
    %v1921 = vpop.f32.mrb[0].mxu0
    %v1922 = vadd.f32 0.0, %v1921
    %1923 = vdwg.mxu0
    %v1924 = vadd.f32 %v1803, %v1902
    %v1925 = vadd.f32 %v1804, %v1904
    %v1926 = vadd.f32 %v1805, %v1908
    %v1927 = vadd.f32 %v1806, %v1910
    %v1928 = vadd.f32 %v1807, %v1914
    %v1929 = vadd.f32 %v1808, %v1916
    %v1930 = vadd.f32 %v1809, %v1920
    %v1931 = vadd.f32 %v1810, %v1922
    %v1932 = vld [vmem:[%s1463 + $0x4] sm:$0xff]
    %v1933 = vld [vmem:[%s1463 + $0xc] sm:$0xff]
    %v1934 = vld [vmem:[%s1463 + $0x14] sm:$0xff]
    %v1935 = vld [vmem:[%s1463 + $0x1c] sm:$0xf]
    %v1936 = vld [vmem:[%s556] sm:$0xff]
    %v1937 = vld [vmem:[%s556 + $0x8] sm:$0xff]
    %v1938 = vld [vmem:[%s556 + $0x10] sm:$0xff]
    %v1939 = vld [vmem:[%s556 + $0x18] sm:$0xff]
    %v1940 = vld [vmem:[%s556 + $0x20] sm:$0xff]
    %v1941 = vld [vmem:[%s556 + $0x28] sm:$0xff]
    %v1942 = vld [vmem:[%s556 + $0x30] sm:$0xff]
    %v1943 = vld [vmem:[%s556 + $0x38] sm:$0xff]
    %v1945 = vsel %vm105, %v1932, 0
    %v1948 = vsel %vm105, %v1933, 0
    %v1951 = vsel %vm105, %v1934, 0
    %v1954 = vsel %vm105, %v1935, 0
    %1956 = vmatprep.subr.mxu0 %v1937
    %1957 = vmatpush1.msra.mxu0 %v1936
    %1958 = vmatprep.subr.mxu0 %v1939
    %1959 = vmatpush1.msra.mxu0 %v1938
    %1960 = vmatprep.subr.mxu0 %v1941
    %1961 = vmatpush1.msra.mxu0 %v1940
    %1962 = vmatprep.subr.mxu0 %v1943
    %1963 = vmatpush1.msra.mxu0 %v1942
    %1964 = vmatprep.subr.mxu0 0.0
    %1965 = vmatpush1.msra.mxu0 0.0
    %1966 = vmatprep.subr.mxu0 0.0
    %1967 = vmatpush1.msra.mxu0 0.0
    %1968 = vmatprep.subr.mxu0 0.0
    %1969 = vmatpush1.msra.mxu0 0.0
    %1970 = vmatprep.subr.mxu0 0.0
    %1971 = vmatpush1.msra.mxu0 0.0
    %1972 = vmatprep.subr.mxu0 0.0
    %1973 = vmatpush1.msra.mxu0 0.0
    %1974 = vmatprep.subr.mxu0 0.0
    %1975 = vmatpush1.msra.mxu0 0.0
    %1976 = vmatprep.subr.mxu0 0.0
    %1977 = vmatpush1.msra.mxu0 0.0
    %1978 = vmatprep.subr.mxu0 0.0
    %1979 = vmatpush1.msra.mxu0 0.0
    %1980 = vmatprep.subr.mxu0 0.0
    %1981 = vmatpush1.msra.mxu0 0.0
    %1982 = vmatprep.subr.mxu0 0.0
    %1983 = vmatpush1.msra.mxu0 0.0
    %1984 = vmatprep.subr.mxu0 0.0
    %1985 = vmatpush1.msra.mxu0 0.0
    %1986 = vmatprep.subr.mxu0 0.0
    %1987 = vmatpush1.msra.mxu0 0.0
    %1988 = vmatprep.subr.mxu0 0.0
    %1989 = vmatpush1.msra.mxu0 0.0
    %1990 = vmatprep.subr.mxu0 0.0
    %1991 = vmatpush1.msra.mxu0 0.0
    %1992 = vmatprep.subr.mxu0 0.0
    %1993 = vmatpush1.msra.mxu0 0.0
    %1994 = vmatprep.subr.mxu0 0.0
    %1995 = vmatpush1.msra.mxu0 0.0
    %1996 = vmatprep.subr.mxu0 0.0
    %1997 = vmatpush1.msra.mxu0 0.0
    %1998 = vmatprep.subr.mxu0 0.0
    %1999 = vmatpush1.msra.mxu0 0.0
    %2000 = vmatprep.subr.mxu0 0.0
    %2001 = vmatpush1.msra.mxu0 0.0
    %2002 = vmatprep.subr.mxu0 0.0
    %2003 = vmatpush1.msra.mxu0 0.0
    %2004 = vmatprep.subr.mxu0 0.0
    %2005 = vmatpush1.msra.mxu0 0.0
    %2006 = vmatprep.subr.mxu0 0.0
    %2007 = vmatpush1.msra.mxu0 0.0
    %2008 = vmatprep.subr.mxu0 0.0
    %2009 = vmatpush1.msra.mxu0 0.0
    %2010 = vmatprep.subr.mxu0 0.0
    %2011 = vmatpush1.msra.mxu0 0.0
    %2012 = vmatprep.subr.mxu0 0.0
    %2013 = vmatpush1.msra.mxu0 0.0
    %2014 = vmatprep.subr.mxu0 0.0
    %2015 = vmatpush1.msra.mxu0 0.0
    %2016 = vmatprep.subr.mxu0 0.0
    %2017 = vmatpush1.msra.mxu0 0.0
    %2018 = vmatprep.subr.mxu0 0.0
    %2019 = vmatpush1.msra.mxu0 0.0
    %2020 = vmatprep.mubr.f32.mxu0 0.0
    %2021 = vmatmul.mubr.f32.gmra.mrb[0].mxu0 %v1945
    %v2022 = vpop.f32.mrb[0].mxu0
    %v2023 = vadd.f32 0.0, %v2022
    %v2024 = vpop.f32.mrb[0].mxu0
    %v2025 = vadd.f32 0.0, %v2024
    %2026 = vmatprep.mubr.f32.mxu0 0.0
    %2027 = vmatmul.mubr.f32.gmra.mrb[0].mxu0 %v1948
    %v2028 = vpop.f32.mrb[0].mxu0
    %v2029 = vadd.f32 0.0, %v2028
    %v2030 = vpop.f32.mrb[0].mxu0
    %v2031 = vadd.f32 0.0, %v2030
    %2032 = vmatprep.mubr.f32.mxu0 0.0
    %2033 = vmatmul.mubr.f32.gmra.mrb[0].mxu0 %v1951
    %v2034 = vpop.f32.mrb[0].mxu0
    %v2035 = vadd.f32 0.0, %v2034
    %v2036 = vpop.f32.mrb[0].mxu0
    %v2037 = vadd.f32 0.0, %v2036
    %2038 = vmatprep.mubr.f32.mxu0 0.0
    %2039 = vmatmul.mubr.f32.gmra.mrb[0].mxu0 %v1954
    %v2040 = vpop.f32.mrb[0].mxu0
    %v2041 = vadd.f32 0.0, %v2040
    %v2042 = vpop.f32.mrb[0].mxu0
    %v2043 = vadd.f32 0.0, %v2042
    %2044 = vdwg.mxu0
    %v2045 = vadd.f32 %v1924, %v2023
    %v2046 = vadd.f32 %v1925, %v2025
    %v2047 = vadd.f32 %v1926, %v2029
    %v2048 = vadd.f32 %v1927, %v2031
    %v2049 = vadd.f32 %v1928, %v2035
    %v2050 = vadd.f32 %v1929, %v2037
    %v2051 = vadd.f32 %v1930, %v2041
    %v2052 = vadd.f32 %v1931, %v2043
    %v2053 = vld [vmem:[%s2] sm:$0x3]
    %v2055 = vlaneseq
    %v2056 = vshrl.u32 %v2055, 7
    %v2057 = vsub.s32 0, %v2056
    %v2058 = vrot.slane %v2053, %v2057
    %v2059 = vlaneseq
    %v2060 = vshrl.u32 %v2059, 7
    %v2061 = vsub.s32 1, %v2060
    %v2062 = vrot.slane %v2053, %v2061
    %v2065 = vadd.f32 %v2045, %v2058
    %v2066 = vadd.f32 %v2046, %v2062
    %v2067 = vadd.f32 %v2047, %v2058
    %v2068 = vadd.f32 %v2048, %v2062
    %v2069 = vadd.f32 %v2049, %v2058
    %v2070 = vadd.f32 %v2050, %v2062
    %v2071 = vadd.f32 %v2051, %v2058
    %v2072 = vadd.f32 %v2052, %v2062
    %2073 = vst [vmem:[#allocation2] sm:$0xff] %v2065
    %2074 = vst [vmem:[#allocation2 + $0x8] sm:$0xff] %v2066
    %2075 = vst [vmem:[#allocation2 + $0x10] sm:$0xff] %v2067
    %2076 = vst [vmem:[#allocation2 + $0x18] sm:$0xff] %v2068
    %2077 = vst [vmem:[#allocation2 + $0x20] sm:$0xff] %v2069
    %2078 = vst [vmem:[#allocation2 + $0x28] sm:$0xff] %v2070
    %2079 = vst [vmem:[#allocation2 + $0x30] sm:$0xf] %v2071
    %2080 = vst [vmem:[#allocation2 + $0x38] sm:$0xf] %v2072
    %v2081 = vld [vmem:[#allocation2] ss:$0 sm:$0xff]
    %v2082 = vld [vmem:[#allocation2 + $0x8] ss:$0 sm:$0xff]
    %v2083 = vmax.f32 %v2081, %v2082
    %v2084 = vld [vmem:[#allocation2 + $0x1] ss:$0 sm:$0xff]
    %v2085 = vld [vmem:[#allocation2 + $0x9] ss:$0 sm:$0xff]
    %v2086 = vmax.f32 %v2084, %v2085
    %v2087 = vmax.f32 %v2083, %v2086
    %2088 = vst.msk [vmem:[#allocation3] sm:$0x1] %vm709, %v2087
    %v2089 = vld [vmem:[#allocation2 + $0x2] ss:$0 sm:$0xff]
    %v2090 = vld [vmem:[#allocation2 + $0xa] ss:$0 sm:$0xff]
    %v2091 = vmax.f32 %v2089, %v2090
    %v2092 = vld [vmem:[#allocation2 + $0x3] ss:$0 sm:$0xff]
    %v2093 = vld [vmem:[#allocation2 + $0xb] ss:$0 sm:$0xff]
    %v2094 = vmax.f32 %v2092, %v2093
    %v2095 = vmax.f32 %v2091, %v2094
    %2096 = vst.msk [vmem:[#allocation3 + $0x1] sm:$0x1] %vm709, %v2095
    %v2097 = vld [vmem:[#allocation2 + $0x4] ss:$0 sm:$0xff]
    %v2098 = vld [vmem:[#allocation2 + $0xc] ss:$0 sm:$0xff]
    %v2099 = vmax.f32 %v2097, %v2098
    %v2100 = vld [vmem:[#allocation2 + $0x5] ss:$0 sm:$0xff]
    %v2101 = vld [vmem:[#allocation2 + $0xd] ss:$0 sm:$0xff]
    %v2102 = vmax.f32 %v2100, %v2101
    %v2103 = vmax.f32 %v2099, %v2102
    %2104 = vst.msk [vmem:[#allocation3 + $0x2] sm:$0x1] %vm709, %v2103
    %v2105 = vld [vmem:[#allocation2 + $0x6] ss:$0 sm:$0xff]
    %v2106 = vld [vmem:[#allocation2 + $0xe] ss:$0 sm:$0xff]
    %v2107 = vmax.f32 %v2105, %v2106
    %v2108 = vld [vmem:[#allocation2 + $0x7] ss:$0 sm:$0xff]
    %v2109 = vld [vmem:[#allocation2 + $0xf] ss:$0 sm:$0xff]
    %v2110 = vmax.f32 %v2108, %v2109
    %v2111 = vmax.f32 %v2107, %v2110
    %2112 = vst.msk [vmem:[#allocation3 + $0x3] sm:$0x1] %vm709, %v2111
    %v2113 = vld [vmem:[#allocation2 + $0x10] ss:$0 sm:$0xff]
    %v2114 = vld [vmem:[#allocation2 + $0x18] ss:$0 sm:$0xff]
    %v2115 = vmax.f32 %v2113, %v2114
    %v2116 = vld [vmem:[#allocation2 + $0x11] ss:$0 sm:$0xff]
    %v2117 = vld [vmem:[#allocation2 + $0x19] ss:$0 sm:$0xff]
    %v2118 = vmax.f32 %v2116, %v2117
    %v2119 = vmax.f32 %v2115, %v2118
    %2120 = vst.msk [vmem:[#allocation3 + $0x4] sm:$0x1] %vm709, %v2119
    %v2121 = vld [vmem:[#allocation2 + $0x12] ss:$0 sm:$0xff]
    %v2122 = vld [vmem:[#allocation2 + $0x1a] ss:$0 sm:$0xff]
    %v2123 = vmax.f32 %v2121, %v2122
    %v2124 = vld [vmem:[#allocation2 + $0x13] ss:$0 sm:$0xff]
    %v2125 = vld [vmem:[#allocation2 + $0x1b] ss:$0 sm:$0xff]
    %v2126 = vmax.f32 %v2124, %v2125
    %v2127 = vmax.f32 %v2123, %v2126
    %2128 = vst.msk [vmem:[#allocation3 + $0x5] sm:$0x1] %vm709, %v2127
    %v2129 = vld [vmem:[#allocation2 + $0x14] ss:$0 sm:$0xff]
    %v2130 = vld [vmem:[#allocation2 + $0x1c] ss:$0 sm:$0xff]
    %v2131 = vmax.f32 %v2129, %v2130
    %v2132 = vld [vmem:[#allocation2 + $0x15] ss:$0 sm:$0xff]
    %v2133 = vld [vmem:[#allocation2 + $0x1d] ss:$0 sm:$0xff]
    %v2134 = vmax.f32 %v2132, %v2133
    %v2135 = vmax.f32 %v2131, %v2134
    %2136 = vst.msk [vmem:[#allocation3 + $0x6] sm:$0x1] %vm709, %v2135
    %v2137 = vld [vmem:[#allocation2 + $0x16] ss:$0 sm:$0xff]
    %v2138 = vld [vmem:[#allocation2 + $0x1e] ss:$0 sm:$0xff]
    %v2139 = vmax.f32 %v2137, %v2138
    %v2140 = vld [vmem:[#allocation2 + $0x17] ss:$0 sm:$0xff]
    %v2141 = vld [vmem:[#allocation2 + $0x1f] ss:$0 sm:$0xff]
    %v2142 = vmax.f32 %v2140, %v2141
    %v2143 = vmax.f32 %v2139, %v2142
    %2144 = vst.msk [vmem:[#allocation3 + $0x7] sm:$0x1] %vm709, %v2143
    %v2145 = vld [vmem:[#allocation2 + $0x20] ss:$0 sm:$0xff]
    %v2146 = vld [vmem:[#allocation2 + $0x28] ss:$0 sm:$0xff]
    %v2147 = vmax.f32 %v2145, %v2146
    %v2148 = vld [vmem:[#allocation2 + $0x21] ss:$0 sm:$0xff]
    %v2149 = vld [vmem:[#allocation2 + $0x29] ss:$0 sm:$0xff]
    %v2150 = vmax.f32 %v2148, %v2149
    %v2151 = vmax.f32 %v2147, %v2150
    %2152 = vst.msk [vmem:[#allocation3 + $0x8] sm:$0x1] %vm709, %v2151
    %v2153 = vld [vmem:[#allocation2 + $0x22] ss:$0 sm:$0xff]
    %v2154 = vld [vmem:[#allocation2 + $0x2a] ss:$0 sm:$0xff]
    %v2155 = vmax.f32 %v2153, %v2154
    %v2156 = vld [vmem:[#allocation2 + $0x23] ss:$0 sm:$0xff]
    %v2157 = vld [vmem:[#allocation2 + $0x2b] ss:$0 sm:$0xff]
    %v2158 = vmax.f32 %v2156, %v2157
    %v2159 = vmax.f32 %v2155, %v2158
    %2160 = vst.msk [vmem:[#allocation3 + $0x9] sm:$0x1] %vm709, %v2159
    %v2161 = vld [vmem:[#allocation2 + $0x24] ss:$0 sm:$0xff]
    %v2162 = vld [vmem:[#allocation2 + $0x2c] ss:$0 sm:$0xff]
    %v2163 = vmax.f32 %v2161, %v2162
    %v2164 = vld [vmem:[#allocation2 + $0x25] ss:$0 sm:$0xff]
    %v2165 = vld [vmem:[#allocation2 + $0x2d] ss:$0 sm:$0xff]
    %v2166 = vmax.f32 %v2164, %v2165
    %v2167 = vmax.f32 %v2163, %v2166
    %2168 = vst.msk [vmem:[#allocation3 + $0xa] sm:$0x1] %vm709, %v2167
    %v2169 = vld [vmem:[#allocation2 + $0x26] ss:$0 sm:$0xff]
    %v2170 = vld [vmem:[#allocation2 + $0x2e] ss:$0 sm:$0xff]
    %v2171 = vmax.f32 %v2169, %v2170
    %v2172 = vld [vmem:[#allocation2 + $0x27] ss:$0 sm:$0xff]
    %v2173 = vld [vmem:[#allocation2 + $0x2f] ss:$0 sm:$0xff]
    %v2174 = vmax.f32 %v2172, %v2173
    %v2175 = vmax.f32 %v2171, %v2174
    %2176 = vst.msk [vmem:[#allocation3 + $0xb] sm:$0x1] %vm709, %v2175
    %v2177 = vld [vmem:[#allocation2 + $0x30] ss:$0 sm:$0xff]
    %v2178 = vld [vmem:[#allocation2 + $0x38] ss:$0 sm:$0xff]
    %v2179 = vmax.f32 %v2177, %v2178
    %v2180 = vld [vmem:[#allocation2 + $0x31] ss:$0 sm:$0xff]
    %v2181 = vld [vmem:[#allocation2 + $0x39] ss:$0 sm:$0xff]
    %v2182 = vmax.f32 %v2180, %v2181
    %v2183 = vmax.f32 %v2179, %v2182
    %2184 = vst.msk [vmem:[#allocation3 + $0xc] sm:$0x1] %vm709, %v2183
    %v2185 = vld [vmem:[#allocation2 + $0x32] ss:$0 sm:$0xff]
    %v2186 = vld [vmem:[#allocation2 + $0x3a] ss:$0 sm:$0xff]
    %v2187 = vmax.f32 %v2185, %v2186
    %v2188 = vld [vmem:[#allocation2 + $0x33] ss:$0 sm:$0xff]
    %v2189 = vld [vmem:[#allocation2 + $0x3b] ss:$0 sm:$0xff]
    %v2190 = vmax.f32 %v2188, %v2189
    %v2191 = vmax.f32 %v2187, %v2190
    %2192 = vst.msk [vmem:[#allocation3 + $0xd] sm:$0x1] %vm709, %v2191
    %v2193 = vld [vmem:[#allocation3] sm:$0xff]
    %v2194 = vld [vmem:[#allocation3 + $0x8] sm:$0x3]
    %v2195 = vld [vmem:[#allocation9] sm:$0xff]
    %v2196 = vld [vmem:[#allocation9 + $0x8] sm:$0xff]
    %v2197 = vld [vmem:[#allocation9 + $0x10] sm:$0xff]
    %v2198 = vld [vmem:[#allocation9 + $0x18] sm:$0xff]
    %v2199 = vld [vmem:[#allocation9 + $0x20] sm:$0xff]
    %v2200 = vld [vmem:[#allocation9 + $0x28] sm:$0xff]
    %v2201 = vld [vmem:[#allocation9 + $0x30] sm:$0xff]
    %v2202 = vld [vmem:[#allocation9 + $0x38] sm:$0xff]
    %v2203 = vld [vmem:[#allocation9 + $0x40] sm:$0xff]
    %v2204 = vld [vmem:[#allocation9 + $0x48] sm:$0xff]
    %v2205 = vld [vmem:[#allocation9 + $0x50] sm:$0xff]
    %v2206 = vld [vmem:[#allocation9 + $0x58] sm:$0xff]
    %v2207 = vld [vmem:[#allocation9 + $0x60] sm:$0xff]
    %v2208 = vld [vmem:[#allocation9 + $0x68] sm:$0xff]
    %v2209 = vld [vmem:[#allocation9 + $0x70] sm:$0xff]
    %v2210 = vld [vmem:[#allocation9 + $0x78] sm:$0xff]
    %v2211 = vld [vmem:[#allocation9 + $0x80] sm:$0xff]
    %v2212 = vld [vmem:[#allocation9 + $0x88] sm:$0xff]
    %v2213 = vld [vmem:[#allocation9 + $0x90] sm:$0xff]
    %v2214 = vld [vmem:[#allocation9 + $0x98] sm:$0xff]
    %v2215 = vld [vmem:[#allocation9 + $0xa0] sm:$0xf]
    %v2216 = vld [vmem:[#allocation9 + $0xa8] sm:$0xf]
    %v2217 = vld [vmem:[#allocation3 + $0x1] sm:$0xff]
    %v2218 = vld [vmem:[#allocation3 + $0x9] sm:$0x3]
    %v2219 = vld [vmem:[%s841] sm:$0xff]
    %v2220 = vld [vmem:[%s841 + $0x8] sm:$0xff]
    %v2221 = vld [vmem:[%s841 + $0x10] sm:$0xff]
    %v2222 = vld [vmem:[%s841 + $0x18] sm:$0xff]
    %v2223 = vld [vmem:[%s841 + $0x20] sm:$0xff]
    %v2224 = vld [vmem:[%s841 + $0x28] sm:$0xff]
    %v2225 = vld [vmem:[%s841 + $0x30] sm:$0xff]
    %v2226 = vld [vmem:[%s841 + $0x38] sm:$0xff]
    %v2227 = vld [vmem:[%s841 + $0x40] sm:$0xff]
    %v2228 = vld [vmem:[%s841 + $0x48] sm:$0xff]
    %v2229 = vld [vmem:[%s841 + $0x50] sm:$0xff]
    %v2230 = vld [vmem:[%s841 + $0x58] sm:$0xff]
    %v2231 = vld [vmem:[%s841 + $0x60] sm:$0xff]
    %v2232 = vld [vmem:[%s841 + $0x68] sm:$0xff]
    %v2233 = vld [vmem:[%s841 + $0x70] sm:$0xff]
    %v2234 = vld [vmem:[%s841 + $0x78] sm:$0xff]
    %v2235 = vld [vmem:[%s841 + $0x80] sm:$0xff]
    %v2236 = vld [vmem:[%s841 + $0x88] sm:$0xff]
    %v2237 = vld [vmem:[%s841 + $0x90] sm:$0xff]
    %v2238 = vld [vmem:[%s841 + $0x98] sm:$0xff]
    %v2239 = vld [vmem:[%s841 + $0xa0] sm:$0xf]
    %v2240 = vld [vmem:[%s841 + $0xa8] sm:$0xf]
    %v2242 = vsel %vm864, %v2217, 0
    %v2245 = vsel %vm864, %v2218, 0
    %v2248 = vsel %vm871, %v2239, 0
    %v2251 = vsel %vm871, %v2240, 0
    %2253 = vmatprep.subr.mxu0 %v2220
    %2254 = vmatpush1.msra.mxu0 %v2219
    %2255 = vmatprep.subr.mxu0 %v2222
    %2256 = vmatpush1.msra.mxu0 %v2221
    %2257 = vmatprep.subr.mxu0 %v2224
    %2258 = vmatpush1.msra.mxu0 %v2223
    %2259 = vmatprep.subr.mxu0 %v2226
    %2260 = vmatpush1.msra.mxu0 %v2225
    %2261 = vmatprep.subr.mxu0 %v2228
    %2262 = vmatpush1.msra.mxu0 %v2227
    %2263 = vmatprep.subr.mxu0 %v2230
    %2264 = vmatpush1.msra.mxu0 %v2229
    %2265 = vmatprep.subr.mxu0 %v2232
    %2266 = vmatpush1.msra.mxu0 %v2231
    %2267 = vmatprep.subr.mxu0 %v2234
    %2268 = vmatpush1.msra.mxu0 %v2233
    %2269 = vmatprep.subr.mxu0 %v2236
    %2270 = vmatpush1.msra.mxu0 %v2235
    %2271 = vmatprep.subr.mxu0 %v2238
    %2272 = vmatpush1.msra.mxu0 %v2237
    %2273 = vmatprep.subr.mxu0 %v2251
    %2274 = vmatpush1.msra.mxu0 %v2248
    %2275 = vmatprep.subr.mxu0 0.0
    %2276 = vmatpush1.msra.mxu0 0.0
    %2277 = vmatprep.subr.mxu0 0.0
    %2278 = vmatpush1.msra.mxu0 0.0
    %2279 = vmatprep.subr.mxu0 0.0
    %2280 = vmatpush1.msra.mxu0 0.0
    %2281 = vmatprep.subr.mxu0 0.0
    %2282 = vmatpush1.msra.mxu0 0.0
    %2283 = vmatprep.subr.mxu0 0.0
    %2284 = vmatpush1.msra.mxu0 0.0
    %2285 = vmatprep.subr.mxu0 0.0
    %2286 = vmatpush1.msra.mxu0 0.0
    %2287 = vmatprep.subr.mxu0 0.0
    %2288 = vmatpush1.msra.mxu0 0.0
    %2289 = vmatprep.subr.mxu0 0.0
    %2290 = vmatpush1.msra.mxu0 0.0
    %2291 = vmatprep.subr.mxu0 0.0
    %2292 = vmatpush1.msra.mxu0 0.0
    %2293 = vmatprep.subr.mxu0 0.0
    %2294 = vmatpush1.msra.mxu0 0.0
    %2295 = vmatprep.subr.mxu0 0.0
    %2296 = vmatpush1.msra.mxu0 0.0
    %2297 = vmatprep.subr.mxu0 0.0
    %2298 = vmatpush1.msra.mxu0 0.0
    %2299 = vmatprep.subr.mxu0 0.0
    %2300 = vmatpush1.msra.mxu0 0.0
    %2301 = vmatprep.subr.mxu0 0.0
    %2302 = vmatpush1.msra.mxu0 0.0
    %2303 = vmatprep.subr.mxu0 0.0
    %2304 = vmatpush1.msra.mxu0 0.0
    %2305 = vmatprep.subr.mxu0 0.0
    %2306 = vmatpush1.msra.mxu0 0.0
    %2307 = vmatprep.subr.mxu0 0.0
    %2308 = vmatpush1.msra.mxu0 0.0
    %2309 = vmatprep.subr.mxu0 0.0
    %2310 = vmatpush1.msra.mxu0 0.0
    %2311 = vmatprep.subr.mxu0 0.0
    %2312 = vmatpush1.msra.mxu0 0.0
    %2313 = vmatprep.subr.mxu0 0.0
    %2314 = vmatpush1.msra.mxu0 0.0
    %2315 = vmatprep.subr.mxu0 0.0
    %2316 = vmatpush1.msra.mxu0 0.0
    %2317 = vmatprep.mubr.f32.mxu0 0.0
    %2318 = vmatmul.mubr.f32.gmra.mrb[0].mxu0 %v2242
    %v2319 = vpop.f32.mrb[0].mxu0
    %v2320 = vadd.f32 0.0, %v2319
    %v2321 = vpop.f32.mrb[0].mxu0
    %v2322 = vadd.f32 0.0, %v2321
    %2323 = vmatprep.mubr.f32.mxu0 0.0
    %2324 = vmatmul.mubr.f32.gmra.mrb[0].mxu0 %v2245
    %v2325 = vpop.f32.mrb[0].mxu0
    %v2326 = vadd.f32 0.0, %v2325
    %v2327 = vpop.f32.mrb[0].mxu0
    %v2328 = vadd.f32 0.0, %v2327
    %2329 = vdwg.mxu0
    %v2331 = vsel %vm864, %v2193, 0
    %v2334 = vsel %vm864, %v2194, 0
    %v2337 = vsel %vm871, %v2215, 0
    %v2340 = vsel %vm871, %v2216, 0
    %2342 = vmatprep.subr.mxu0 %v2196
    %2343 = vmatpush1.msra.mxu0 %v2195
    %2344 = vmatprep.subr.mxu0 %v2198
    %2345 = vmatpush1.msra.mxu0 %v2197
    %2346 = vmatprep.subr.mxu0 %v2200
    %2347 = vmatpush1.msra.mxu0 %v2199
    %2348 = vmatprep.subr.mxu0 %v2202
    %2349 = vmatpush1.msra.mxu0 %v2201
    %2350 = vmatprep.subr.mxu0 %v2204
    %2351 = vmatpush1.msra.mxu0 %v2203
    %2352 = vmatprep.subr.mxu0 %v2206
    %2353 = vmatpush1.msra.mxu0 %v2205
    %2354 = vmatprep.subr.mxu0 %v2208
    %2355 = vmatpush1.msra.mxu0 %v2207
    %2356 = vmatprep.subr.mxu0 %v2210
    %2357 = vmatpush1.msra.mxu0 %v2209
    %2358 = vmatprep.subr.mxu0 %v2212
    %2359 = vmatpush1.msra.mxu0 %v2211
    %2360 = vmatprep.subr.mxu0 %v2214
    %2361 = vmatpush1.msra.mxu0 %v2213
    %2362 = vmatprep.subr.mxu0 %v2340
    %2363 = vmatpush1.msra.mxu0 %v2337
    %2364 = vmatprep.subr.mxu0 0.0
    %2365 = vmatpush1.msra.mxu0 0.0
    %2366 = vmatprep.subr.mxu0 0.0
    %2367 = vmatpush1.msra.mxu0 0.0
    %2368 = vmatprep.subr.mxu0 0.0
    %2369 = vmatpush1.msra.mxu0 0.0
    %2370 = vmatprep.subr.mxu0 0.0
    %2371 = vmatpush1.msra.mxu0 0.0
    %2372 = vmatprep.subr.mxu0 0.0
    %2373 = vmatpush1.msra.mxu0 0.0
    %2374 = vmatprep.subr.mxu0 0.0
    %2375 = vmatpush1.msra.mxu0 0.0
    %2376 = vmatprep.subr.mxu0 0.0
    %2377 = vmatpush1.msra.mxu0 0.0
    %2378 = vmatprep.subr.mxu0 0.0
    %2379 = vmatpush1.msra.mxu0 0.0
    %2380 = vmatprep.subr.mxu0 0.0
    %2381 = vmatpush1.msra.mxu0 0.0
    %2382 = vmatprep.subr.mxu0 0.0
    %2383 = vmatpush1.msra.mxu0 0.0
    %2384 = vmatprep.subr.mxu0 0.0
    %2385 = vmatpush1.msra.mxu0 0.0
    %2386 = vmatprep.subr.mxu0 0.0
    %2387 = vmatpush1.msra.mxu0 0.0
    %2388 = vmatprep.subr.mxu0 0.0
    %2389 = vmatpush1.msra.mxu0 0.0
    %2390 = vmatprep.subr.mxu0 0.0
    %2391 = vmatpush1.msra.mxu0 0.0
    %2392 = vmatprep.subr.mxu0 0.0
    %2393 = vmatpush1.msra.mxu0 0.0
    %2394 = vmatprep.subr.mxu0 0.0
    %2395 = vmatpush1.msra.mxu0 0.0
    %2396 = vmatprep.subr.mxu0 0.0
    %2397 = vmatpush1.msra.mxu0 0.0
    %2398 = vmatprep.subr.mxu0 0.0
    %2399 = vmatpush1.msra.mxu0 0.0
    %2400 = vmatprep.subr.mxu0 0.0
    %2401 = vmatpush1.msra.mxu0 0.0
    %2402 = vmatprep.subr.mxu0 0.0
    %2403 = vmatpush1.msra.mxu0 0.0
    %2404 = vmatprep.subr.mxu0 0.0
    %2405 = vmatpush1.msra.mxu0 0.0
    %2406 = vmatprep.mubr.f32.mxu0 0.0
    %2407 = vmatmul.mubr.f32.gmra.mrb[0].mxu0 %v2331
    %v2408 = vpop.f32.mrb[0].mxu0
    %v2409 = vadd.f32 %v2320, %v2408
    %v2410 = vpop.f32.mrb[0].mxu0
    %v2411 = vadd.f32 %v2322, %v2410
    %2412 = vmatprep.mubr.f32.mxu0 0.0
    %2413 = vmatmul.mubr.f32.gmra.mrb[0].mxu0 %v2334
    %v2414 = vpop.f32.mrb[0].mxu0
    %v2415 = vadd.f32 %v2326, %v2414
    %v2416 = vpop.f32.mrb[0].mxu0
    %v2417 = vadd.f32 %v2328, %v2416
    %2418 = vdwg.mxu0
    %v2419 = vld [vmem:[#allocation3 + $0x2] sm:$0xff]
    %v2420 = vld [vmem:[#allocation3 + $0xa] sm:$0x3]
    %v2421 = vld [vmem:[%s1046] sm:$0xff]
    %v2422 = vld [vmem:[%s1046 + $0x8] sm:$0xff]
    %v2423 = vld [vmem:[%s1046 + $0x10] sm:$0xff]
    %v2424 = vld [vmem:[%s1046 + $0x18] sm:$0xff]
    %v2425 = vld [vmem:[%s1046 + $0x20] sm:$0xff]
    %v2426 = vld [vmem:[%s1046 + $0x28] sm:$0xff]
    %v2427 = vld [vmem:[%s1046 + $0x30] sm:$0xff]
    %v2428 = vld [vmem:[%s1046 + $0x38] sm:$0xff]
    %v2429 = vld [vmem:[%s1046 + $0x40] sm:$0xff]
    %v2430 = vld [vmem:[%s1046 + $0x48] sm:$0xff]
    %v2431 = vld [vmem:[%s1046 + $0x50] sm:$0xff]
    %v2432 = vld [vmem:[%s1046 + $0x58] sm:$0xff]
    %v2433 = vld [vmem:[%s1046 + $0x60] sm:$0xff]
    %v2434 = vld [vmem:[%s1046 + $0x68] sm:$0xff]
    %v2435 = vld [vmem:[%s1046 + $0x70] sm:$0xff]
    %v2436 = vld [vmem:[%s1046 + $0x78] sm:$0xff]
    %v2437 = vld [vmem:[%s1046 + $0x80] sm:$0xff]
    %v2438 = vld [vmem:[%s1046 + $0x88] sm:$0xff]
    %v2439 = vld [vmem:[%s1046 + $0x90] sm:$0xff]
    %v2440 = vld [vmem:[%s1046 + $0x98] sm:$0xff]
    %v2441 = vld [vmem:[%s1046 + $0xa0] sm:$0xf]
    %v2442 = vld [vmem:[%s1046 + $0xa8] sm:$0xf]
    %v2444 = vsel %vm864, %v2419, 0
    %v2447 = vsel %vm864, %v2420, 0
    %v2450 = vsel %vm871, %v2441, 0
    %v2453 = vsel %vm871, %v2442, 0
    %2455 = vmatprep.subr.mxu0 %v2422
    %2456 = vmatpush1.msra.mxu0 %v2421
    %2457 = vmatprep.subr.mxu0 %v2424
    %2458 = vmatpush1.msra.mxu0 %v2423
    %2459 = vmatprep.subr.mxu0 %v2426
    %2460 = vmatpush1.msra.mxu0 %v2425
    %2461 = vmatprep.subr.mxu0 %v2428
    %2462 = vmatpush1.msra.mxu0 %v2427
    %2463 = vmatprep.subr.mxu0 %v2430
    %2464 = vmatpush1.msra.mxu0 %v2429
    %2465 = vmatprep.subr.mxu0 %v2432
    %2466 = vmatpush1.msra.mxu0 %v2431
    %2467 = vmatprep.subr.mxu0 %v2434
    %2468 = vmatpush1.msra.mxu0 %v2433
    %2469 = vmatprep.subr.mxu0 %v2436
    %2470 = vmatpush1.msra.mxu0 %v2435
    %2471 = vmatprep.subr.mxu0 %v2438
    %2472 = vmatpush1.msra.mxu0 %v2437
    %2473 = vmatprep.subr.mxu0 %v2440
    %2474 = vmatpush1.msra.mxu0 %v2439
    %2475 = vmatprep.subr.mxu0 %v2453
    %2476 = vmatpush1.msra.mxu0 %v2450
    %2477 = vmatprep.subr.mxu0 0.0
    %2478 = vmatpush1.msra.mxu0 0.0
    %2479 = vmatprep.subr.mxu0 0.0
    %2480 = vmatpush1.msra.mxu0 0.0
    %2481 = vmatprep.subr.mxu0 0.0
    %2482 = vmatpush1.msra.mxu0 0.0
    %2483 = vmatprep.subr.mxu0 0.0
    %2484 = vmatpush1.msra.mxu0 0.0
    %2485 = vmatprep.subr.mxu0 0.0
    %2486 = vmatpush1.msra.mxu0 0.0
    %2487 = vmatprep.subr.mxu0 0.0
    %2488 = vmatpush1.msra.mxu0 0.0
    %2489 = vmatprep.subr.mxu0 0.0
    %2490 = vmatpush1.msra.mxu0 0.0
    %2491 = vmatprep.subr.mxu0 0.0
    %2492 = vmatpush1.msra.mxu0 0.0
    %2493 = vmatprep.subr.mxu0 0.0
    %2494 = vmatpush1.msra.mxu0 0.0
    %2495 = vmatprep.subr.mxu0 0.0
    %2496 = vmatpush1.msra.mxu0 0.0
    %2497 = vmatprep.subr.mxu0 0.0
    %2498 = vmatpush1.msra.mxu0 0.0
    %2499 = vmatprep.subr.mxu0 0.0
    %2500 = vmatpush1.msra.mxu0 0.0
    %2501 = vmatprep.subr.mxu0 0.0
    %2502 = vmatpush1.msra.mxu0 0.0
    %2503 = vmatprep.subr.mxu0 0.0
    %2504 = vmatpush1.msra.mxu0 0.0
    %2505 = vmatprep.subr.mxu0 0.0
    %2506 = vmatpush1.msra.mxu0 0.0
    %2507 = vmatprep.subr.mxu0 0.0
    %2508 = vmatpush1.msra.mxu0 0.0
    %2509 = vmatprep.subr.mxu0 0.0
    %2510 = vmatpush1.msra.mxu0 0.0
    %2511 = vmatprep.subr.mxu0 0.0
    %2512 = vmatpush1.msra.mxu0 0.0
    %2513 = vmatprep.subr.mxu0 0.0
    %2514 = vmatpush1.msra.mxu0 0.0
    %2515 = vmatprep.subr.mxu0 0.0
    %2516 = vmatpush1.msra.mxu0 0.0
    %2517 = vmatprep.subr.mxu0 0.0
    %2518 = vmatpush1.msra.mxu0 0.0
    %2519 = vmatprep.mubr.f32.mxu0 0.0
    %2520 = vmatmul.mubr.f32.gmra.mrb[0].mxu0 %v2444
    %v2521 = vpop.f32.mrb[0].mxu0
    %v2522 = vadd.f32 0.0, %v2521
    %v2523 = vpop.f32.mrb[0].mxu0
    %v2524 = vadd.f32 0.0, %v2523
    %2525 = vmatprep.mubr.f32.mxu0 0.0
    %2526 = vmatmul.mubr.f32.gmra.mrb[0].mxu0 %v2447
    %v2527 = vpop.f32.mrb[0].mxu0
    %v2528 = vadd.f32 0.0, %v2527
    %v2529 = vpop.f32.mrb[0].mxu0
    %v2530 = vadd.f32 0.0, %v2529
    %2531 = vdwg.mxu0
    %v2532 = vadd.f32 %v2409, %v2522
    %v2533 = vadd.f32 %v2411, %v2524
    %v2534 = vadd.f32 %v2415, %v2528
    %v2535 = vadd.f32 %v2417, %v2530
    %v2536 = vld [vmem:[#allocation3 + $0x3] sm:$0xff]
    %v2537 = vld [vmem:[#allocation3 + $0xb] sm:$0x3]
    %v2538 = vld [vmem:[%s1164] sm:$0xff]
    %v2539 = vld [vmem:[%s1164 + $0x8] sm:$0xff]
    %v2540 = vld [vmem:[%s1164 + $0x10] sm:$0xff]
    %v2541 = vld [vmem:[%s1164 + $0x18] sm:$0xff]
    %v2542 = vld [vmem:[%s1164 + $0x20] sm:$0xff]
    %v2543 = vld [vmem:[%s1164 + $0x28] sm:$0xff]
    %v2544 = vld [vmem:[%s1164 + $0x30] sm:$0xff]
    %v2545 = vld [vmem:[%s1164 + $0x38] sm:$0xff]
    %v2546 = vld [vmem:[%s1164 + $0x40] sm:$0xff]
    %v2547 = vld [vmem:[%s1164 + $0x48] sm:$0xff]
    %v2548 = vld [vmem:[%s1164 + $0x50] sm:$0xff]
    %v2549 = vld [vmem:[%s1164 + $0x58] sm:$0xff]
    %v2550 = vld [vmem:[%s1164 + $0x60] sm:$0xff]
    %v2551 = vld [vmem:[%s1164 + $0x68] sm:$0xff]
    %v2552 = vld [vmem:[%s1164 + $0x70] sm:$0xff]
    %v2553 = vld [vmem:[%s1164 + $0x78] sm:$0xff]
    %v2554 = vld [vmem:[%s1164 + $0x80] sm:$0xff]
    %v2555 = vld [vmem:[%s1164 + $0x88] sm:$0xff]
    %v2556 = vld [vmem:[%s1164 + $0x90] sm:$0xff]
    %v2557 = vld [vmem:[%s1164 + $0x98] sm:$0xff]
    %v2558 = vld [vmem:[%s1164 + $0xa0] sm:$0xf]
    %v2559 = vld [vmem:[%s1164 + $0xa8] sm:$0xf]
    %v2561 = vsel %vm864, %v2536, 0
    %v2564 = vsel %vm864, %v2537, 0
    %v2567 = vsel %vm871, %v2558, 0
    %v2570 = vsel %vm871, %v2559, 0
    %2572 = vmatprep.subr.mxu0 %v2539
    %2573 = vmatpush1.msra.mxu0 %v2538
    %2574 = vmatprep.subr.mxu0 %v2541
    %2575 = vmatpush1.msra.mxu0 %v2540
    %2576 = vmatprep.subr.mxu0 %v2543
    %2577 = vmatpush1.msra.mxu0 %v2542
    %2578 = vmatprep.subr.mxu0 %v2545
    %2579 = vmatpush1.msra.mxu0 %v2544
    %2580 = vmatprep.subr.mxu0 %v2547
    %2581 = vmatpush1.msra.mxu0 %v2546
    %2582 = vmatprep.subr.mxu0 %v2549
    %2583 = vmatpush1.msra.mxu0 %v2548
    %2584 = vmatprep.subr.mxu0 %v2551
    %2585 = vmatpush1.msra.mxu0 %v2550
    %2586 = vmatprep.subr.mxu0 %v2553
    %2587 = vmatpush1.msra.mxu0 %v2552
    %2588 = vmatprep.subr.mxu0 %v2555
    %2589 = vmatpush1.msra.mxu0 %v2554
    %2590 = vmatprep.subr.mxu0 %v2557
    %2591 = vmatpush1.msra.mxu0 %v2556
    %2592 = vmatprep.subr.mxu0 %v2570
    %2593 = vmatpush1.msra.mxu0 %v2567
    %2594 = vmatprep.subr.mxu0 0.0
    %2595 = vmatpush1.msra.mxu0 0.0
    %2596 = vmatprep.subr.mxu0 0.0
    %2597 = vmatpush1.msra.mxu0 0.0
    %2598 = vmatprep.subr.mxu0 0.0
    %2599 = vmatpush1.msra.mxu0 0.0
    %2600 = vmatprep.subr.mxu0 0.0
    %2601 = vmatpush1.msra.mxu0 0.0
    %2602 = vmatprep.subr.mxu0 0.0
    %2603 = vmatpush1.msra.mxu0 0.0
    %2604 = vmatprep.subr.mxu0 0.0
    %2605 = vmatpush1.msra.mxu0 0.0
    %2606 = vmatprep.subr.mxu0 0.0
    %2607 = vmatpush1.msra.mxu0 0.0
    %2608 = vmatprep.subr.mxu0 0.0
    %2609 = vmatpush1.msra.mxu0 0.0
    %2610 = vmatprep.subr.mxu0 0.0
    %2611 = vmatpush1.msra.mxu0 0.0
    %2612 = vmatprep.subr.mxu0 0.0
    %2613 = vmatpush1.msra.mxu0 0.0
    %2614 = vmatprep.subr.mxu0 0.0
    %2615 = vmatpush1.msra.mxu0 0.0
    %2616 = vmatprep.subr.mxu0 0.0
    %2617 = vmatpush1.msra.mxu0 0.0
    %2618 = vmatprep.subr.mxu0 0.0
    %2619 = vmatpush1.msra.mxu0 0.0
    %2620 = vmatprep.subr.mxu0 0.0
    %2621 = vmatpush1.msra.mxu0 0.0
    %2622 = vmatprep.subr.mxu0 0.0
    %2623 = vmatpush1.msra.mxu0 0.0
    %2624 = vmatprep.subr.mxu0 0.0
    %2625 = vmatpush1.msra.mxu0 0.0
    %2626 = vmatprep.subr.mxu0 0.0
    %2627 = vmatpush1.msra.mxu0 0.0
    %2628 = vmatprep.subr.mxu0 0.0
    %2629 = vmatpush1.msra.mxu0 0.0
    %2630 = vmatprep.subr.mxu0 0.0
    %2631 = vmatpush1.msra.mxu0 0.0
    %2632 = vmatprep.subr.mxu0 0.0
    %2633 = vmatpush1.msra.mxu0 0.0
    %2634 = vmatprep.subr.mxu0 0.0
    %2635 = vmatpush1.msra.mxu0 0.0
    %2636 = vmatprep.mubr.f32.mxu0 0.0
    %2637 = vmatmul.mubr.f32.gmra.mrb[0].mxu0 %v2561
    %v2638 = vpop.f32.mrb[0].mxu0
    %v2639 = vadd.f32 0.0, %v2638
    %v2640 = vpop.f32.mrb[0].mxu0
    %v2641 = vadd.f32 0.0, %v2640
    %2642 = vmatprep.mubr.f32.mxu0 0.0
    %2643 = vmatmul.mubr.f32.gmra.mrb[0].mxu0 %v2564
    %v2644 = vpop.f32.mrb[0].mxu0
    %v2645 = vadd.f32 0.0, %v2644
    %v2646 = vpop.f32.mrb[0].mxu0
    %v2647 = vadd.f32 0.0, %v2646
    %2648 = vdwg.mxu0
    %v2649 = vadd.f32 %v2532, %v2639
    %v2650 = vadd.f32 %v2533, %v2641
    %v2651 = vadd.f32 %v2534, %v2645
    %v2652 = vadd.f32 %v2535, %v2647
    %v2653 = vld [vmem:[#allocation3 + $0x4] sm:$0xff]
    %v2654 = vld [vmem:[#allocation3 + $0xc] sm:$0x3]
    %v2655 = vld [vmem:[%s1282] sm:$0xff]
    %v2656 = vld [vmem:[%s1282 + $0x8] sm:$0xff]
    %v2657 = vld [vmem:[%s1282 + $0x10] sm:$0xff]
    %v2658 = vld [vmem:[%s1282 + $0x18] sm:$0xff]
    %v2659 = vld [vmem:[%s1282 + $0x20] sm:$0xff]
    %v2660 = vld [vmem:[%s1282 + $0x28] sm:$0xff]
    %v2661 = vld [vmem:[%s1282 + $0x30] sm:$0xff]
    %v2662 = vld [vmem:[%s1282 + $0x38] sm:$0xff]
    %v2663 = vld [vmem:[%s1282 + $0x40] sm:$0xff]
    %v2664 = vld [vmem:[%s1282 + $0x48] sm:$0xff]
    %v2665 = vld [vmem:[%s1282 + $0x50] sm:$0xff]
    %v2666 = vld [vmem:[%s1282 + $0x58] sm:$0xff]
    %v2667 = vld [vmem:[%s1282 + $0x60] sm:$0xff]
    %v2668 = vld [vmem:[%s1282 + $0x68] sm:$0xff]
    %v2669 = vld [vmem:[%s1282 + $0x70] sm:$0xff]
    %v2670 = vld [vmem:[%s1282 + $0x78] sm:$0xff]
    %v2671 = vld [vmem:[%s1282 + $0x80] sm:$0xff]
    %v2672 = vld [vmem:[%s1282 + $0x88] sm:$0xff]
    %v2673 = vld [vmem:[%s1282 + $0x90] sm:$0xff]
    %v2674 = vld [vmem:[%s1282 + $0x98] sm:$0xff]
    %v2675 = vld [vmem:[%s1282 + $0xa0] sm:$0xf]
    %v2676 = vld [vmem:[%s1282 + $0xa8] sm:$0xf]
    %v2678 = vsel %vm864, %v2653, 0
    %v2681 = vsel %vm864, %v2654, 0
    %v2684 = vsel %vm871, %v2675, 0
    %v2687 = vsel %vm871, %v2676, 0
    %2689 = vmatprep.subr.mxu0 %v2656
    %2690 = vmatpush1.msra.mxu0 %v2655
    %2691 = vmatprep.subr.mxu0 %v2658
    %2692 = vmatpush1.msra.mxu0 %v2657
    %2693 = vmatprep.subr.mxu0 %v2660
    %2694 = vmatpush1.msra.mxu0 %v2659
    %2695 = vmatprep.subr.mxu0 %v2662
    %2696 = vmatpush1.msra.mxu0 %v2661
    %2697 = vmatprep.subr.mxu0 %v2664
    %2698 = vmatpush1.msra.mxu0 %v2663
    %2699 = vmatprep.subr.mxu0 %v2666
    %2700 = vmatpush1.msra.mxu0 %v2665
    %2701 = vmatprep.subr.mxu0 %v2668
    %2702 = vmatpush1.msra.mxu0 %v2667
    %2703 = vmatprep.subr.mxu0 %v2670
    %2704 = vmatpush1.msra.mxu0 %v2669
    %2705 = vmatprep.subr.mxu0 %v2672
    %2706 = vmatpush1.msra.mxu0 %v2671
    %2707 = vmatprep.subr.mxu0 %v2674
    %2708 = vmatpush1.msra.mxu0 %v2673
    %2709 = vmatprep.subr.mxu0 %v2687
    %2710 = vmatpush1.msra.mxu0 %v2684
    %2711 = vmatprep.subr.mxu0 0.0
    %2712 = vmatpush1.msra.mxu0 0.0
    %2713 = vmatprep.subr.mxu0 0.0
    %2714 = vmatpush1.msra.mxu0 0.0
    %2715 = vmatprep.subr.mxu0 0.0
    %2716 = vmatpush1.msra.mxu0 0.0
    %2717 = vmatprep.subr.mxu0 0.0
    %2718 = vmatpush1.msra.mxu0 0.0
    %2719 = vmatprep.subr.mxu0 0.0
    %2720 = vmatpush1.msra.mxu0 0.0
    %2721 = vmatprep.subr.mxu0 0.0
    %2722 = vmatpush1.msra.mxu0 0.0
    %2723 = vmatprep.subr.mxu0 0.0
    %2724 = vmatpush1.msra.mxu0 0.0
    %2725 = vmatprep.subr.mxu0 0.0
    %2726 = vmatpush1.msra.mxu0 0.0
    %2727 = vmatprep.subr.mxu0 0.0
    %2728 = vmatpush1.msra.mxu0 0.0
    %2729 = vmatprep.subr.mxu0 0.0
    %2730 = vmatpush1.msra.mxu0 0.0
    %2731 = vmatprep.subr.mxu0 0.0
    %2732 = vmatpush1.msra.mxu0 0.0
    %2733 = vmatprep.subr.mxu0 0.0
    %2734 = vmatpush1.msra.mxu0 0.0
    %2735 = vmatprep.subr.mxu0 0.0
    %2736 = vmatpush1.msra.mxu0 0.0
    %2737 = vmatprep.subr.mxu0 0.0
    %2738 = vmatpush1.msra.mxu0 0.0
    %2739 = vmatprep.subr.mxu0 0.0
    %2740 = vmatpush1.msra.mxu0 0.0
    %2741 = vmatprep.subr.mxu0 0.0
    %2742 = vmatpush1.msra.mxu0 0.0
    %2743 = vmatprep.subr.mxu0 0.0
    %2744 = vmatpush1.msra.mxu0 0.0
    %2745 = vmatprep.subr.mxu0 0.0
    %2746 = vmatpush1.msra.mxu0 0.0
    %2747 = vmatprep.subr.mxu0 0.0
    %2748 = vmatpush1.msra.mxu0 0.0
    %2749 = vmatprep.subr.mxu0 0.0
    %2750 = vmatpush1.msra.mxu0 0.0
    %2751 = vmatprep.subr.mxu0 0.0
    %2752 = vmatpush1.msra.mxu0 0.0
    %2753 = vmatprep.mubr.f32.mxu0 0.0
    %2754 = vmatmul.mubr.f32.gmra.mrb[0].mxu0 %v2678
    %v2755 = vpop.f32.mrb[0].mxu0
    %v2756 = vadd.f32 0.0, %v2755
    %v2757 = vpop.f32.mrb[0].mxu0
    %v2758 = vadd.f32 0.0, %v2757
    %2759 = vmatprep.mubr.f32.mxu0 0.0
    %2760 = vmatmul.mubr.f32.gmra.mrb[0].mxu0 %v2681
    %v2761 = vpop.f32.mrb[0].mxu0
    %v2762 = vadd.f32 0.0, %v2761
    %v2763 = vpop.f32.mrb[0].mxu0
    %v2764 = vadd.f32 0.0, %v2763
    %2765 = vdwg.mxu0
    %v2766 = vadd.f32 %v2649, %v2756
    %v2767 = vadd.f32 %v2650, %v2758
    %v2768 = vadd.f32 %v2651, %v2762
    %v2769 = vadd.f32 %v2652, %v2764
    %v2770 = vld [vmem:[%s4] sm:$0x3]
    %v2772 = vlaneseq
    %v2773 = vshrl.u32 %v2772, 7
    %v2774 = vsub.s32 0, %v2773
    %v2775 = vrot.slane %v2770, %v2774
    %v2776 = vlaneseq
    %v2777 = vshrl.u32 %v2776, 7
    %v2778 = vsub.s32 1, %v2777
    %v2779 = vrot.slane %v2770, %v2778
    %v2782 = vadd.f32 %v2766, %v2775
    %v2783 = vadd.f32 %v2767, %v2779
    %v2784 = vadd.f32 %v2768, %v2775
    %v2785 = vadd.f32 %v2769, %v2779
    %2786 = vst [vmem:[#allocation4] sm:$0xff] %v2782
    %2787 = vst [vmem:[#allocation4 + $0x8] sm:$0xff] %v2783
    %2788 = vst [vmem:[#allocation4 + $0x10] sm:$0x3] %v2784
    %2789 = vst [vmem:[#allocation4 + $0x18] sm:$0x3] %v2785
    %v2790 = vld [vmem:[#allocation4] ss:$0 sm:$0xff]
    %v2791 = vld [vmem:[#allocation4 + $0x8] ss:$0 sm:$0xff]
    %v2792 = vmax.f32 %v2790, %v2791
    %v2793 = vld [vmem:[#allocation4 + $0x1] ss:$0 sm:$0xff]
    %v2794 = vld [vmem:[#allocation4 + $0x9] ss:$0 sm:$0xff]
    %v2795 = vmax.f32 %v2793, %v2794
    %v2796 = vmax.f32 %v2792, %v2795
    %2797 = vst.msk [vmem:[#allocation5 + $0x1] sm:$0x1] %vm1425, %v2796
    %v2798 = vld [vmem:[#allocation4 + $0x2] ss:$0 sm:$0xff]
    %v2799 = vld [vmem:[#allocation4 + $0xa] ss:$0 sm:$0xff]
    %v2800 = vmax.f32 %v2798, %v2799
    %v2801 = vld [vmem:[#allocation4 + $0x3] ss:$0 sm:$0xff]
    %v2802 = vld [vmem:[#allocation4 + $0xb] ss:$0 sm:$0xff]
    %v2803 = vmax.f32 %v2801, %v2802
    %v2804 = vmax.f32 %v2800, %v2803
    %2805 = vst.msk [vmem:[%s1434 + $0x1] sm:$0x1] %vm1425, %v2804
    %v2806 = vld [vmem:[#allocation4 + $0x4] ss:$0 sm:$0xff]
    %v2807 = vld [vmem:[#allocation4 + $0xc] ss:$0 sm:$0xff]
    %v2808 = vmax.f32 %v2806, %v2807
    %v2809 = vld [vmem:[#allocation4 + $0x5] ss:$0 sm:$0xff]
    %v2810 = vld [vmem:[#allocation4 + $0xd] ss:$0 sm:$0xff]
    %v2811 = vmax.f32 %v2809, %v2810
    %v2812 = vmax.f32 %v2808, %v2811
    %2813 = vst.msk [vmem:[%s1443 + $0x1] sm:$0x1] %vm1425, %v2812
    %v2814 = vld [vmem:[#allocation4 + $0x6] ss:$0 sm:$0xff]
    %v2815 = vld [vmem:[#allocation4 + $0xe] ss:$0 sm:$0xff]
    %v2816 = vmax.f32 %v2814, %v2815
    %v2817 = vld [vmem:[#allocation4 + $0x7] ss:$0 sm:$0xff]
    %v2818 = vld [vmem:[#allocation4 + $0xf] ss:$0 sm:$0xff]
    %v2819 = vmax.f32 %v2817, %v2818
    %v2820 = vmax.f32 %v2816, %v2819
    %2821 = vst.msk [vmem:[%s1452 + $0x1] sm:$0x1] %vm1425, %v2820
    %v2822 = vld [vmem:[#allocation4 + $0x10] ss:$0 sm:$0xff]
    %v2823 = vld [vmem:[#allocation4 + $0x18] ss:$0 sm:$0xff]
    %v2824 = vmax.f32 %v2822, %v2823
    %v2825 = vld [vmem:[#allocation4 + $0x11] ss:$0 sm:$0xff]
    %v2826 = vld [vmem:[#allocation4 + $0x19] ss:$0 sm:$0xff]
    %v2827 = vmax.f32 %v2825, %v2826
    %v2828 = vmax.f32 %v2824, %v2827
    %2829 = vst.msk [vmem:[%s1461 + $0x1] sm:$0x1] %vm1425, %v2828
    %v2830 = vld [vmem:[#allocation5] sm:$0x3]
    %v2831 = vld [vmem:[#allocation11] sm:$0xff]
    %v2832 = vld [vmem:[#allocation11 + $0x8] sm:$0xff]
    %v2833 = vld [vmem:[#allocation11 + $0x10] sm:$0xff]
    %v2834 = vld [vmem:[#allocation11 + $0x18] sm:$0xff]
    %v2835 = vld [vmem:[#allocation11 + $0x20] sm:$0xff]
    %v2836 = vld [vmem:[#allocation11 + $0x28] sm:$0xff]
    %v2837 = vld [vmem:[#allocation11 + $0x30] sm:$0xff]
    %v2838 = vld [vmem:[#allocation11 + $0x38] sm:$0xff]
    %v2839 = vld [vmem:[#allocation11 + $0x40] sm:$0xff]
    %v2840 = vld [vmem:[#allocation11 + $0x48] sm:$0xff]
    %v2841 = vld [vmem:[%s1434] sm:$0x3]
    %s2842 = scalar_lea.vmem [#allocation11], 80
    %v2843 = vld [vmem:[%s2842] sm:$0xff]
    %v2844 = vld [vmem:[%s2842 + $0x8] sm:$0xff]
    %v2845 = vld [vmem:[%s2842 + $0x10] sm:$0xff]
    %v2846 = vld [vmem:[%s2842 + $0x18] sm:$0xff]
    %v2847 = vld [vmem:[%s2842 + $0x20] sm:$0xff]
    %v2848 = vld [vmem:[%s2842 + $0x28] sm:$0xff]
    %v2849 = vld [vmem:[%s2842 + $0x30] sm:$0xff]
    %v2850 = vld [vmem:[%s2842 + $0x38] sm:$0xff]
    %v2851 = vld [vmem:[%s2842 + $0x40] sm:$0xff]
    %v2852 = vld [vmem:[%s2842 + $0x48] sm:$0xff]
    %vm2853 = vcmask 654336
    %v2855 = vsel %vm2853, %v2841, 0
    %2857 = vmatprep.subr.mxu0 0.0
    %2858 = vmatpush1.msra.mxu0 %v2843
    %2859 = vmatprep.subr.mxu0 0.0
    %2860 = vmatpush1.msra.mxu0 %v2844
    %2861 = vmatprep.subr.mxu0 0.0
    %2862 = vmatpush1.msra.mxu0 %v2845
    %2863 = vmatprep.subr.mxu0 0.0
    %2864 = vmatpush1.msra.mxu0 %v2846
    %2865 = vmatprep.subr.mxu0 0.0
    %2866 = vmatpush1.msra.mxu0 %v2847
    %2867 = vmatprep.subr.mxu0 0.0
    %2868 = vmatpush1.msra.mxu0 %v2848
    %2869 = vmatprep.subr.mxu0 0.0
    %2870 = vmatpush1.msra.mxu0 %v2849
    %2871 = vmatprep.subr.mxu0 0.0
    %2872 = vmatpush1.msra.mxu0 %v2850
    %2873 = vmatprep.subr.mxu0 0.0
    %2874 = vmatpush1.msra.mxu0 %v2851
    %2875 = vmatprep.subr.mxu0 0.0
    %2876 = vmatpush1.msra.mxu0 %v2852
    %2877 = vmatprep.subr.mxu0 0.0
    %2878 = vmatpush1.msra.mxu0 0.0
    %2879 = vmatprep.subr.mxu0 0.0
    %2880 = vmatpush1.msra.mxu0 0.0
    %2881 = vmatprep.subr.mxu0 0.0
    %2882 = vmatpush1.msra.mxu0 0.0
    %2883 = vmatprep.subr.mxu0 0.0
    %2884 = vmatpush1.msra.mxu0 0.0
    %2885 = vmatprep.subr.mxu0 0.0
    %2886 = vmatpush1.msra.mxu0 0.0
    %2887 = vmatprep.subr.mxu0 0.0
    %2888 = vmatpush1.msra.mxu0 0.0
    %2889 = vmatprep.subr.mxu0 0.0
    %2890 = vmatpush1.msra.mxu0 0.0
    %2891 = vmatprep.subr.mxu0 0.0
    %2892 = vmatpush1.msra.mxu0 0.0
    %2893 = vmatprep.subr.mxu0 0.0
    %2894 = vmatpush1.msra.mxu0 0.0
    %2895 = vmatprep.subr.mxu0 0.0
    %2896 = vmatpush1.msra.mxu0 0.0
    %2897 = vmatprep.subr.mxu0 0.0
    %2898 = vmatpush1.msra.mxu0 0.0
    %2899 = vmatprep.subr.mxu0 0.0
    %2900 = vmatpush1.msra.mxu0 0.0
    %2901 = vmatprep.subr.mxu0 0.0
    %2902 = vmatpush1.msra.mxu0 0.0
    %2903 = vmatprep.subr.mxu0 0.0
    %2904 = vmatpush1.msra.mxu0 0.0
    %2905 = vmatprep.subr.mxu0 0.0
    %2906 = vmatpush1.msra.mxu0 0.0
    %2907 = vmatprep.subr.mxu0 0.0
    %2908 = vmatpush1.msra.mxu0 0.0
    %2909 = vmatprep.subr.mxu0 0.0
    %2910 = vmatpush1.msra.mxu0 0.0
    %2911 = vmatprep.subr.mxu0 0.0
    %2912 = vmatpush1.msra.mxu0 0.0
    %2913 = vmatprep.subr.mxu0 0.0
    %2914 = vmatpush1.msra.mxu0 0.0
    %2915 = vmatprep.subr.mxu0 0.0
    %2916 = vmatpush1.msra.mxu0 0.0
    %2917 = vmatprep.subr.mxu0 0.0
    %2918 = vmatpush1.msra.mxu0 0.0
    %2919 = vmatprep.subr.mxu0 0.0
    %2920 = vmatpush1.msra.mxu0 0.0
    %2921 = vmatprep.mubr.f32.mxu0 0.0
    %2922 = vmatmul.mubr.f32.gmra.mrb[0].mxu0 %v2855
    %v2923 = vpop.f32.mrb[0].mxu0
    %v2924 = vadd.f32 0.0, %v2923
    %v2925 = vpop.f32.mrb[0].mxu0
    %2926 = vdwg.mxu0
    %v2928 = vsel %vm2853, %v2830, 0
    %2930 = vmatprep.subr.mxu0 0.0
    %2931 = vmatpush1.msra.mxu0 %v2831
    %2932 = vmatprep.subr.mxu0 0.0
    %2933 = vmatpush1.msra.mxu0 %v2832
    %2934 = vmatprep.subr.mxu0 0.0
    %2935 = vmatpush1.msra.mxu0 %v2833
    %2936 = vmatprep.subr.mxu0 0.0
    %2937 = vmatpush1.msra.mxu0 %v2834
    %2938 = vmatprep.subr.mxu0 0.0
    %2939 = vmatpush1.msra.mxu0 %v2835
    %2940 = vmatprep.subr.mxu0 0.0
    %2941 = vmatpush1.msra.mxu0 %v2836
    %2942 = vmatprep.subr.mxu0 0.0
    %2943 = vmatpush1.msra.mxu0 %v2837
    %2944 = vmatprep.subr.mxu0 0.0
    %2945 = vmatpush1.msra.mxu0 %v2838
    %2946 = vmatprep.subr.mxu0 0.0
    %2947 = vmatpush1.msra.mxu0 %v2839
    %2948 = vmatprep.subr.mxu0 0.0
    %2949 = vmatpush1.msra.mxu0 %v2840
    %2950 = vmatprep.subr.mxu0 0.0
    %2951 = vmatpush1.msra.mxu0 0.0
    %2952 = vmatprep.subr.mxu0 0.0
    %2953 = vmatpush1.msra.mxu0 0.0
    %2954 = vmatprep.subr.mxu0 0.0
    %2955 = vmatpush1.msra.mxu0 0.0
    %2956 = vmatprep.subr.mxu0 0.0
    %2957 = vmatpush1.msra.mxu0 0.0
    %2958 = vmatprep.subr.mxu0 0.0
    %2959 = vmatpush1.msra.mxu0 0.0
    %2960 = vmatprep.subr.mxu0 0.0
    %2961 = vmatpush1.msra.mxu0 0.0
    %2962 = vmatprep.subr.mxu0 0.0
    %2963 = vmatpush1.msra.mxu0 0.0
    %2964 = vmatprep.subr.mxu0 0.0
    %2965 = vmatpush1.msra.mxu0 0.0
    %2966 = vmatprep.subr.mxu0 0.0
    %2967 = vmatpush1.msra.mxu0 0.0
    %2968 = vmatprep.subr.mxu0 0.0
    %2969 = vmatpush1.msra.mxu0 0.0
    %2970 = vmatprep.subr.mxu0 0.0
    %2971 = vmatpush1.msra.mxu0 0.0
    %2972 = vmatprep.subr.mxu0 0.0
    %2973 = vmatpush1.msra.mxu0 0.0
    %2974 = vmatprep.subr.mxu0 0.0
    %2975 = vmatpush1.msra.mxu0 0.0
    %2976 = vmatprep.subr.mxu0 0.0
    %2977 = vmatpush1.msra.mxu0 0.0
    %2978 = vmatprep.subr.mxu0 0.0
    %2979 = vmatpush1.msra.mxu0 0.0
    %2980 = vmatprep.subr.mxu0 0.0
    %2981 = vmatpush1.msra.mxu0 0.0
    %2982 = vmatprep.subr.mxu0 0.0
    %2983 = vmatpush1.msra.mxu0 0.0
    %2984 = vmatprep.subr.mxu0 0.0
    %2985 = vmatpush1.msra.mxu0 0.0
    %2986 = vmatprep.subr.mxu0 0.0
    %2987 = vmatpush1.msra.mxu0 0.0
    %2988 = vmatprep.subr.mxu0 0.0
    %2989 = vmatpush1.msra.mxu0 0.0
    %2990 = vmatprep.subr.mxu0 0.0
    %2991 = vmatpush1.msra.mxu0 0.0
    %2992 = vmatprep.subr.mxu0 0.0
    %2993 = vmatpush1.msra.mxu0 0.0
    %2994 = vmatprep.mubr.f32.mxu0 0.0
    %2995 = vmatmul.mubr.f32.gmra.mrb[0].mxu0 %v2928
    %v2996 = vpop.f32.mrb[0].mxu0
    %v2997 = vadd.f32 %v2924, %v2996
    %v2998 = vpop.f32.mrb[0].mxu0
    %2999 = vdwg.mxu0
    %v3000 = vld [vmem:[%s1443] sm:$0x3]
    %s3001 = scalar_lea.vmem [#allocation11], 160
    %v3002 = vld [vmem:[%s3001] sm:$0xff]
    %v3003 = vld [vmem:[%s3001 + $0x8] sm:$0xff]
    %v3004 = vld [vmem:[%s3001 + $0x10] sm:$0xff]
    %v3005 = vld [vmem:[%s3001 + $0x18] sm:$0xff]
    %v3006 = vld [vmem:[%s3001 + $0x20] sm:$0xff]
    %v3007 = vld [vmem:[%s3001 + $0x28] sm:$0xff]
    %v3008 = vld [vmem:[%s3001 + $0x30] sm:$0xff]
    %v3009 = vld [vmem:[%s3001 + $0x38] sm:$0xff]
    %v3010 = vld [vmem:[%s3001 + $0x40] sm:$0xff]
    %v3011 = vld [vmem:[%s3001 + $0x48] sm:$0xff]
    %v3013 = vsel %vm2853, %v3000, 0
    %3015 = vmatprep.subr.mxu0 0.0
    %3016 = vmatpush1.msra.mxu0 %v3002
    %3017 = vmatprep.subr.mxu0 0.0
    %3018 = vmatpush1.msra.mxu0 %v3003
    %3019 = vmatprep.subr.mxu0 0.0
    %3020 = vmatpush1.msra.mxu0 %v3004
    %3021 = vmatprep.subr.mxu0 0.0
    %3022 = vmatpush1.msra.mxu0 %v3005
    %3023 = vmatprep.subr.mxu0 0.0
    %3024 = vmatpush1.msra.mxu0 %v3006
    %3025 = vmatprep.subr.mxu0 0.0
    %3026 = vmatpush1.msra.mxu0 %v3007
    %3027 = vmatprep.subr.mxu0 0.0
    %3028 = vmatpush1.msra.mxu0 %v3008
    %3029 = vmatprep.subr.mxu0 0.0
    %3030 = vmatpush1.msra.mxu0 %v3009
    %3031 = vmatprep.subr.mxu0 0.0
    %3032 = vmatpush1.msra.mxu0 %v3010
    %3033 = vmatprep.subr.mxu0 0.0
    %3034 = vmatpush1.msra.mxu0 %v3011
    %3035 = vmatprep.subr.mxu0 0.0
    %3036 = vmatpush1.msra.mxu0 0.0
    %3037 = vmatprep.subr.mxu0 0.0
    %3038 = vmatpush1.msra.mxu0 0.0
    %3039 = vmatprep.subr.mxu0 0.0
    %3040 = vmatpush1.msra.mxu0 0.0
    %3041 = vmatprep.subr.mxu0 0.0
    %3042 = vmatpush1.msra.mxu0 0.0
    %3043 = vmatprep.subr.mxu0 0.0
    %3044 = vmatpush1.msra.mxu0 0.0
    %3045 = vmatprep.subr.mxu0 0.0
    %3046 = vmatpush1.msra.mxu0 0.0
    %3047 = vmatprep.subr.mxu0 0.0
    %3048 = vmatpush1.msra.mxu0 0.0
    %3049 = vmatprep.subr.mxu0 0.0
    %3050 = vmatpush1.msra.mxu0 0.0
    %3051 = vmatprep.subr.mxu0 0.0
    %3052 = vmatpush1.msra.mxu0 0.0
    %3053 = vmatprep.subr.mxu0 0.0
    %3054 = vmatpush1.msra.mxu0 0.0
    %3055 = vmatprep.subr.mxu0 0.0
    %3056 = vmatpush1.msra.mxu0 0.0
    %3057 = vmatprep.subr.mxu0 0.0
    %3058 = vmatpush1.msra.mxu0 0.0
    %3059 = vmatprep.subr.mxu0 0.0
    %3060 = vmatpush1.msra.mxu0 0.0
    %3061 = vmatprep.subr.mxu0 0.0
    %3062 = vmatpush1.msra.mxu0 0.0
    %3063 = vmatprep.subr.mxu0 0.0
    %3064 = vmatpush1.msra.mxu0 0.0
    %3065 = vmatprep.subr.mxu0 0.0
    %3066 = vmatpush1.msra.mxu0 0.0
    %3067 = vmatprep.subr.mxu0 0.0
    %3068 = vmatpush1.msra.mxu0 0.0
    %3069 = vmatprep.subr.mxu0 0.0
    %3070 = vmatpush1.msra.mxu0 0.0
    %3071 = vmatprep.subr.mxu0 0.0
    %3072 = vmatpush1.msra.mxu0 0.0
    %3073 = vmatprep.subr.mxu0 0.0
    %3074 = vmatpush1.msra.mxu0 0.0
    %3075 = vmatprep.subr.mxu0 0.0
    %3076 = vmatpush1.msra.mxu0 0.0
    %3077 = vmatprep.subr.mxu0 0.0
    %3078 = vmatpush1.msra.mxu0 0.0
    %3079 = vmatprep.mubr.f32.mxu0 0.0
    %3080 = vmatmul.mubr.f32.gmra.mrb[0].mxu0 %v3013
    %v3081 = vpop.f32.mrb[0].mxu0
    %v3082 = vadd.f32 0.0, %v3081
    %v3083 = vpop.f32.mrb[0].mxu0
    %3084 = vdwg.mxu0
    %v3085 = vadd.f32 %v2997, %v3082
    %v3086 = vld [vmem:[%s1452] sm:$0x3]
    %s3087 = scalar_lea.vmem [#allocation11], 240
    %v3088 = vld [vmem:[%s3087] sm:$0xff]
    %v3089 = vld [vmem:[%s3087 + $0x8] sm:$0xff]
    %v3090 = vld [vmem:[%s3087 + $0x10] sm:$0xff]
    %v3091 = vld [vmem:[%s3087 + $0x18] sm:$0xff]
    %v3092 = vld [vmem:[%s3087 + $0x20] sm:$0xff]
    %v3093 = vld [vmem:[%s3087 + $0x28] sm:$0xff]
    %v3094 = vld [vmem:[%s3087 + $0x30] sm:$0xff]
    %v3095 = vld [vmem:[%s3087 + $0x38] sm:$0xff]
    %v3096 = vld [vmem:[%s3087 + $0x40] sm:$0xff]
    %v3097 = vld [vmem:[%s3087 + $0x48] sm:$0xff]
    %v3099 = vsel %vm2853, %v3086, 0
    %3101 = vmatprep.subr.mxu0 0.0
    %3102 = vmatpush1.msra.mxu0 %v3088
    %3103 = vmatprep.subr.mxu0 0.0
    %3104 = vmatpush1.msra.mxu0 %v3089
    %3105 = vmatprep.subr.mxu0 0.0
    %3106 = vmatpush1.msra.mxu0 %v3090
    %3107 = vmatprep.subr.mxu0 0.0
    %3108 = vmatpush1.msra.mxu0 %v3091
    %3109 = vmatprep.subr.mxu0 0.0
    %3110 = vmatpush1.msra.mxu0 %v3092
    %3111 = vmatprep.subr.mxu0 0.0
    %3112 = vmatpush1.msra.mxu0 %v3093
    %3113 = vmatprep.subr.mxu0 0.0
    %3114 = vmatpush1.msra.mxu0 %v3094
    %3115 = vmatprep.subr.mxu0 0.0
    %3116 = vmatpush1.msra.mxu0 %v3095
    %3117 = vmatprep.subr.mxu0 0.0
    %3118 = vmatpush1.msra.mxu0 %v3096
    %3119 = vmatprep.subr.mxu0 0.0
    %3120 = vmatpush1.msra.mxu0 %v3097
    %3121 = vmatprep.subr.mxu0 0.0
    %3122 = vmatpush1.msra.mxu0 0.0
    %3123 = vmatprep.subr.mxu0 0.0
    %3124 = vmatpush1.msra.mxu0 0.0
    %3125 = vmatprep.subr.mxu0 0.0
    %3126 = vmatpush1.msra.mxu0 0.0
    %3127 = vmatprep.subr.mxu0 0.0
    %3128 = vmatpush1.msra.mxu0 0.0
    %3129 = vmatprep.subr.mxu0 0.0
    %3130 = vmatpush1.msra.mxu0 0.0
    %3131 = vmatprep.subr.mxu0 0.0
    %3132 = vmatpush1.msra.mxu0 0.0
    %3133 = vmatprep.subr.mxu0 0.0
    %3134 = vmatpush1.msra.mxu0 0.0
    %3135 = vmatprep.subr.mxu0 0.0
    %3136 = vmatpush1.msra.mxu0 0.0
    %3137 = vmatprep.subr.mxu0 0.0
    %3138 = vmatpush1.msra.mxu0 0.0
    %3139 = vmatprep.subr.mxu0 0.0
    %3140 = vmatpush1.msra.mxu0 0.0
    %3141 = vmatprep.subr.mxu0 0.0
    %3142 = vmatpush1.msra.mxu0 0.0
    %3143 = vmatprep.subr.mxu0 0.0
    %3144 = vmatpush1.msra.mxu0 0.0
    %3145 = vmatprep.subr.mxu0 0.0
    %3146 = vmatpush1.msra.mxu0 0.0
    %3147 = vmatprep.subr.mxu0 0.0
    %3148 = vmatpush1.msra.mxu0 0.0
    %3149 = vmatprep.subr.mxu0 0.0
    %3150 = vmatpush1.msra.mxu0 0.0
    %3151 = vmatprep.subr.mxu0 0.0
    %3152 = vmatpush1.msra.mxu0 0.0
    %3153 = vmatprep.subr.mxu0 0.0
    %3154 = vmatpush1.msra.mxu0 0.0
    %3155 = vmatprep.subr.mxu0 0.0
    %3156 = vmatpush1.msra.mxu0 0.0
    %3157 = vmatprep.subr.mxu0 0.0
    %3158 = vmatpush1.msra.mxu0 0.0
    %3159 = vmatprep.subr.mxu0 0.0
    %3160 = vmatpush1.msra.mxu0 0.0
    %3161 = vmatprep.subr.mxu0 0.0
    %3162 = vmatpush1.msra.mxu0 0.0
    %3163 = vmatprep.subr.mxu0 0.0
    %3164 = vmatpush1.msra.mxu0 0.0
    %3165 = vmatprep.mubr.f32.mxu0 0.0
    %3166 = vmatmul.mubr.f32.gmra.mrb[0].mxu0 %v3099
    %v3167 = vpop.f32.mrb[0].mxu0
    %v3168 = vadd.f32 0.0, %v3167
    %v3169 = vpop.f32.mrb[0].mxu0
    %3170 = vdwg.mxu0
    %v3171 = vadd.f32 %v3085, %v3168
    %v3172 = vld [vmem:[%s1461] sm:$0x3]
    %s3173 = scalar_lea.vmem [#allocation11], 320
    %v3174 = vld [vmem:[%s3173] sm:$0xff]
    %v3175 = vld [vmem:[%s3173 + $0x8] sm:$0xff]
    %v3176 = vld [vmem:[%s3173 + $0x10] sm:$0xff]
    %v3177 = vld [vmem:[%s3173 + $0x18] sm:$0xff]
    %v3178 = vld [vmem:[%s3173 + $0x20] sm:$0xff]
    %v3179 = vld [vmem:[%s3173 + $0x28] sm:$0xff]
    %v3180 = vld [vmem:[%s3173 + $0x30] sm:$0xff]
    %v3181 = vld [vmem:[%s3173 + $0x38] sm:$0xff]
    %v3182 = vld [vmem:[%s3173 + $0x40] sm:$0xff]
    %v3183 = vld [vmem:[%s3173 + $0x48] sm:$0xff]
    %v3185 = vsel %vm2853, %v3172, 0
    %3187 = vmatprep.subr.mxu0 0.0
    %3188 = vmatpush1.msra.mxu0 %v3174
    %3189 = vmatprep.subr.mxu0 0.0
    %3190 = vmatpush1.msra.mxu0 %v3175
    %3191 = vmatprep.subr.mxu0 0.0
    %3192 = vmatpush1.msra.mxu0 %v3176
    %3193 = vmatprep.subr.mxu0 0.0
    %3194 = vmatpush1.msra.mxu0 %v3177
    %3195 = vmatprep.subr.mxu0 0.0
    %3196 = vmatpush1.msra.mxu0 %v3178
    %3197 = vmatprep.subr.mxu0 0.0
    %3198 = vmatpush1.msra.mxu0 %v3179
    %3199 = vmatprep.subr.mxu0 0.0
    %3200 = vmatpush1.msra.mxu0 %v3180
    %3201 = vmatprep.subr.mxu0 0.0
    %3202 = vmatpush1.msra.mxu0 %v3181
    %3203 = vmatprep.subr.mxu0 0.0
    %3204 = vmatpush1.msra.mxu0 %v3182
    %3205 = vmatprep.subr.mxu0 0.0
    %3206 = vmatpush1.msra.mxu0 %v3183
    %3207 = vmatprep.subr.mxu0 0.0
    %3208 = vmatpush1.msra.mxu0 0.0
    %3209 = vmatprep.subr.mxu0 0.0
    %3210 = vmatpush1.msra.mxu0 0.0
    %3211 = vmatprep.subr.mxu0 0.0
    %3212 = vmatpush1.msra.mxu0 0.0
    %3213 = vmatprep.subr.mxu0 0.0
    %3214 = vmatpush1.msra.mxu0 0.0
    %3215 = vmatprep.subr.mxu0 0.0
    %3216 = vmatpush1.msra.mxu0 0.0
    %3217 = vmatprep.subr.mxu0 0.0
    %3218 = vmatpush1.msra.mxu0 0.0
    %3219 = vmatprep.subr.mxu0 0.0
    %3220 = vmatpush1.msra.mxu0 0.0
    %3221 = vmatprep.subr.mxu0 0.0
    %3222 = vmatpush1.msra.mxu0 0.0
    %3223 = vmatprep.subr.mxu0 0.0
    %3224 = vmatpush1.msra.mxu0 0.0
    %3225 = vmatprep.subr.mxu0 0.0
    %3226 = vmatpush1.msra.mxu0 0.0
    %3227 = vmatprep.subr.mxu0 0.0
    %3228 = vmatpush1.msra.mxu0 0.0
    %3229 = vmatprep.subr.mxu0 0.0
    %3230 = vmatpush1.msra.mxu0 0.0
    %3231 = vmatprep.subr.mxu0 0.0
    %3232 = vmatpush1.msra.mxu0 0.0
    %3233 = vmatprep.subr.mxu0 0.0
    %3234 = vmatpush1.msra.mxu0 0.0
    %3235 = vmatprep.subr.mxu0 0.0
    %3236 = vmatpush1.msra.mxu0 0.0
    %3237 = vmatprep.subr.mxu0 0.0
    %3238 = vmatpush1.msra.mxu0 0.0
    %3239 = vmatprep.subr.mxu0 0.0
    %3240 = vmatpush1.msra.mxu0 0.0
    %3241 = vmatprep.subr.mxu0 0.0
    %3242 = vmatpush1.msra.mxu0 0.0
    %3243 = vmatprep.subr.mxu0 0.0
    %3244 = vmatpush1.msra.mxu0 0.0
    %3245 = vmatprep.subr.mxu0 0.0
    %3246 = vmatpush1.msra.mxu0 0.0
    %3247 = vmatprep.subr.mxu0 0.0
    %3248 = vmatpush1.msra.mxu0 0.0
    %3249 = vmatprep.subr.mxu0 0.0
    %3250 = vmatpush1.msra.mxu0 0.0
    %3251 = vmatprep.mubr.f32.mxu0 0.0
    %3252 = vmatmul.mubr.f32.gmra.mrb[0].mxu0 %v3185
    %v3253 = vpop.f32.mrb[0].mxu0
    %v3254 = vadd.f32 0.0, %v3253
    %v3255 = vpop.f32.mrb[0].mxu0
    %3256 = vdwg.mxu0
    %v3257 = vadd.f32 %v3171, %v3254
    %v3258 = vld [vmem:[%s6] sm:$0x1]
    %v3260 = vlaneseq
    %v3261 = vshrl.u32 %v3260, 7
    %v3262 = vsub.s32 0, %v3261
    %v3263 = vrot.slane %v3258, %v3262
    %v3265 = vadd.f32 %v3257, %v3263
    %v3266 = vld [vmem:[%s7] sm:$0xff]
    %v3267 = vld [vmem:[%s7 + $0x8] sm:$0xff]
    %v3268 = vld [vmem:[%s7 + $0x10] sm:$0xff]
    %v3269 = vld [vmem:[%s7 + $0x18] sm:$0xff]
    %v3270 = vld [vmem:[%s7 + $0x20] sm:$0xff]
    %v3271 = vld [vmem:[%s7 + $0x28] sm:$0xff]
    %v3272 = vld [vmem:[%s7 + $0x30] sm:$0xff]
    %v3273 = vld [vmem:[%s7 + $0x38] sm:$0xff]
    %v3274 = vld [vmem:[%s7 + $0x40] sm:$0xff]
    %v3275 = vld [vmem:[%s7 + $0x48] sm:$0xff]
    %v3276 = vld [vmem:[%s7 + $0x50] sm:$0xff]
    %v3277 = vld [vmem:[%s7 + $0x58] sm:$0xff]
    %v3278 = vld [vmem:[%s7 + $0x60] sm:$0xff]
    %v3279 = vld [vmem:[%s7 + $0x68] sm:$0xff]
    %v3280 = vld [vmem:[%s7 + $0x70] sm:$0xff]
    %v3281 = vld [vmem:[%s8] sm:$0x1]
    %v3283 = vlaneseq
    %v3284 = vshrl.u32 %v3283, 7
    %v3285 = vsub.s32 0, %v3284
    %v3286 = vrot.slane %v3281, %v3285
    %vm3288 = vcmask 982016
    %v3290 = vsel %vm3288, %v3265, 0
    %3292 = vmatprep.subr.mxu0 0.0
    %3293 = vmatpush1.msra.mxu0 %v3266
    %3294 = vmatprep.subr.mxu0 0.0
    %3295 = vmatpush1.msra.mxu0 %v3267
    %3296 = vmatprep.subr.mxu0 0.0
    %3297 = vmatpush1.msra.mxu0 %v3268
    %3298 = vmatprep.subr.mxu0 0.0
    %3299 = vmatpush1.msra.mxu0 %v3269
    %3300 = vmatprep.subr.mxu0 0.0
    %3301 = vmatpush1.msra.mxu0 %v3270
    %3302 = vmatprep.subr.mxu0 0.0
    %3303 = vmatpush1.msra.mxu0 %v3271
    %3304 = vmatprep.subr.mxu0 0.0
    %3305 = vmatpush1.msra.mxu0 %v3272
    %3306 = vmatprep.subr.mxu0 0.0
    %3307 = vmatpush1.msra.mxu0 %v3273
    %3308 = vmatprep.subr.mxu0 0.0
    %3309 = vmatpush1.msra.mxu0 %v3274
    %3310 = vmatprep.subr.mxu0 0.0
    %3311 = vmatpush1.msra.mxu0 %v3275
    %3312 = vmatprep.subr.mxu0 0.0
    %3313 = vmatpush1.msra.mxu0 %v3276
    %3314 = vmatprep.subr.mxu0 0.0
    %3315 = vmatpush1.msra.mxu0 %v3277
    %3316 = vmatprep.subr.mxu0 0.0
    %3317 = vmatpush1.msra.mxu0 %v3278
    %3318 = vmatprep.subr.mxu0 0.0
    %3319 = vmatpush1.msra.mxu0 %v3279
    %3320 = vmatprep.subr.mxu0 0.0
    %3321 = vmatpush1.msra.mxu0 %v3280
    %3322 = vmatprep.subr.mxu0 0.0
    %3323 = vmatpush1.msra.mxu0 0.0
    %3324 = vmatprep.subr.mxu0 0.0
    %3325 = vmatpush1.msra.mxu0 0.0
    %3326 = vmatprep.subr.mxu0 0.0
    %3327 = vmatpush1.msra.mxu0 0.0
    %3328 = vmatprep.subr.mxu0 0.0
    %3329 = vmatpush1.msra.mxu0 0.0
    %3330 = vmatprep.subr.mxu0 0.0
    %3331 = vmatpush1.msra.mxu0 0.0
    %3332 = vmatprep.subr.mxu0 0.0
    %3333 = vmatpush1.msra.mxu0 0.0
    %3334 = vmatprep.subr.mxu0 0.0
    %3335 = vmatpush1.msra.mxu0 0.0
    %3336 = vmatprep.subr.mxu0 0.0
    %3337 = vmatpush1.msra.mxu0 0.0
    %3338 = vmatprep.subr.mxu0 0.0
    %3339 = vmatpush1.msra.mxu0 0.0
    %3340 = vmatprep.subr.mxu0 0.0
    %3341 = vmatpush1.msra.mxu0 0.0
    %3342 = vmatprep.subr.mxu0 0.0
    %3343 = vmatpush1.msra.mxu0 0.0
    %3344 = vmatprep.subr.mxu0 0.0
    %3345 = vmatpush1.msra.mxu0 0.0
    %3346 = vmatprep.subr.mxu0 0.0
    %3347 = vmatpush1.msra.mxu0 0.0
    %3348 = vmatprep.subr.mxu0 0.0
    %3349 = vmatpush1.msra.mxu0 0.0
    %3350 = vmatprep.subr.mxu0 0.0
    %3351 = vmatpush1.msra.mxu0 0.0
    %3352 = vmatprep.subr.mxu0 0.0
    %3353 = vmatpush1.msra.mxu0 0.0
    %3354 = vmatprep.subr.mxu0 0.0
    %3355 = vmatpush1.msra.mxu0 0.0
    %3356 = vmatprep.mubr.f32.mxu0 0.0
    %3357 = vmatmul.mubr.f32.gmra.mrb[0].mxu0 %v3290
    %v3358 = vpop.f32.mrb[0].mxu0
    %v3359 = vadd.f32 %v3286, %v3358
    %v3360 = vpop.f32.mrb[0].mxu0
    %3361 = vdwg.mxu0
    %v3362 = vld [vmem:[%s9] sm:$0xff]
    %v3363 = vld [vmem:[%s9 + $0x8] sm:$0xff]
    %v3364 = vld [vmem:[%s9 + $0x10] sm:$0xff]
    %v3365 = vld [vmem:[%s9 + $0x18] sm:$0xff]
    %v3366 = vld [vmem:[%s9 + $0x20] sm:$0xff]
    %v3367 = vld [vmem:[%s9 + $0x28] sm:$0xff]
    %v3368 = vld [vmem:[%s9 + $0x30] sm:$0xff]
    %v3369 = vld [vmem:[%s9 + $0x38] sm:$0xff]
    %v3370 = vld [vmem:[%s9 + $0x40] sm:$0xff]
    %v3371 = vld [vmem:[%s9 + $0x48] sm:$0xff]
    %v3372 = vld [vmem:[%s9 + $0x50] sm:$0xf]
    %v3373 = vld [vmem:[%s10] sm:$0x1]
    %v3375 = vlaneseq
    %v3376 = vshrl.u32 %v3375, 7
    %v3377 = vsub.s32 0, %v3376
    %v3378 = vrot.slane %v3373, %v3377
    %v3381 = vsel %vm864, %v3359, 0
    %v3384 = vsel %vm871, %v3372, 0
    %3386 = vmatprep.subr.mxu0 0.0
    %3387 = vmatpush1.msra.mxu0 %v3362
    %3388 = vmatprep.subr.mxu0 0.0
    %3389 = vmatpush1.msra.mxu0 %v3363
    %3390 = vmatprep.subr.mxu0 0.0
    %3391 = vmatpush1.msra.mxu0 %v3364
    %3392 = vmatprep.subr.mxu0 0.0
    %3393 = vmatpush1.msra.mxu0 %v3365
    %3394 = vmatprep.subr.mxu0 0.0
    %3395 = vmatpush1.msra.mxu0 %v3366
    %3396 = vmatprep.subr.mxu0 0.0
    %3397 = vmatpush1.msra.mxu0 %v3367
    %3398 = vmatprep.subr.mxu0 0.0
    %3399 = vmatpush1.msra.mxu0 %v3368
    %3400 = vmatprep.subr.mxu0 0.0
    %3401 = vmatpush1.msra.mxu0 %v3369
    %3402 = vmatprep.subr.mxu0 0.0
    %3403 = vmatpush1.msra.mxu0 %v3370
    %3404 = vmatprep.subr.mxu0 0.0
    %3405 = vmatpush1.msra.mxu0 %v3371
    %3406 = vmatprep.subr.mxu0 0.0
    %3407 = vmatpush1.msra.mxu0 %v3384
    %3408 = vmatprep.subr.mxu0 0.0
    %3409 = vmatpush1.msra.mxu0 0.0
    %3410 = vmatprep.subr.mxu0 0.0
    %3411 = vmatpush1.msra.mxu0 0.0
    %3412 = vmatprep.subr.mxu0 0.0
    %3413 = vmatpush1.msra.mxu0 0.0
    %3414 = vmatprep.subr.mxu0 0.0
    %3415 = vmatpush1.msra.mxu0 0.0
    %3416 = vmatprep.subr.mxu0 0.0
    %3417 = vmatpush1.msra.mxu0 0.0
    %3418 = vmatprep.subr.mxu0 0.0
    %3419 = vmatpush1.msra.mxu0 0.0
    %3420 = vmatprep.subr.mxu0 0.0
    %3421 = vmatpush1.msra.mxu0 0.0
    %3422 = vmatprep.subr.mxu0 0.0
    %3423 = vmatpush1.msra.mxu0 0.0
    %3424 = vmatprep.subr.mxu0 0.0
    %3425 = vmatpush1.msra.mxu0 0.0
    %3426 = vmatprep.subr.mxu0 0.0
    %3427 = vmatpush1.msra.mxu0 0.0
    %3428 = vmatprep.subr.mxu0 0.0
    %3429 = vmatpush1.msra.mxu0 0.0
    %3430 = vmatprep.subr.mxu0 0.0
    %3431 = vmatpush1.msra.mxu0 0.0
    %3432 = vmatprep.subr.mxu0 0.0
    %3433 = vmatpush1.msra.mxu0 0.0
    %3434 = vmatprep.subr.mxu0 0.0
    %3435 = vmatpush1.msra.mxu0 0.0
    %3436 = vmatprep.subr.mxu0 0.0
    %3437 = vmatpush1.msra.mxu0 0.0
    %3438 = vmatprep.subr.mxu0 0.0
    %3439 = vmatpush1.msra.mxu0 0.0
    %3440 = vmatprep.subr.mxu0 0.0
    %3441 = vmatpush1.msra.mxu0 0.0
    %3442 = vmatprep.subr.mxu0 0.0
    %3443 = vmatpush1.msra.mxu0 0.0
    %3444 = vmatprep.subr.mxu0 0.0
    %3445 = vmatpush1.msra.mxu0 0.0
    %3446 = vmatprep.subr.mxu0 0.0
    %3447 = vmatpush1.msra.mxu0 0.0
    %3448 = vmatprep.subr.mxu0 0.0
    %3449 = vmatpush1.msra.mxu0 0.0
    %3450 = vmatprep.mubr.f32.mxu0 0.0
    %3451 = vmatmul.mubr.f32.gmra.mrb[0].mxu0 %v3381
    %v3452 = vpop.f32.mrb[0].mxu0
    %v3453 = vadd.f32 %v3378, %v3452
    %v3454 = vpop.f32.mrb[0].mxu0
    %3455 = vdwg.mxu0
    %vm3456 = vcmask 74752
    %v3457 = vsel %vm3456, %v3453, -inf
    %v3458 = vrot.slane %v3457, 4
    %v3459 = vmax.f32 %v3457, %v3458
    %v3460 = vrot.slane %v3459, 2
    %v3461 = vmax.f32 %v3459, %v3460
    %v3462 = vrot.slane %v3461, 1
    %v3463 = vmax.f32 %v3461, %v3462
    %v3464 = vsub.f32 %v3453, %v3463
    %v3465 = vmul.f32 %v3464, 1.442695
    %v3466 = vpow.pop %v3465
    %v3467 = vsel %vm3456, %v3466, 0.0
    %v3468 = vrot.slane %v3467, 4
    %v3469 = vadd.f32 %v3467, %v3468
    %v3470 = vrot.slane %v3469, 2
    %v3471 = vadd.f32 %v3469, %v3470
    %v3472 = vrot.slane %v3471, 1
    %v3473 = vadd.f32 %v3471, %v3472
    %v3474 = vrcp.pop %v3473
    %v3475 = vmul.f32 %v3466, %v3474
    %3476 = vst.msk [vmem:[#allocation12] sm:$0x3] %vm3456, %v3475
    // Predicated region
    $region58: #{model1_forward.1} parent=1 // pred_check
      _
    $region59: #{model1_forward.1} parent=1 // pred_check_branch
      %3478 = sbr.rel (0) target = $region61
    $region60: #{model1_forward.1} parent=1 // pred_region
      %s3480 = ssub.s32 32, 32
      %3481 = vsyncadd [#allocation8], %s3480
      %s3483 = sshll.u32 [#allocation12], 4
      %s3484 = int_to_ptr.vmem [resolvable:$true] %s3483
      %3486 = dma.vmem_to_hbm [thread:$0]  %s3484, 32, %s11, [#allocation8]
    $region61: #{model1_forward.1} parent=1 // pred_fallthru
      _
    // Predicated region
    $region62: #{model1_forward.1} parent=1 // pred_check
      _
    $region63: #{model1_forward.1} parent=1 // pred_check_branch
      %3488 = sbr.rel (0) target = $region65
    $region64: #{model1_forward.1} parent=1 // pred_region
      %3489 = dma.done [#allocation8], 32
    $region65: #{model1_forward.1} parent=1 // pred_fallthru
      _
    %3490 = vsyncpa [#allocation7], 1
    %3491 = vsyncpa [#allocation10], 1
    %3492 = vsyncpa [#allocation8], 1

</llo_original>
